<compile_context>
chip_gen: v7x
topology: tpu7x:2x2x1
jax: 0.10.0
libtpu: 0.0.40
codegen_flags: <defaults>
</compile_context>

<pallas_src>
import functools

import jax
import jax.numpy as jnp
from jax import lax
from jax.experimental import pallas as pl
from jax.experimental.pallas import tpu as pltpu


# ----------------------------------------------------------------------------
# Kernel 1: projections, LoRA gates, per-head normalize, k/v modulation.
# ----------------------------------------------------------------------------
def _make_prep_kernel(use_vfirst):
    def kernel(*refs):
        if use_vfirst:
            (x_ref, mask_ref, vfirst_ref,
             wr_ref, br_ref, wk_ref, bk_ref, wv_ref, bv_ref,
             w1_ref, w2_ref, w0_ref,
             a1_ref, a2_ref, a0_ref,
             g1_ref, g2_ref,
             v1_ref, v2_ref, v0_ref,
             kkp_ref, kap_ref, mh_ref, mht_ref,
             r_out, dec_out, k_out, v_out, nkk_out, kka_out, g_out) = refs
        else:
            (x_ref, mask_ref,
             wr_ref, br_ref, wk_ref, bk_ref, wv_ref, bv_ref,
             w1_ref, w2_ref, w0_ref,
             a1_ref, a2_ref, a0_ref,
             g1_ref, g2_ref,
             kkp_ref, kap_ref, mh_ref, mht_ref,
             r_out, dec_out, k_out, v_out, nkk_out, kka_out, g_out) = refs

        f32 = jnp.float32
        bf16 = jnp.bfloat16

        x = x_ref[...] * mask_ref[...]                       # (TM, C) f32
        xb = x.astype(bf16)

        # Projections (repeat_kv is folded into wk/wv/bk/bv by the wrapper).
        r = jnp.dot(xb, wr_ref[...], preferred_element_type=f32) + br_ref[...]
        k = jnp.dot(xb, wk_ref[...], preferred_element_type=f32) + bk_ref[...]
        v = jnp.dot(xb, wv_ref[...], preferred_element_type=f32) + bv_ref[...]

        # decay LoRA:  w = -softplus(-(w0 + tanh(x@w1)@w2)) - 0.5
        h = jnp.tanh(jnp.dot(xb, w1_ref[...], preferred_element_type=f32))
        wl = jnp.dot(h.astype(bf16), w2_ref[...], preferred_element_type=f32)
        w = -jax.nn.softplus(-(w0_ref[...] + wl)) - 0.5
        dec = jnp.exp(-jnp.exp(w))                           # precomputed decay

        # in-context learning rate: a = sigmoid(a0 + x@a1@a2)
        ah = jnp.dot(xb, a1_ref[...], preferred_element_type=f32)
        a = jax.nn.sigmoid(
            a0_ref[...] + jnp.dot(ah.astype(bf16), a2_ref[...],
                                  preferred_element_type=f32))

        # output gate: g = 1 + sigmoid(x@g1)@g2
        gh = jax.nn.sigmoid(jnp.dot(xb, g1_ref[...], preferred_element_type=f32))
        g = 1.0 + jnp.dot(gh.astype(bf16), g2_ref[...],
                          preferred_element_type=f32)

        if use_vfirst:
            vh = jnp.dot(xb, v1_ref[...], preferred_element_type=f32)
            gv = jax.nn.sigmoid(
                v0_ref[...] + jnp.dot(vh.astype(bf16), v2_ref[...],
                                      preferred_element_type=f32))
            v = v + (vfirst_ref[...] - v) * gv

        # kk = L2-normalize-per-head(k * k_k); per-head reductions via
        # head-indicator matmuls (avoids in-kernel lane-dim reshapes) + rsqrt.
        kk = k * kkp_ref[...]
        nsq = jnp.dot(kk * kk, mh_ref[...], preferred_element_type=f32)  # (TM,H)
        inv = lax.rsqrt(jnp.maximum(nsq, 1e-24))   # == 1 / max(||kk||, 1e-12)
        kk = kk * jnp.dot(inv, mht_ref[...], preferred_element_type=f32)

        k_mod = k * (1.0 + (a - 1.0) * kap_ref[...])

        r_out[...] = r.astype(r_out.dtype)
        dec_out[...] = dec                                   # keep f32
        k_out[...] = k_mod.astype(k_out.dtype)
        v_out[...] = v.astype(v_out.dtype)                   # f32 only if v_first
        nkk_out[...] = (-kk).astype(nkk_out.dtype)
        kka_out[...] = (kk * a).astype(kka_out.dtype)
        g_out[...] = g.astype(g_out.dtype)

    return kernel


# ----------------------------------------------------------------------------
# Kernel 2: RWKV-7 generalized delta-rule recurrence (RUN_CUDA_RWKV7g) with a
# fused bonus-residual + output-gate epilogue.
# ----------------------------------------------------------------------------
def _wkv_kernel(TT,
                rk_ref, w_ref, r_ref, k_ref, v_ref, a_ref, b_ref, g_ref,
                o_ref, state_ref, y_ref):
    #  state[h,i,j] <- state[h,i,j]*decay[h,j] + v[h,i]*k[h,j]
    #                  + (sum_j' a[h,j']*state[h,i,j']) * b[h,j]
    #  y[h,i]        = sum_j state[h,i,j] * r[h,j]
    f32 = jnp.float32

    @pl.when(pl.program_id(1) == 0)
    def _init():
        state_ref[...] = jnp.zeros_like(state_ref)

    def body(t, state):                                      # state (H, N, N)
        dec = w_ref[t]                                       # (H, N) f32
        r_t = r_ref[t].astype(f32)
        k_t = k_ref[t].astype(f32)
        v_t = v_ref[t].astype(f32)
        a_t = a_ref[t].astype(f32)
        b_t = b_ref[t].astype(f32)
        sa = jnp.sum(state * a_t[:, None, :], axis=-1)       # (H, N)
        state = (state * dec[:, None, :]
                 + v_t[:, :, None] * k_t[:, None, :]
                 + sa[:, :, None] * b_t[:, None, :])
        y_ref[t] = jnp.sum(state * r_t[:, None, :], axis=-1)
        return state

    state_ref[...] = lax.fori_loop(0, TT, body, state_ref[...])

    # Fused epilogue (vectorized over the whole time tile):
    #   out = (y + (r*k*r_k).sum(-1,keepdim) * v) * g
    r_blk = r_ref[...].astype(f32)
    k_blk = k_ref[...].astype(f32)
    v_blk = v_ref[...].astype(f32)
    bonus = jnp.sum(r_blk * k_blk * rk_ref[...][None, :, :], axis=-1,
                    keepdims=True) * v_blk
    o_ref[...] = ((y_ref[...] + bonus) * g_ref[...].astype(f32)
                  ).astype(o_ref.dtype)


# ----------------------------------------------------------------------------
# Kernel 3: output projection (row x column tiled bf16 matmul).
# ----------------------------------------------------------------------------
def _final_kernel(xx_ref, wo_ref, bo_ref, o_ref):
    o_ref[...] = (jnp.dot(xx_ref[...], wo_ref[...],
                          preferred_element_type=jnp.float32)
                  + bo_ref[...]).astype(o_ref.dtype)


# ----------------------------------------------------------------------------
# Wrapper.
# ----------------------------------------------------------------------------
def _round_up(x, m):
    return (x + m - 1) // m * m


def _pick_tile(total, candidates):
    for c in candidates:
        if total % c == 0:
            return c
    return total


def _vmem_limit_bytes(C):
    # Resident bf16 weights exceed the default scoped-VMEM limit for large C.
    # Raise it, but never above ~3/4 of the physical per-core VMEM so the same
    # code is safe on v7x (64 MiB) as well as v5e/v6e (128 MiB).
    if C < 2048:
        return None
    try:
        cap = int(pltpu.get_tpu_info().vmem_capacity_bytes)
    except Exception:
        cap = 128 * 1024 * 1024
    return min(cap * 3 // 4, 100 * 1024 * 1024)


def _compiler_params(dims, C):
    return pltpu.CompilerParams(dimension_semantics=dims,
                                vmem_limit_bytes=_vmem_limit_bytes(C))


@functools.partial(jax.jit,
                   static_argnames=("layer_id", "head_size", "time_tile",
                                    "row_tile"))
def rwkv_tmix_forward(params, x, v_first, attention_mask, *, layer_id,
                      head_size, time_tile=None, row_tile=None):
    B, T, C = x.shape
    N = head_size
    H = C // N
    f32, bf16 = jnp.float32, jnp.bfloat16
    use_vfirst = layer_id != 0
    v_first_in = v_first
    # v only needs f32 precision when it is returned as v_first (layer 0);
    # otherwise carry it between kernels in bf16 to halve that slab's traffic.
    v_dtype = bf16 if use_vfirst else f32

    # ---- tiling / padding ---------------------------------------------------
    TT = time_tile if time_tile is not None else (
        128 if T >= 128 else _round_up(T, 8))
    T_pad = _round_up(T, TT)
    BTp = B * T_pad
    TM = row_tile if row_tile is not None else _pick_tile(
        BTp, (256, 128, 64, 32, 16, 8))
    TN = _pick_tile(C, (512, 256, 128))
    assert BTp % TM == 0 and T_pad % TT == 0 and C % TN == 0

    pad_t = T_pad - T
    if pad_t:
        x = jnp.pad(x, ((0, 0), (0, pad_t), (0, 0)))
        attention_mask = jnp.pad(attention_mask, ((0, 0), (0, pad_t)))
        if use_vfirst:
            v_first = jnp.pad(v_first, ((0, 0), (0, pad_t), (0, 0)))

    x2 = x.reshape(BTp, C).astype(f32)
    mask2 = attention_mask.reshape(BTp, 1).astype(f32)

    # ---- GQA: fold repeat_kv into the key/value projections ------------------
    C_kv = params["wk_t"].shape[1]
    Hkv = C_kv // N
    n_rep = C // C_kv

    def rep_w(w):                                   # (C, C_kv) -> (C, C)
        w = jnp.broadcast_to(w.reshape(C, Hkv, 1, N), (C, Hkv, n_rep, N))
        return w.reshape(C, C)

    def rep_b(b):                                   # (1, C_kv) -> (1, C)
        b = jnp.broadcast_to(b.reshape(1, Hkv, 1, N), (1, Hkv, n_rep, N))
        return b.reshape(1, C)

    wr_b = params["wr_t"].astype(bf16)
    wk_b = rep_w(params["wk_t"]).astype(bf16)
    wv_b = rep_w(params["wv_t"]).astype(bf16)
    wo_b = params["wo_t"].astype(bf16)
    bk_f = rep_b(params["bk"])
    bv_f = rep_b(params["bv"])

    # head-membership indicator matrices for the per-head L2 norm
    head_ids = jnp.arange(C, dtype=jnp.int32) // N
    mh = (head_ids[:, None] == jnp.arange(H, dtype=jnp.int32)[None, :]
          ).astype(f32)                             # (C, H)
    mht = mh.T                                      # (H, C)

    # ---- kernel 1: projections / LoRA / modulation ---------------------------
    nrow = BTp // TM
    row_spec = pl.BlockSpec((TM, C), lambda i: (i, 0))
    mask_spec = pl.BlockSpec((TM, 1), lambda i: (i, 0))

    def w_spec(arr):
        return pl.BlockSpec(arr.shape, lambda i: (0, 0))     # resident weight

    act_args = [x2, mask2]
    act_specs = [row_spec, mask_spec]
    if use_vfirst:
        act_args.append(v_first.reshape(BTp, C).astype(f32))
        act_specs.append(row_spec)

    weight_args = [wr_b, params["br"], wk_b, bk_f, wv_b, bv_f,
                   params["w1"].astype(bf16), params["w2"].astype(bf16),
                   params["w0"],
                   params["a1"].astype(bf16), params["a2"].astype(bf16),
                   params["a0"],
                   params["g1"].astype(bf16), params["g2"].astype(bf16)]
    if use_vfirst:
        weight_args += [params["v1"].astype(bf16), params["v2"].astype(bf16),
                        params["v0"]]
    weight_args += [params["k_k"], params["k_a"], mh, mht]
    weight_specs = [w_spec(a) for a in weight_args]

    slab = lambda dt: jax.ShapeDtypeStruct((BTp, C), dt)
    r, dec, k, v, nkk, kka, g = pl.pallas_call(
        _make_prep_kernel(use_vfirst),
        out_shape=(slab(bf16), slab(f32), slab(bf16), slab(v_dtype),
                   slab(bf16), slab(bf16), slab(bf16)),
        grid=(nrow,),
        in_specs=act_specs + weight_specs,
        out_specs=[row_spec] * 7,
        compiler_params=_compiler_params(("parallel",), C),
    )(*act_args, *weight_args)

    # ---- kernel 2: RWKV-7 recurrence + fused bonus/gate epilogue -------------
    def to4(z):
        return z.reshape(B, T_pad, H, N)

    nTT = T_pad // TT
    seq_spec = pl.BlockSpec((pl.Squeezed(), TT, H, N),
                            lambda b, t: (b, t, 0, 0))
    rk_spec = pl.BlockSpec((H, N), lambda b, t: (0, 0))

    xx4 = pl.pallas_call(
        functools.partial(_wkv_kernel, TT),
        out_shape=jax.ShapeDtypeStruct((B, T_pad, H, N), bf16),
        grid=(B, nTT),
        in_specs=[rk_spec] + [seq_spec] * 7,
        out_specs=seq_spec,
        scratch_shapes=[pltpu.VMEM((H, N, N), f32),        # carried state
                        pltpu.VMEM((TT, H, N), f32)],      # per-tile y buffer
        compiler_params=pltpu.CompilerParams(
            dimension_semantics=("parallel", "arbitrary")),
    )(params["r_k"], to4(dec), to4(r), to4(k), to4(v), to4(nkk), to4(kka),
      to4(g))

    # ---- kernel 3: output projection -----------------------------------------
    out2 = pl.pallas_call(
        _final_kernel,
        out_shape=jax.ShapeDtypeStruct((BTp, C), f32),
        grid=(nrow, C // TN),
        in_specs=[pl.BlockSpec((TM, C), lambda i, j: (i, 0)),
                  pl.BlockSpec((C, TN), lambda i, j: (0, j)),
                  pl.BlockSpec((1, TN), lambda i, j: (0, j))],
        out_specs=pl.BlockSpec((TM, TN), lambda i, j: (i, j)),
        compiler_params=_compiler_params(("parallel", "parallel"), C),
    )(xx4.reshape(BTp, C), wo_b, params["bo"])

    out = out2.reshape(B, T_pad, C)[:, :T]
    if use_vfirst:
        v_first_out = v_first_in
    else:
        v_first_out = v.reshape(B, T_pad, C)[:, :T]
    return out, v_first_out


# ----------------------------------------------------------------------------
# Pure-JAX f32 reference (same math, token-serial scan) for validation.
# ----------------------------------------------------------------------------
@functools.partial(jax.jit, static_argnames=("layer_id", "head_size"))
def rwkv_tmix_reference(params, x, v_first, attention_mask, *, layer_id,
                        head_size):
    B, T, C = x.shape
    N = head_size
    H = C // N
    f32 = jnp.float32

    x = x.astype(f32) * attention_mask[..., None].astype(f32)
    C_kv = params["wk_t"].shape[1]
    Hkv = C_kv // N
    n_rep = C // C_kv

    r = x @ params["wr_t"] + params["br"]
    k = x @ params["wk_t"] + params["bk"]
    v = x @ params["wv_t"] + params["bv"]

    def rep(z):                                   # repeat_kv
        z = jnp.broadcast_to(z.reshape(B, T, Hkv, 1, N), (B, T, Hkv, n_rep, N))
        return z.reshape(B, T, C)

    k = rep(k)
    v = rep(v)

    w = -jax.nn.softplus(-(params["w0"] + jnp.tanh(x @ params["w1"])
                           @ params["w2"])) - 0.5
    if layer_id == 0:
        v_first_out = v
    else:
        v = v + (v_first - v) * jax.nn.sigmoid(
            params["v0"] + (x @ params["v1"]) @ params["v2"])
        v_first_out = v_first
    g = 1.0 + jax.nn.sigmoid(x @ params["g1"]) @ params["g2"]
    a = jax.nn.sigmoid(params["a0"] + (x @ params["a1"]) @ params["a2"])

    kk = (k * params["k_k"]).reshape(B, T, H, N)
    kk = kk / jnp.maximum(
        jnp.sqrt(jnp.sum(kk * kk, axis=-1, keepdims=True)), 1e-12)
    kk = kk.reshape(B, T, C)
    k = k * (1.0 + (a - 1.0) * params["k_a"])

    dec = jnp.exp(-jnp.exp(w)).reshape(B, T, H, N)
    r4 = r.reshape(B, T, H, N)
    k4 = k.reshape(B, T, H, N)
    v4 = v.reshape(B, T, H, N)
    a4 = (-kk).reshape(B, T, H, N)
    b4 = (kk * a).reshape(B, T, H, N)

    def step(state, inp):
        dec_t, r_t, k_t, v_t, a_t, b_t = inp
        sa = jnp.einsum("bhij,bhj->bhi", state, a_t)
        state = (state * dec_t[:, :, None, :]
                 + v_t[..., :, None] * k_t[..., None, :]
                 + sa[..., :, None] * b_t[..., None, :])
        y = jnp.einsum("bhij,bhj->bhi", state, r_t)
        return state, y

    tfirst = lambda z: jnp.moveaxis(z, 1, 0)
    _, ys = lax.scan(step, jnp.zeros((B, H, N, N), f32),
                     (tfirst(dec), tfirst(r4), tfirst(k4), tfirst(v4),
                      tfirst(a4), tfirst(b4)))
    y = jnp.moveaxis(ys, 0, 1).reshape(B, T, C)

    bonus = (jnp.sum(r4 * k4 * params["r_k"][None, None], axis=-1,
                     keepdims=True) * v4).reshape(B, T, C)
    out = ((y + bonus) * g) @ params["wo_t"] + params["bo"]
    return out, v_first_out


# ----------------------------------------------------------------------------
# Deterministic synthetic parameters (shapes match __init__; zero/orthogonal
# inits replaced by small randoms so every compute path is exercised).
# ----------------------------------------------------------------------------
def init_params(key, *, n_embd, head_size, num_attention_heads,
                num_key_value_heads, layer_id, n_layer):
    f32 = jnp.float32
    C = n_embd
    N = head_size
    H = num_attention_heads
    C_kv = num_key_value_heads * N
    assert C == num_attention_heads * N

    D_DECAY = max(32, int(round(1.8 * C ** 0.5 / 32) * 32))
    D_AAA = max(32, int(round(1.8 * C ** 0.5 / 32) * 32))
    D_MV = max(32, int(round(1.3 * C ** 0.5 / 32) * 32))
    D_GATE = max(32, int(round(0.6 * C ** 0.8 / 32) * 32))

    ks = list(jax.random.split(key, 20))

    def rnd(shape, scale):
        return jax.random.normal(ks.pop(), shape, dtype=f32) * scale

    ratio_0_to_1 = layer_id / max(n_layer - 1, 1)
    n = jnp.arange(C, dtype=f32)
    decay_speed = -7.0 + 5.0 * (n / (C - 1)) ** (0.85 + 1.0 * ratio_0_to_1 ** 0.5)

    return dict(
        # nn.Linear weights are (out,in), applied as x @ W.T; we store W.T.
        wr_t=rnd((C, C), C ** -0.5), br=rnd((1, C), 0.1),
        wk_t=rnd((C, C_kv), C ** -0.5), bk=rnd((1, C_kv), 0.1),
        wv_t=rnd((C, C_kv), C ** -0.5), bv=rnd((1, C_kv), 0.1),
        wo_t=rnd((C, C), C ** -0.5), bo=rnd((1, C), 0.1),
        w1=rnd((C, D_DECAY), 0.1), w2=rnd((D_DECAY, C), 0.1),
        w0=(decay_speed + 0.5).reshape(1, C).astype(f32),
        a1=rnd((C, D_AAA), 0.1), a2=rnd((D_AAA, C), 0.1),
        a0=jnp.zeros((1, C), f32),
        v1=rnd((C, D_MV), 0.1), v2=rnd((D_MV, C), 0.1),
        v0=jnp.ones((1, C), f32),
        g1=rnd((C, D_GATE), 0.1), g2=rnd((D_GATE, C), 0.1),
        k_k=jnp.full((1, C), 0.85, f32),
        k_a=jnp.ones((1, C), f32),
        r_k=rnd((H, N), 0.1),
    )


if __name__ == "__main__":
    B, T = 2, 64
    head_size = 16
    num_attention_heads = 4            # C = 64, H = 4
    num_key_value_heads = 2            # GQA: n_rep = 2
    C = num_attention_heads * head_size
    n_layer = 4

    root = jax.random.PRNGKey(0)
    k0, k1, kx = jax.random.split(root, 3)
    params0 = init_params(k0, n_embd=C, head_size=head_size,
                          num_attention_heads=num_attention_heads,
                          num_key_value_heads=num_key_value_heads,
                          layer_id=0, n_layer=n_layer)
    params1 = init_params(k1, n_embd=C, head_size=head_size,
                          num_attention_heads=num_attention_heads,
                          num_key_value_heads=num_key_value_heads,
                          layer_id=1, n_layer=n_layer)

    x0 = jax.random.normal(kx, (B, T, C), dtype=jnp.float32)
    x1 = jax.random.normal(jax.random.PRNGKey(7), (B, T, C), dtype=jnp.float32)
    mask = jnp.ones((B, T), dtype=jnp.float32)
    v_dummy = jnp.zeros((B, T, C), dtype=jnp.float32)

    # layer 0 (produces v_first), then layer 1 (consumes it); small tiles so
    # the row grid and the cross-tile state carry are exercised.
    out0, vf0 = rwkv_tmix_forward(params0, x0, v_dummy, mask, layer_id=0,
                                  head_size=head_size, time_tile=16,
                                  row_tile=32)
    out1, vf1 = rwkv_tmix_forward(params1, x1, vf0, mask, layer_id=1,
                                  head_size=head_size, time_tile=16,
                                  row_tile=32)
    jax.block_until_ready((out0, vf0, out1, vf1))

    # Validate against the pure-JAX f32 reference (bf16 matmuls -> loose tol).
    ref0, rvf0 = rwkv_tmix_reference(params0, x0, v_dummy, mask, layer_id=0,
                                     head_size=head_size)
    ref1, _ = rwkv_tmix_reference(params1, x1, vf0, mask, layer_id=1,
                                  head_size=head_size)

    def rel_err(a, b):
        return float(jnp.linalg.norm(a - b) / (jnp.linalg.norm(b) + 1e-9))

    assert out0.shape == (B, T, C) and vf0.shape == (B, T, C)
    assert out1.shape == (B, T, C) and vf1.shape == (B, T, C)
    assert bool(jnp.all(jnp.isfinite(out0))) and bool(jnp.all(jnp.isfinite(out1)))
    assert rel_err(out0, ref0) < 3e-2, rel_err(out0, ref0)
    assert rel_err(vf0, rvf0) < 3e-2, rel_err(vf0, rvf0)
    assert rel_err(out1, ref1) < 3e-2, rel_err(out1, ref1)
    print("KERNEL_OK")
</pallas_src>

<mosaic_0001>
module attributes {stable_mosaic.version = 11 : i64} {
  func.func @kernel(%arg0: i32, %arg1: memref<32x64xf32, #tpu.memory_space<vmem>>, %arg2: memref<32x1xf32, #tpu.memory_space<vmem>>, %arg3: memref<64x64xbf16, #tpu.memory_space<vmem>>, %arg4: memref<1x64xf32, #tpu.memory_space<vmem>>, %arg5: memref<64x64xbf16, #tpu.memory_space<vmem>>, %arg6: memref<1x64xf32, #tpu.memory_space<vmem>>, %arg7: memref<64x64xbf16, #tpu.memory_space<vmem>>, %arg8: memref<1x64xf32, #tpu.memory_space<vmem>>, %arg9: memref<64x32xbf16, #tpu.memory_space<vmem>>, %arg10: memref<32x64xbf16, #tpu.memory_space<vmem>>, %arg11: memref<1x64xf32, #tpu.memory_space<vmem>>, %arg12: memref<64x32xbf16, #tpu.memory_space<vmem>>, %arg13: memref<32x64xbf16, #tpu.memory_space<vmem>>, %arg14: memref<1x64xf32, #tpu.memory_space<vmem>>, %arg15: memref<64x32xbf16, #tpu.memory_space<vmem>>, %arg16: memref<32x64xbf16, #tpu.memory_space<vmem>>, %arg17: memref<1x64xf32, #tpu.memory_space<vmem>>, %arg18: memref<1x64xf32, #tpu.memory_space<vmem>>, %arg19: memref<64x4xf32, #tpu.memory_space<vmem>>, %arg20: memref<4x64xf32, #tpu.memory_space<vmem>>, %arg21: memref<32x64xbf16, #tpu.memory_space<vmem>>, %arg22: memref<32x64xf32, #tpu.memory_space<vmem>>, %arg23: memref<32x64xbf16, #tpu.memory_space<vmem>>, %arg24: memref<32x64xf32, #tpu.memory_space<vmem>>, %arg25: memref<32x64xbf16, #tpu.memory_space<vmem>>, %arg26: memref<32x64xbf16, #tpu.memory_space<vmem>>, %arg27: memref<32x64xbf16, #tpu.memory_space<vmem>>) attributes {dimension_semantics = [#tpu.dimension_semantics<parallel>], iteration_bounds = array<i64: 4>, scalar_prefetch = 0 : i64, scratch_operands = 0 : i64, tpu.core_type = #tpu.core_type<tc>, window_params = [{transform_indices = @transform_0, window_bounds = array<i64: 32, 64>}, {transform_indices = @transform_1, window_bounds = array<i64: 32, 1>}, {pipeline_mode = #tpu.pipeline_mode<synchronous>, transform_indices = @transform_2, window_bounds = array<i64: 64, 64>}, {pipeline_mode = #tpu.pipeline_mode<synchronous>, transform_indices = @transform_3, window_bounds = array<i64: 1, 64>}, {pipeline_mode = #tpu.pipeline_mode<synchronous>, transform_indices = @transform_4, window_bounds = array<i64: 64, 64>}, {pipeline_mode = #tpu.pipeline_mode<synchronous>, transform_indices = @transform_5, window_bounds = array<i64: 1, 64>}, {pipeline_mode = #tpu.pipeline_mode<synchronous>, transform_indices = @transform_6, window_bounds = array<i64: 64, 64>}, {pipeline_mode = #tpu.pipeline_mode<synchronous>, transform_indices = @transform_7, window_bounds = array<i64: 1, 64>}, {pipeline_mode = #tpu.pipeline_mode<synchronous>, transform_indices = @transform_8, window_bounds = array<i64: 64, 32>}, {pipeline_mode = #tpu.pipeline_mode<synchronous>, transform_indices = @transform_9, window_bounds = array<i64: 32, 64>}, {pipeline_mode = #tpu.pipeline_mode<synchronous>, transform_indices = @transform_10, window_bounds = array<i64: 1, 64>}, {pipeline_mode = #tpu.pipeline_mode<synchronous>, transform_indices = @transform_11, window_bounds = array<i64: 64, 32>}, {pipeline_mode = #tpu.pipeline_mode<synchronous>, transform_indices = @transform_12, window_bounds = array<i64: 32, 64>}, {pipeline_mode = #tpu.pipeline_mode<synchronous>, transform_indices = @transform_13, window_bounds = array<i64: 1, 64>}, {pipeline_mode = #tpu.pipeline_mode<synchronous>, transform_indices = @transform_14, window_bounds = array<i64: 64, 32>}, {pipeline_mode = #tpu.pipeline_mode<synchronous>, transform_indices = @transform_15, window_bounds = array<i64: 32, 64>}, {pipeline_mode = #tpu.pipeline_mode<synchronous>, transform_indices = @transform_16, window_bounds = array<i64: 1, 64>}, {pipeline_mode = #tpu.pipeline_mode<synchronous>, transform_indices = @transform_17, window_bounds = array<i64: 1, 64>}, {pipeline_mode = #tpu.pipeline_mode<synchronous>, transform_indices = @transform_18, window_bounds = array<i64: 64, 4>}, {pipeline_mode = #tpu.pipeline_mode<synchronous>, transform_indices = @transform_19, window_bounds = array<i64: 4, 64>}, {transform_indices = @transform_20, window_bounds = array<i64: 32, 64>}, {transform_indices = @transform_21, window_bounds = array<i64: 32, 64>}, {transform_indices = @transform_22, window_bounds = array<i64: 32, 64>}, {transform_indices = @transform_23, window_bounds = array<i64: 32, 64>}, {transform_indices = @transform_24, window_bounds = array<i64: 32, 64>}, {transform_indices = @transform_25, window_bounds = array<i64: 32, 64>}, {transform_indices = @transform_26, window_bounds = array<i64: 32, 64>}]} {
    %c0 = arith.constant 0 : index
    %c0_0 = arith.constant 0 : index
    %0 = vector.load %arg1[%c0, %c0_0] : memref<32x64xf32, #tpu.memory_space<vmem>>, vector<32x64xf32>
    %c0_1 = arith.constant 0 : index
    %c0_2 = arith.constant 0 : index
    %1 = vector.load %arg2[%c0_1, %c0_2] : memref<32x1xf32, #tpu.memory_space<vmem>>, vector<32x1xf32>
    %2 = vector.broadcast %1 : vector<32x1xf32> to vector<32x64xf32>
    %3 = arith.mulf %0, %2 : vector<32x64xf32>
    %4 = arith.truncf %3 : vector<32x64xf32> to vector<32x64xbf16>
    %c0_3 = arith.constant 0 : index
    %c0_4 = arith.constant 0 : index
    %5 = vector.load %arg3[%c0_3, %c0_4] : memref<64x64xbf16, #tpu.memory_space<vmem>>, vector<64x64xbf16>
    %cst = arith.constant dense<0.000000e+00> : vector<32x64xf32>
    %6 = tpu.matmul %4, %5, %cst {dimension_numbers = #tpu.dot_dimension_numbers<[1], [0], [0], [1], [0, 0, 1, 1], [], []>} : vector<32x64xbf16>, vector<64x64xbf16>, vector<32x64xf32> -> vector<32x64xf32>
    %c0_5 = arith.constant 0 : index
    %c0_6 = arith.constant 0 : index
    %7 = vector.load %arg4[%c0_5, %c0_6] : memref<1x64xf32, #tpu.memory_space<vmem>>, vector<1x64xf32>
    %8 = vector.broadcast %7 : vector<1x64xf32> to vector<32x64xf32>
    %9 = arith.addf %6, %8 : vector<32x64xf32>
    %c0_7 = arith.constant 0 : index
    %c0_8 = arith.constant 0 : index
    %10 = vector.load %arg5[%c0_7, %c0_8] : memref<64x64xbf16, #tpu.memory_space<vmem>>, vector<64x64xbf16>
    %cst_9 = arith.constant dense<0.000000e+00> : vector<32x64xf32>
    %11 = tpu.matmul %4, %10, %cst_9 {dimension_numbers = #tpu.dot_dimension_numbers<[1], [0], [0], [1], [0, 0, 1, 1], [], []>} : vector<32x64xbf16>, vector<64x64xbf16>, vector<32x64xf32> -> vector<32x64xf32>
    %c0_10 = arith.constant 0 : index
    %c0_11 = arith.constant 0 : index
    %12 = vector.load %arg6[%c0_10, %c0_11] : memref<1x64xf32, #tpu.memory_space<vmem>>, vector<1x64xf32>
    %13 = vector.broadcast %12 : vector<1x64xf32> to vector<32x64xf32>
    %14 = arith.addf %11, %13 : vector<32x64xf32>
    %c0_12 = arith.constant 0 : index
    %c0_13 = arith.constant 0 : index
    %15 = vector.load %arg7[%c0_12, %c0_13] : memref<64x64xbf16, #tpu.memory_space<vmem>>, vector<64x64xbf16>
    %cst_14 = arith.constant dense<0.000000e+00> : vector<32x64xf32>
    %16 = tpu.matmul %4, %15, %cst_14 {dimension_numbers = #tpu.dot_dimension_numbers<[1], [0], [0], [1], [0, 0, 1, 1], [], []>} : vector<32x64xbf16>, vector<64x64xbf16>, vector<32x64xf32> -> vector<32x64xf32>
    %c0_15 = arith.constant 0 : index
    %c0_16 = arith.constant 0 : index
    %17 = vector.load %arg8[%c0_15, %c0_16] : memref<1x64xf32, #tpu.memory_space<vmem>>, vector<1x64xf32>
    %18 = vector.broadcast %17 : vector<1x64xf32> to vector<32x64xf32>
    %19 = arith.addf %16, %18 : vector<32x64xf32>
    %c0_17 = arith.constant 0 : index
    %c0_18 = arith.constant 0 : index
    %20 = vector.load %arg9[%c0_17, %c0_18] : memref<64x32xbf16, #tpu.memory_space<vmem>>, vector<64x32xbf16>
    %cst_19 = arith.constant dense<0.000000e+00> : vector<32x32xf32>
    %21 = tpu.matmul %4, %20, %cst_19 {dimension_numbers = #tpu.dot_dimension_numbers<[1], [0], [0], [1], [0, 0, 1, 1], [], []>} : vector<32x64xbf16>, vector<64x32xbf16>, vector<32x32xf32> -> vector<32x32xf32>
    %22 = math.tanh %21 : vector<32x32xf32>
    %23 = arith.truncf %22 : vector<32x32xf32> to vector<32x32xbf16>
    %c0_20 = arith.constant 0 : index
    %c0_21 = arith.constant 0 : index
    %24 = vector.load %arg10[%c0_20, %c0_21] : memref<32x64xbf16, #tpu.memory_space<vmem>>, vector<32x64xbf16>
    %cst_22 = arith.constant dense<0.000000e+00> : vector<32x64xf32>
    %25 = tpu.matmul %23, %24, %cst_22 {dimension_numbers = #tpu.dot_dimension_numbers<[1], [0], [0], [1], [0, 0, 1, 1], [], []>} : vector<32x32xbf16>, vector<32x64xbf16>, vector<32x64xf32> -> vector<32x64xf32>
    %c0_23 = arith.constant 0 : index
    %c0_24 = arith.constant 0 : index
    %26 = vector.load %arg11[%c0_23, %c0_24] : memref<1x64xf32, #tpu.memory_space<vmem>>, vector<1x64xf32>
    %27 = vector.broadcast %26 : vector<1x64xf32> to vector<32x64xf32>
    %28 = arith.addf %27, %25 : vector<32x64xf32>
    %cst_25 = arith.constant 0.000000e+00 : f32
    %29 = vector.broadcast %cst_25 : f32 to vector<32x64xf32>
    %30 = arith.subf %29, %28 : vector<32x64xf32>
    %cst_26 = arith.constant 0.000000e+00 : f32
    %31 = vector.broadcast %cst_26 : f32 to vector<32x64xf32>
    %32 = arith.maximumf %30, %31 : vector<32x64xf32>
    %33 = vector.broadcast %cst_26 : f32 to vector<32x64xf32>
    %34 = arith.subf %30, %33 : vector<32x64xf32>
    %35 = arith.cmpf one, %34, %34 : vector<32x64xf32>
    %36 = vector.broadcast %cst_26 : f32 to vector<32x64xf32>
    %37 = arith.addf %30, %36 : vector<32x64xf32>
    %38 = math.absf %34 : vector<32x64xf32>
    %cst_27 = arith.constant 0.000000e+00 : f32
    %39 = vector.broadcast %cst_27 : f32 to vector<32x64xf32>
    %40 = arith.subf %39, %38 : vector<32x64xf32>
    %41 = math.exp %40 : vector<32x64xf32>
    %42 = math.log1p %41 : vector<32x64xf32>
    %43 = arith.addf %32, %42 : vector<32x64xf32>
    %44 = arith.select %35, %37, %43 : vector<32x64xi1>, vector<32x64xf32>
    %cst_28 = arith.constant 0.000000e+00 : f32
    %45 = vector.broadcast %cst_28 : f32 to vector<32x64xf32>
    %46 = arith.subf %45, %44 : vector<32x64xf32>
    %cst_29 = arith.constant 5.000000e-01 : f32
    %47 = vector.broadcast %cst_29 : f32 to vector<32x64xf32>
    %48 = arith.subf %46, %47 : vector<32x64xf32>
    %49 = math.exp %48 : vector<32x64xf32>
    %cst_30 = arith.constant 0.000000e+00 : f32
    %50 = vector.broadcast %cst_30 : f32 to vector<32x64xf32>
    %51 = arith.subf %50, %49 : vector<32x64xf32>
    %52 = math.exp %51 : vector<32x64xf32>
    %c0_31 = arith.constant 0 : index
    %c0_32 = arith.constant 0 : index
    %53 = vector.load %arg12[%c0_31, %c0_32] : memref<64x32xbf16, #tpu.memory_space<vmem>>, vector<64x32xbf16>
    %cst_33 = arith.constant dense<0.000000e+00> : vector<32x32xf32>
    %54 = tpu.matmul %4, %53, %cst_33 {dimension_numbers = #tpu.dot_dimension_numbers<[1], [0], [0], [1], [0, 0, 1, 1], [], []>} : vector<32x64xbf16>, vector<64x32xbf16>, vector<32x32xf32> -> vector<32x32xf32>
    %c0_34 = arith.constant 0 : index
    %c0_35 = arith.constant 0 : index
    %55 = vector.load %arg14[%c0_34, %c0_35] : memref<1x64xf32, #tpu.memory_space<vmem>>, vector<1x64xf32>
    %56 = arith.truncf %54 : vector<32x32xf32> to vector<32x32xbf16>
    %c0_36 = arith.constant 0 : index
    %c0_37 = arith.constant 0 : index
    %57 = vector.load %arg13[%c0_36, %c0_37] : memref<32x64xbf16, #tpu.memory_space<vmem>>, vector<32x64xbf16>
    %cst_38 = arith.constant dense<0.000000e+00> : vector<32x64xf32>
    %58 = tpu.matmul %56, %57, %cst_38 {dimension_numbers = #tpu.dot_dimension_numbers<[1], [0], [0], [1], [0, 0, 1, 1], [], []>} : vector<32x32xbf16>, vector<32x64xbf16>, vector<32x64xf32> -> vector<32x64xf32>
    %59 = vector.broadcast %55 : vector<1x64xf32> to vector<32x64xf32>
    %60 = arith.addf %59, %58 : vector<32x64xf32>
    %61 = arith.negf %60 : vector<32x64xf32>
    %62 = math.exp %61 : vector<32x64xf32>
    %cst_39 = arith.constant 1.000000e+00 : f32
    %63 = vector.broadcast %cst_39 : f32 to vector<32x64xf32>
    %64 = arith.addf %63, %62 : vector<32x64xf32>
    %65 = arith.divf %63, %64 : vector<32x64xf32>
    %c0_40 = arith.constant 0 : index
    %c0_41 = arith.constant 0 : index
    %66 = vector.load %arg15[%c0_40, %c0_41] : memref<64x32xbf16, #tpu.memory_space<vmem>>, vector<64x32xbf16>
    %cst_42 = arith.constant dense<0.000000e+00> : vector<32x32xf32>
    %67 = tpu.matmul %4, %66, %cst_42 {dimension_numbers = #tpu.dot_dimension_numbers<[1], [0], [0], [1], [0, 0, 1, 1], [], []>} : vector<32x64xbf16>, vector<64x32xbf16>, vector<32x32xf32> -> vector<32x32xf32>
    %68 = arith.negf %67 : vector<32x32xf32>
    %69 = math.exp %68 : vector<32x32xf32>
    %cst_43 = arith.constant 1.000000e+00 : f32
    %70 = vector.broadcast %cst_43 : f32 to vector<32x32xf32>
    %71 = arith.addf %70, %69 : vector<32x32xf32>
    %72 = arith.divf %70, %71 : vector<32x32xf32>
    %73 = arith.truncf %72 : vector<32x32xf32> to vector<32x32xbf16>
    %c0_44 = arith.constant 0 : index
    %c0_45 = arith.constant 0 : index
    %74 = vector.load %arg16[%c0_44, %c0_45] : memref<32x64xbf16, #tpu.memory_space<vmem>>, vector<32x64xbf16>
    %cst_46 = arith.constant dense<0.000000e+00> : vector<32x64xf32>
    %75 = tpu.matmul %73, %74, %cst_46 {dimension_numbers = #tpu.dot_dimension_numbers<[1], [0], [0], [1], [0, 0, 1, 1], [], []>} : vector<32x32xbf16>, vector<32x64xbf16>, vector<32x64xf32> -> vector<32x64xf32>
    %cst_47 = arith.constant 1.000000e+00 : f32
    %76 = vector.broadcast %cst_47 : f32 to vector<32x64xf32>
    %77 = arith.addf %76, %75 : vector<32x64xf32>
    %c0_48 = arith.constant 0 : index
    %c0_49 = arith.constant 0 : index
    %78 = vector.load %arg17[%c0_48, %c0_49] : memref<1x64xf32, #tpu.memory_space<vmem>>, vector<1x64xf32>
    %79 = vector.broadcast %78 : vector<1x64xf32> to vector<32x64xf32>
    %80 = arith.mulf %14, %79 : vector<32x64xf32>
    %81 = arith.mulf %80, %80 : vector<32x64xf32>
    %c0_50 = arith.constant 0 : index
    %c0_51 = arith.constant 0 : index
    %82 = vector.load %arg19[%c0_50, %c0_51] : memref<64x4xf32, #tpu.memory_space<vmem>>, vector<64x4xf32>
    %cst_52 = arith.constant dense<0.000000e+00> : vector<32x4xf32>
    %83 = tpu.matmul %81, %82, %cst_52 {dimension_numbers = #tpu.dot_dimension_numbers<[1], [0], [0], [1], [0, 0, 1, 1], [], []>} : vector<32x64xf32>, vector<64x4xf32>, vector<32x4xf32> -> vector<32x4xf32>
    %cst_53 = arith.constant 1.000000e-24 : f32
    %84 = vector.broadcast %cst_53 : f32 to vector<32x4xf32>
    %85 = arith.maximumf %83, %84 : vector<32x4xf32>
    %86 = math.rsqrt %85 : vector<32x4xf32>
    %c0_54 = arith.constant 0 : index
    %c0_55 = arith.constant 0 : index
    %87 = vector.load %arg20[%c0_54, %c0_55] : memref<4x64xf32, #tpu.memory_space<vmem>>, vector<4x64xf32>
    %cst_56 = arith.constant dense<0.000000e+00> : vector<32x64xf32>
    %88 = tpu.matmul %86, %87, %cst_56 {dimension_numbers = #tpu.dot_dimension_numbers<[1], [0], [0], [1], [0, 0, 1, 1], [], []>} : vector<32x4xf32>, vector<4x64xf32>, vector<32x64xf32> -> vector<32x64xf32>
    %89 = arith.mulf %80, %88 : vector<32x64xf32>
    %cst_57 = arith.constant 1.000000e+00 : f32
    %90 = vector.broadcast %cst_57 : f32 to vector<32x64xf32>
    %91 = arith.subf %65, %90 : vector<32x64xf32>
    %c0_58 = arith.constant 0 : index
    %c0_59 = arith.constant 0 : index
    %92 = vector.load %arg18[%c0_58, %c0_59] : memref<1x64xf32, #tpu.memory_space<vmem>>, vector<1x64xf32>
    %93 = vector.broadcast %92 : vector<1x64xf32> to vector<32x64xf32>
    %94 = arith.mulf %91, %93 : vector<32x64xf32>
    %cst_60 = arith.constant 1.000000e+00 : f32
    %95 = vector.broadcast %cst_60 : f32 to vector<32x64xf32>
    %96 = arith.addf %95, %94 : vector<32x64xf32>
    %97 = arith.mulf %14, %96 : vector<32x64xf32>
    %98 = arith.truncf %9 : vector<32x64xf32> to vector<32x64xbf16>
    %c0_61 = arith.constant 0 : index
    %c0_62 = arith.constant 0 : index
    %99 = vector.load %arg21[%c0_61, %c0_62] : memref<32x64xbf16, #tpu.memory_space<vmem>>, vector<32x64xbf16>
    tpu.vector_store %arg21[%c0_61, %c0_62], %98 {strides = array<i32>} : memref<32x64xbf16, #tpu.memory_space<vmem>>, vector<32x64xbf16>,
    %c0_63 = arith.constant 0 : index
    %c0_64 = arith.constant 0 : index
    %100 = vector.load %arg22[%c0_63, %c0_64] : memref<32x64xf32, #tpu.memory_space<vmem>>, vector<32x64xf32>
    tpu.vector_store %arg22[%c0_63, %c0_64], %52 {strides = array<i32>} : memref<32x64xf32, #tpu.memory_space<vmem>>, vector<32x64xf32>,
    %101 = arith.truncf %97 : vector<32x64xf32> to vector<32x64xbf16>
    %c0_65 = arith.constant 0 : index
    %c0_66 = arith.constant 0 : index
    %102 = vector.load %arg23[%c0_65, %c0_66] : memref<32x64xbf16, #tpu.memory_space<vmem>>, vector<32x64xbf16>
    tpu.vector_store %arg23[%c0_65, %c0_66], %101 {strides = array<i32>} : memref<32x64xbf16, #tpu.memory_space<vmem>>, vector<32x64xbf16>,
    %c0_67 = arith.constant 0 : index
    %c0_68 = arith.constant 0 : index
    %103 = vector.load %arg24[%c0_67, %c0_68] : memref<32x64xf32, #tpu.memory_space<vmem>>, vector<32x64xf32>
    tpu.vector_store %arg24[%c0_67, %c0_68], %19 {strides = array<i32>} : memref<32x64xf32, #tpu.memory_space<vmem>>, vector<32x64xf32>,
    %cst_69 = arith.constant 0.000000e+00 : f32
    %104 = vector.broadcast %cst_69 : f32 to vector<32x64xf32>
    %105 = arith.subf %104, %89 : vector<32x64xf32>
    %106 = arith.truncf %105 : vector<32x64xf32> to vector<32x64xbf16>
    %c0_70 = arith.constant 0 : index
    %c0_71 = arith.constant 0 : index
    %107 = vector.load %arg25[%c0_70, %c0_71] : memref<32x64xbf16, #tpu.memory_space<vmem>>, vector<32x64xbf16>
    tpu.vector_store %arg25[%c0_70, %c0_71], %106 {strides = array<i32>} : memref<32x64xbf16, #tpu.memory_space<vmem>>, vector<32x64xbf16>,
    %108 = arith.mulf %89, %65 : vector<32x64xf32>
    %109 = arith.truncf %108 : vector<32x64xf32> to vector<32x64xbf16>
    %c0_72 = arith.constant 0 : index
    %c0_73 = arith.constant 0 : index
    %110 = vector.load %arg26[%c0_72, %c0_73] : memref<32x64xbf16, #tpu.memory_space<vmem>>, vector<32x64xbf16>
    tpu.vector_store %arg26[%c0_72, %c0_73], %109 {strides = array<i32>} : memref<32x64xbf16, #tpu.memory_space<vmem>>, vector<32x64xbf16>,
    %111 = arith.truncf %77 : vector<32x64xf32> to vector<32x64xbf16>
    %c0_74 = arith.constant 0 : index
    %c0_75 = arith.constant 0 : index
    %112 = vector.load %arg27[%c0_74, %c0_75] : memref<32x64xbf16, #tpu.memory_space<vmem>>, vector<32x64xbf16>
    tpu.vector_store %arg27[%c0_74, %c0_75], %111 {strides = array<i32>} : memref<32x64xbf16, #tpu.memory_space<vmem>>, vector<32x64xbf16>,
    return
  }
  func.func @transform_0(%arg0: i32) -> (i32, i32) {
    %c0_i32 = arith.constant 0 : i32
    %c0_i32_0 = arith.constant 0 : i32
    return %arg0, %c0_i32 : i32, i32
  }
  func.func @transform_1(%arg0: i32) -> (i32, i32) {
    %c0_i32 = arith.constant 0 : i32
    %c0_i32_0 = arith.constant 0 : i32
    return %arg0, %c0_i32 : i32, i32
  }
  func.func @transform_2(%arg0: i32) -> (i32, i32) {
    %c0_i32 = arith.constant 0 : i32
    %c0_i32_0 = arith.constant 0 : i32
    %c0_i32_1 = arith.constant 0 : i32
    return %c0_i32, %c0_i32_0 : i32, i32
  }
  func.func @transform_3(%arg0: i32) -> (i32, i32) {
    %c0_i32 = arith.constant 0 : i32
    %c0_i32_0 = arith.constant 0 : i32
    %c0_i32_1 = arith.constant 0 : i32
    return %c0_i32, %c0_i32_0 : i32, i32
  }
  func.func @transform_4(%arg0: i32) -> (i32, i32) {
    %c0_i32 = arith.constant 0 : i32
    %c0_i32_0 = arith.constant 0 : i32
    %c0_i32_1 = arith.constant 0 : i32
    return %c0_i32, %c0_i32_0 : i32, i32
  }
  func.func @transform_5(%arg0: i32) -> (i32, i32) {
    %c0_i32 = arith.constant 0 : i32
    %c0_i32_0 = arith.constant 0 : i32
    %c0_i32_1 = arith.constant 0 : i32
    return %c0_i32, %c0_i32_0 : i32, i32
  }
  func.func @transform_6(%arg0: i32) -> (i32, i32) {
    %c0_i32 = arith.constant 0 : i32
    %c0_i32_0 = arith.constant 0 : i32
    %c0_i32_1 = arith.constant 0 : i32
    return %c0_i32, %c0_i32_0 : i32, i32
  }
  func.func @transform_7(%arg0: i32) -> (i32, i32) {
    %c0_i32 = arith.constant 0 : i32
    %c0_i32_0 = arith.constant 0 : i32
    %c0_i32_1 = arith.constant 0 : i32
    return %c0_i32, %c0_i32_0 : i32, i32
  }
  func.func @transform_8(%arg0: i32) -> (i32, i32) {
    %c0_i32 = arith.constant 0 : i32
    %c0_i32_0 = arith.constant 0 : i32
    %c0_i32_1 = arith.constant 0 : i32
    return %c0_i32, %c0_i32_0 : i32, i32
  }
  func.func @transform_9(%arg0: i32) -> (i32, i32) {
    %c0_i32 = arith.constant 0 : i32
    %c0_i32_0 = arith.constant 0 : i32
    %c0_i32_1 = arith.constant 0 : i32
    return %c0_i32, %c0_i32_0 : i32, i32
  }
  func.func @transform_10(%arg0: i32) -> (i32, i32) {
    %c0_i32 = arith.constant 0 : i32
    %c0_i32_0 = arith.constant 0 : i32
    %c0_i32_1 = arith.constant 0 : i32
    return %c0_i32, %c0_i32_0 : i32, i32
  }
  func.func @transform_11(%arg0: i32) -> (i32, i32) {
    %c0_i32 = arith.constant 0 : i32
    %c0_i32_0 = arith.constant 0 : i32
    %c0_i32_1 = arith.constant 0 : i32
    return %c0_i32, %c0_i32_0 : i32, i32
  }
  func.func @transform_12(%arg0: i32) -> (i32, i32) {
    %c0_i32 = arith.constant 0 : i32
    %c0_i32_0 = arith.constant 0 : i32
    %c0_i32_1 = arith.constant 0 : i32
    return %c0_i32, %c0_i32_0 : i32, i32
  }
  func.func @transform_13(%arg0: i32) -> (i32, i32) {
    %c0_i32 = arith.constant 0 : i32
    %c0_i32_0 = arith.constant 0 : i32
    %c0_i32_1 = arith.constant 0 : i32
    return %c0_i32, %c0_i32_0 : i32, i32
  }
  func.func @transform_14(%arg0: i32) -> (i32, i32) {
    %c0_i32 = arith.constant 0 : i32
    %c0_i32_0 = arith.constant 0 : i32
    %c0_i32_1 = arith.constant 0 : i32
    return %c0_i32, %c0_i32_0 : i32, i32
  }
  func.func @transform_15(%arg0: i32) -> (i32, i32) {
    %c0_i32 = arith.constant 0 : i32
    %c0_i32_0 = arith.constant 0 : i32
    %c0_i32_1 = arith.constant 0 : i32
    return %c0_i32, %c0_i32_0 : i32, i32
  }
  func.func @transform_16(%arg0: i32) -> (i32, i32) {
    %c0_i32 = arith.constant 0 : i32
    %c0_i32_0 = arith.constant 0 : i32
    %c0_i32_1 = arith.constant 0 : i32
    return %c0_i32, %c0_i32_0 : i32, i32
  }
  func.func @transform_17(%arg0: i32) -> (i32, i32) {
    %c0_i32 = arith.constant 0 : i32
    %c0_i32_0 = arith.constant 0 : i32
    %c0_i32_1 = arith.constant 0 : i32
    return %c0_i32, %c0_i32_0 : i32, i32
  }
  func.func @transform_18(%arg0: i32) -> (i32, i32) {
    %c0_i32 = arith.constant 0 : i32
    %c0_i32_0 = arith.constant 0 : i32
    %c0_i32_1 = arith.constant 0 : i32
    return %c0_i32, %c0_i32_0 : i32, i32
  }
  func.func @transform_19(%arg0: i32) -> (i32, i32) {
    %c0_i32 = arith.constant 0 : i32
    %c0_i32_0 = arith.constant 0 : i32
    %c0_i32_1 = arith.constant 0 : i32
    return %c0_i32, %c0_i32_0 : i32, i32
  }
  func.func @transform_20(%arg0: i32) -> (i32, i32) {
    %c0_i32 = arith.constant 0 : i32
    %c0_i32_0 = arith.constant 0 : i32
    return %arg0, %c0_i32 : i32, i32
  }
  func.func @transform_21(%arg0: i32) -> (i32, i32) {
    %c0_i32 = arith.constant 0 : i32
    %c0_i32_0 = arith.constant 0 : i32
    return %arg0, %c0_i32 : i32, i32
  }
  func.func @transform_22(%arg0: i32) -> (i32, i32) {
    %c0_i32 = arith.constant 0 : i32
    %c0_i32_0 = arith.constant 0 : i32
    return %arg0, %c0_i32 : i32, i32
  }
  func.func @transform_23(%arg0: i32) -> (i32, i32) {
    %c0_i32 = arith.constant 0 : i32
    %c0_i32_0 = arith.constant 0 : i32
    return %arg0, %c0_i32 : i32, i32
  }
  func.func @transform_24(%arg0: i32) -> (i32, i32) {
    %c0_i32 = arith.constant 0 : i32
    %c0_i32_0 = arith.constant 0 : i32
    return %arg0, %c0_i32 : i32, i32
  }
  func.func @transform_25(%arg0: i32) -> (i32, i32) {
    %c0_i32 = arith.constant 0 : i32
    %c0_i32_0 = arith.constant 0 : i32
    return %arg0, %c0_i32 : i32, i32
  }
  func.func @transform_26(%arg0: i32) -> (i32, i32) {
    %c0_i32 = arith.constant 0 : i32
    %c0_i32_0 = arith.constant 0 : i32
    return %arg0, %c0_i32 : i32, i32
  }
}

module attributes {stable_mosaic.version = 11 : i64} {
  func.func @_wkv_kernel(%arg0: i32, %arg1: i32, %arg2: memref<4x16xf32, #tpu.memory_space<vmem>>, %arg3: memref<1x16x4x16xf32, #tpu.memory_space<vmem>>, %arg4: memref<1x16x4x16xbf16, #tpu.memory_space<vmem>>, %arg5: memref<1x16x4x16xbf16, #tpu.memory_space<vmem>>, %arg6: memref<1x16x4x16xf32, #tpu.memory_space<vmem>>, %arg7: memref<1x16x4x16xbf16, #tpu.memory_space<vmem>>, %arg8: memref<1x16x4x16xbf16, #tpu.memory_space<vmem>>, %arg9: memref<1x16x4x16xbf16, #tpu.memory_space<vmem>>, %arg10: memref<1x16x4x16xbf16, #tpu.memory_space<vmem>>, %arg11: memref<4x16x16xf32, #tpu.memory_space<vmem>>, %arg12: memref<16x4x16xf32, #tpu.memory_space<vmem>>) attributes {dimension_semantics = [#tpu.dimension_semantics<parallel>, #tpu.dimension_semantics<arbitrary>], iteration_bounds = array<i64: 2, 4>, scalar_prefetch = 0 : i64, scratch_operands = 2 : i64, tpu.core_type = #tpu.core_type<tc>, window_params = [{pipeline_mode = #tpu.pipeline_mode<synchronous>, transform_indices = @transform_0, window_bounds = array<i64: 4, 16>}, {transform_indices = @transform_1, window_bounds = array<i64: 1, 16, 4, 16>}, {transform_indices = @transform_2, window_bounds = array<i64: 1, 16, 4, 16>}, {transform_indices = @transform_3, window_bounds = array<i64: 1, 16, 4, 16>}, {transform_indices = @transform_4, window_bounds = array<i64: 1, 16, 4, 16>}, {transform_indices = @transform_5, window_bounds = array<i64: 1, 16, 4, 16>}, {transform_indices = @transform_6, window_bounds = array<i64: 1, 16, 4, 16>}, {transform_indices = @transform_7, window_bounds = array<i64: 1, 16, 4, 16>}, {transform_indices = @transform_8, window_bounds = array<i64: 1, 16, 4, 16>}]} {
    %c0_i32 = arith.constant 0 : i32
    %0 = arith.cmpi eq, %arg1, %c0_i32 : i32
    %1 = arith.extui %0 : i1 to i32
    %c0_i32_0 = arith.constant 0 : i32
    %2 = arith.cmpi ne, %1, %c0_i32_0 : i32
    scf.if %2 {
      %cst_33 = arith.constant 0.000000e+00 : f32
      %34 = vector.broadcast %cst_33 : f32 to vector<4x16x16xf32>
      %c0_34 = arith.constant 0 : index
      %c0_35 = arith.constant 0 : index
      %c0_36 = arith.constant 0 : index
      %35 = vector.load %arg11[%c0_34, %c0_35, %c0_36] : memref<4x16x16xf32, #tpu.memory_space<vmem>>, vector<4x16x16xf32>
      tpu.vector_store %arg11[%c0_34, %c0_35, %c0_36], %34 {strides = array<i32>} : memref<4x16x16xf32, #tpu.memory_space<vmem>>, vector<4x16x16xf32>,
    } else {
    }
    %c0 = arith.constant 0 : index
    %c0_1 = arith.constant 0 : index
    %c0_2 = arith.constant 0 : index
    %3 = vector.load %arg11[%c0, %c0_1, %c0_2] : memref<4x16x16xf32, #tpu.memory_space<vmem>>, vector<4x16x16xf32>
    %c0_i32_3 = arith.constant 0 : i32
    %c16_i32 = arith.constant 16 : i32
    %4 = arith.addi %c0_i32_3, %c16_i32 : i32
    %c1_i32 = arith.constant 1 : i32
    %5 = scf.for %arg13 = %c0_i32_3 to %4 step %c1_i32 iter_args(%arg14 = %3) -> (vector<4x16x16xf32>)  : i32 {
      %c0_33 = arith.constant 0 : index
      %34 = arith.index_cast %arg13 : i32 to index
      %c0_34 = arith.constant 0 : index
      %c0_35 = arith.constant 0 : index
      %35 = vector.load %arg3[%c0_33, %34, %c0_34, %c0_35] : memref<1x16x4x16xf32, #tpu.memory_space<vmem>>, vector<1x1x4x16xf32>
      %36 = vector.shape_cast %35 : vector<1x1x4x16xf32> to vector<4x16xf32>
      %c0_36 = arith.constant 0 : index
      %37 = arith.index_cast %arg13 : i32 to index
      %c0_37 = arith.constant 0 : index
      %c0_38 = arith.constant 0 : index
      %38 = vector.load %arg4[%c0_36, %37, %c0_37, %c0_38] : memref<1x16x4x16xbf16, #tpu.memory_space<vmem>>, vector<1x1x4x16xbf16>
      %39 = vector.shape_cast %38 : vector<1x1x4x16xbf16> to vector<4x16xbf16>
      %40 = arith.extf %39 : vector<4x16xbf16> to vector<4x16xf32>
      %c0_39 = arith.constant 0 : index
      %41 = arith.index_cast %arg13 : i32 to index
      %c0_40 = arith.constant 0 : index
      %c0_41 = arith.constant 0 : index
      %42 = vector.load %arg5[%c0_39, %41, %c0_40, %c0_41] : memref<1x16x4x16xbf16, #tpu.memory_space<vmem>>, vector<1x1x4x16xbf16>
      %43 = vector.shape_cast %42 : vector<1x1x4x16xbf16> to vector<4x16xbf16>
      %44 = arith.extf %43 : vector<4x16xbf16> to vector<4x16xf32>
      %c0_42 = arith.constant 0 : index
      %45 = arith.index_cast %arg13 : i32 to index
      %c0_43 = arith.constant 0 : index
      %c0_44 = arith.constant 0 : index
      %46 = vector.load %arg6[%c0_42, %45, %c0_43, %c0_44] : memref<1x16x4x16xf32, #tpu.memory_space<vmem>>, vector<1x1x4x16xf32>
      %47 = vector.shape_cast %46 : vector<1x1x4x16xf32> to vector<4x16xf32>
      %c0_45 = arith.constant 0 : index
      %48 = arith.index_cast %arg13 : i32 to index
      %c0_46 = arith.constant 0 : index
      %c0_47 = arith.constant 0 : index
      %49 = vector.load %arg7[%c0_45, %48, %c0_46, %c0_47] : memref<1x16x4x16xbf16, #tpu.memory_space<vmem>>, vector<1x1x4x16xbf16>
      %50 = vector.shape_cast %49 : vector<1x1x4x16xbf16> to vector<4x16xbf16>
      %51 = arith.extf %50 : vector<4x16xbf16> to vector<4x16xf32>
      %c0_48 = arith.constant 0 : index
      %52 = arith.index_cast %arg13 : i32 to index
      %c0_49 = arith.constant 0 : index
      %c0_50 = arith.constant 0 : index
      %53 = vector.load %arg8[%c0_48, %52, %c0_49, %c0_50] : memref<1x16x4x16xbf16, #tpu.memory_space<vmem>>, vector<1x1x4x16xbf16>
      %54 = vector.shape_cast %53 : vector<1x1x4x16xbf16> to vector<4x16xbf16>
      %55 = arith.extf %54 : vector<4x16xbf16> to vector<4x16xf32>
      %56 = vector.shape_cast %51 : vector<4x16xf32> to vector<4x1x16xf32>
      %57 = vector.broadcast %56 : vector<4x1x16xf32> to vector<4x16x16xf32>
      %58 = arith.mulf %arg14, %57 : vector<4x16x16xf32>
      %cst_51 = arith.constant dense<0.000000e+00> : vector<4x16xf32>
      %59 = vector.multi_reduction <add>, %58, %cst_51 [2] : vector<4x16x16xf32> to vector<4x16xf32>
      %60 = vector.shape_cast %36 : vector<4x16xf32> to vector<4x1x16xf32>
      %61 = vector.broadcast %60 : vector<4x1x16xf32> to vector<4x16x16xf32>
      %62 = arith.mulf %arg14, %61 : vector<4x16x16xf32>
      %63 = vector.shape_cast %47 : vector<4x16xf32> to vector<4x16x1xf32>
      %64 = vector.shape_cast %44 : vector<4x16xf32> to vector<4x1x16xf32>
      %65 = vector.broadcast %63 : vector<4x16x1xf32> to vector<4x16x16xf32>
      %66 = vector.broadcast %64 : vector<4x1x16xf32> to vector<4x16x16xf32>
      %67 = arith.mulf %65, %66 : vector<4x16x16xf32>
      %68 = arith.addf %62, %67 : vector<4x16x16xf32>
      %69 = vector.shape_cast %59 : vector<4x16xf32> to vector<4x16x1xf32>
      %70 = vector.shape_cast %55 : vector<4x16xf32> to vector<4x1x16xf32>
      %71 = vector.broadcast %69 : vector<4x16x1xf32> to vector<4x16x16xf32>
      %72 = vector.broadcast %70 : vector<4x1x16xf32> to vector<4x16x16xf32>
      %73 = arith.mulf %71, %72 : vector<4x16x16xf32>
      %74 = arith.addf %68, %73 : vector<4x16x16xf32>
      %75 = vector.shape_cast %40 : vector<4x16xf32> to vector<4x1x16xf32>
      %76 = vector.broadcast %75 : vector<4x1x16xf32> to vector<4x16x16xf32>
      %77 = arith.mulf %74, %76 : vector<4x16x16xf32>
      %cst_52 = arith.constant dense<0.000000e+00> : vector<4x16xf32>
      %78 = vector.multi_reduction <add>, %77, %cst_52 [2] : vector<4x16x16xf32> to vector<4x16xf32>
      %79 = arith.index_cast %arg13 : i32 to index
      %c0_53 = arith.constant 0 : index
      %c0_54 = arith.constant 0 : index
      %80 = vector.load %arg12[%79, %c0_53, %c0_54] : memref<16x4x16xf32, #tpu.memory_space<vmem>>, vector<1x4x16xf32>
      %81 = vector.shape_cast %80 : vector<1x4x16xf32> to vector<4x16xf32>
      %82 = vector.shape_cast %78 : vector<4x16xf32> to vector<1x4x16xf32>
      tpu.vector_store %arg12[%79, %c0_53, %c0_54], %82 {strides = array<i32>} : memref<16x4x16xf32, #tpu.memory_space<vmem>>, vector<1x4x16xf32>,
      scf.yield %74 : vector<4x16x16xf32>
    }
    %c16_i32_4 = arith.constant 16 : i32
    %c0_5 = arith.constant 0 : index
    %c0_6 = arith.constant 0 : index
    %c0_7 = arith.constant 0 : index
    %6 = vector.load %arg11[%c0_5, %c0_6, %c0_7] : memref<4x16x16xf32, #tpu.memory_space<vmem>>, vector<4x16x16xf32>
    tpu.vector_store %arg11[%c0_5, %c0_6, %c0_7], %5 {strides = array<i32>} : memref<4x16x16xf32, #tpu.memory_space<vmem>>, vector<4x16x16xf32>,
    %c0_8 = arith.constant 0 : index
    %c0_9 = arith.constant 0 : index
    %c0_10 = arith.constant 0 : index
    %c0_11 = arith.constant 0 : index
    %7 = vector.load %arg4[%c0_8, %c0_9, %c0_10, %c0_11] : memref<1x16x4x16xbf16, #tpu.memory_space<vmem>>, vector<1x16x4x16xbf16>
    %8 = vector.shape_cast %7 : vector<1x16x4x16xbf16> to vector<16x4x16xbf16>
    %9 = arith.extf %8 : vector<16x4x16xbf16> to vector<16x4x16xf32>
    %c0_12 = arith.constant 0 : index
    %c0_13 = arith.constant 0 : index
    %c0_14 = arith.constant 0 : index
    %c0_15 = arith.constant 0 : index
    %10 = vector.load %arg5[%c0_12, %c0_13, %c0_14, %c0_15] : memref<1x16x4x16xbf16, #tpu.memory_space<vmem>>, vector<1x16x4x16xbf16>
    %11 = vector.shape_cast %10 : vector<1x16x4x16xbf16> to vector<16x4x16xbf16>
    %12 = arith.extf %11 : vector<16x4x16xbf16> to vector<16x4x16xf32>
    %c0_16 = arith.constant 0 : index
    %c0_17 = arith.constant 0 : index
    %c0_18 = arith.constant 0 : index
    %c0_19 = arith.constant 0 : index
    %13 = vector.load %arg6[%c0_16, %c0_17, %c0_18, %c0_19] : memref<1x16x4x16xf32, #tpu.memory_space<vmem>>, vector<1x16x4x16xf32>
    %14 = vector.shape_cast %13 : vector<1x16x4x16xf32> to vector<16x4x16xf32>
    %15 = arith.mulf %9, %12 : vector<16x4x16xf32>
    %c0_20 = arith.constant 0 : index
    %c0_21 = arith.constant 0 : index
    %16 = vector.load %arg2[%c0_20, %c0_21] : memref<4x16xf32, #tpu.memory_space<vmem>>, vector<4x16xf32>
    %17 = vector.shape_cast %16 : vector<4x16xf32> to vector<1x4x16xf32>
    %18 = vector.broadcast %17 : vector<1x4x16xf32> to vector<16x4x16xf32>
    %19 = arith.mulf %15, %18 : vector<16x4x16xf32>
    %cst = arith.constant dense<0.000000e+00> : vector<16x4xf32>
    %20 = vector.multi_reduction <add>, %19, %cst [2] : vector<16x4x16xf32> to vector<16x4xf32>
    %21 = vector.shape_cast %20 : vector<16x4xf32> to vector<16x4x1xf32>
    %22 = vector.broadcast %21 : vector<16x4x1xf32> to vector<16x4x16xf32>
    %23 = arith.mulf %22, %14 : vector<16x4x16xf32>
    %c0_22 = arith.constant 0 : index
    %c0_23 = arith.constant 0 : index
    %c0_24 = arith.constant 0 : index
    %24 = vector.load %arg12[%c0_22, %c0_23, %c0_24] : memref<16x4x16xf32, #tpu.memory_space<vmem>>, vector<16x4x16xf32>
    %25 = arith.addf %24, %23 : vector<16x4x16xf32>
    %c0_25 = arith.constant 0 : index
    %c0_26 = arith.constant 0 : index
    %c0_27 = arith.constant 0 : index
    %c0_28 = arith.constant 0 : index
    %26 = vector.load %arg9[%c0_25, %c0_26, %c0_27, %c0_28] : memref<1x16x4x16xbf16, #tpu.memory_space<vmem>>, vector<1x16x4x16xbf16>
    %27 = vector.shape_cast %26 : vector<1x16x4x16xbf16> to vector<16x4x16xbf16>
    %28 = arith.extf %27 : vector<16x4x16xbf16> to vector<16x4x16xf32>
    %29 = arith.mulf %25, %28 : vector<16x4x16xf32>
    %30 = arith.truncf %29 : vector<16x4x16xf32> to vector<16x4x16xbf16>
    %c0_29 = arith.constant 0 : index
    %c0_30 = arith.constant 0 : index
    %c0_31 = arith.constant 0 : index
    %c0_32 = arith.constant 0 : index
    %31 = vector.load %arg10[%c0_29, %c0_30, %c0_31, %c0_32] : memref<1x16x4x16xbf16, #tpu.memory_space<vmem>>, vector<1x16x4x16xbf16>
    %32 = vector.shape_cast %31 : vector<1x16x4x16xbf16> to vector<16x4x16xbf16>
    %33 = vector.shape_cast %30 : vector<16x4x16xbf16> to vector<1x16x4x16xbf16>
    tpu.vector_store %arg10[%c0_29, %c0_30, %c0_31, %c0_32], %33 {strides = array<i32>} : memref<1x16x4x16xbf16, #tpu.memory_space<vmem>>, vector<1x16x4x16xbf16>,
    return
  }
  func.func @transform_0(%arg0: i32, %arg1: i32) -> (i32, i32) {
    %c0_i32 = arith.constant 0 : i32
    %c0_i32_0 = arith.constant 0 : i32
    %c0_i32_1 = arith.constant 0 : i32
    return %c0_i32, %c0_i32_0 : i32, i32
  }
  func.func @transform_1(%arg0: i32, %arg1: i32) -> (i32, i32, i32, i32) {
    %c0_i32 = arith.constant 0 : i32
    %c0_i32_0 = arith.constant 0 : i32
    %c0_i32_1 = arith.constant 0 : i32
    return %arg0, %arg1, %c0_i32, %c0_i32_0 : i32, i32, i32, i32
  }
  func.func @transform_2(%arg0: i32, %arg1: i32) -> (i32, i32, i32, i32) {
    %c0_i32 = arith.constant 0 : i32
    %c0_i32_0 = arith.constant 0 : i32
    %c0_i32_1 = arith.constant 0 : i32
    return %arg0, %arg1, %c0_i32, %c0_i32_0 : i32, i32, i32, i32
  }
  func.func @transform_3(%arg0: i32, %arg1: i32) -> (i32, i32, i32, i32) {
    %c0_i32 = arith.constant 0 : i32
    %c0_i32_0 = arith.constant 0 : i32
    %c0_i32_1 = arith.constant 0 : i32
    return %arg0, %arg1, %c0_i32, %c0_i32_0 : i32, i32, i32, i32
  }
  func.func @transform_4(%arg0: i32, %arg1: i32) -> (i32, i32, i32, i32) {
    %c0_i32 = arith.constant 0 : i32
    %c0_i32_0 = arith.constant 0 : i32
    %c0_i32_1 = arith.constant 0 : i32
    return %arg0, %arg1, %c0_i32, %c0_i32_0 : i32, i32, i32, i32
  }
  func.func @transform_5(%arg0: i32, %arg1: i32) -> (i32, i32, i32, i32) {
    %c0_i32 = arith.constant 0 : i32
    %c0_i32_0 = arith.constant 0 : i32
    %c0_i32_1 = arith.constant 0 : i32
    return %arg0, %arg1, %c0_i32, %c0_i32_0 : i32, i32, i32, i32
  }
  func.func @transform_6(%arg0: i32, %arg1: i32) -> (i32, i32, i32, i32) {
    %c0_i32 = arith.constant 0 : i32
    %c0_i32_0 = arith.constant 0 : i32
    %c0_i32_1 = arith.constant 0 : i32
    return %arg0, %arg1, %c0_i32, %c0_i32_0 : i32, i32, i32, i32
  }
  func.func @transform_7(%arg0: i32, %arg1: i32) -> (i32, i32, i32, i32) {
    %c0_i32 = arith.constant 0 : i32
    %c0_i32_0 = arith.constant 0 : i32
    %c0_i32_1 = arith.constant 0 : i32
    return %arg0, %arg1, %c0_i32, %c0_i32_0 : i32, i32, i32, i32
  }
  func.func @transform_8(%arg0: i32, %arg1: i32) -> (i32, i32, i32, i32) {
    %c0_i32 = arith.constant 0 : i32
    %c0_i32_0 = arith.constant 0 : i32
    %c0_i32_1 = arith.constant 0 : i32
    return %arg0, %arg1, %c0_i32, %c0_i32_0 : i32, i32, i32, i32
  }
}

module attributes {stable_mosaic.version = 11 : i64} {
  func.func @_final_kernel(%arg0: i32, %arg1: i32, %arg2: memref<32x64xbf16, #tpu.memory_space<vmem>>, %arg3: memref<64x64xbf16, #tpu.memory_space<vmem>>, %arg4: memref<1x64xf32, #tpu.memory_space<vmem>>, %arg5: memref<32x64xf32, #tpu.memory_space<vmem>>) attributes {dimension_semantics = [#tpu.dimension_semantics<parallel>, #tpu.dimension_semantics<parallel>], iteration_bounds = array<i64: 4, 1>, scalar_prefetch = 0 : i64, scratch_operands = 0 : i64, tpu.core_type = #tpu.core_type<tc>, window_params = [{transform_indices = @transform_0, window_bounds = array<i64: 32, 64>}, {transform_indices = @transform_1, window_bounds = array<i64: 64, 64>}, {transform_indices = @transform_2, window_bounds = array<i64: 1, 64>}, {transform_indices = @transform_3, window_bounds = array<i64: 32, 64>}]} {
    %c0 = arith.constant 0 : index
    %c0_0 = arith.constant 0 : index
    %0 = vector.load %arg2[%c0, %c0_0] : memref<32x64xbf16, #tpu.memory_space<vmem>>, vector<32x64xbf16>
    %c0_1 = arith.constant 0 : index
    %c0_2 = arith.constant 0 : index
    %1 = vector.load %arg3[%c0_1, %c0_2] : memref<64x64xbf16, #tpu.memory_space<vmem>>, vector<64x64xbf16>
    %cst = arith.constant dense<0.000000e+00> : vector<32x64xf32>
    %2 = tpu.matmul %0, %1, %cst {dimension_numbers = #tpu.dot_dimension_numbers<[1], [0], [0], [1], [0, 0, 1, 1], [], []>} : vector<32x64xbf16>, vector<64x64xbf16>, vector<32x64xf32> -> vector<32x64xf32>
    %c0_3 = arith.constant 0 : index
    %c0_4 = arith.constant 0 : index
    %3 = vector.load %arg4[%c0_3, %c0_4] : memref<1x64xf32, #tpu.memory_space<vmem>>, vector<1x64xf32>
    %4 = vector.broadcast %3 : vector<1x64xf32> to vector<32x64xf32>
    %5 = arith.addf %2, %4 : vector<32x64xf32>
    %c0_5 = arith.constant 0 : index
    %c0_6 = arith.constant 0 : index
    %6 = vector.load %arg5[%c0_5, %c0_6] : memref<32x64xf32, #tpu.memory_space<vmem>>, vector<32x64xf32>
    tpu.vector_store %arg5[%c0_5, %c0_6], %5 {strides = array<i32>} : memref<32x64xf32, #tpu.memory_space<vmem>>, vector<32x64xf32>,
    return
  }
  func.func @transform_0(%arg0: i32, %arg1: i32) -> (i32, i32) {
    %c0_i32 = arith.constant 0 : i32
    %c0_i32_0 = arith.constant 0 : i32
    return %arg0, %c0_i32 : i32, i32
  }
  func.func @transform_1(%arg0: i32, %arg1: i32) -> (i32, i32) {
    %c0_i32 = arith.constant 0 : i32
    %c0_i32_0 = arith.constant 0 : i32
    return %c0_i32, %arg1 : i32, i32
  }
  func.func @transform_2(%arg0: i32, %arg1: i32) -> (i32, i32) {
    %c0_i32 = arith.constant 0 : i32
    %c0_i32_0 = arith.constant 0 : i32
    return %c0_i32, %arg1 : i32, i32
  }
  func.func @transform_3(%arg0: i32, %arg1: i32) -> (i32, i32) {
    %c0_i32 = arith.constant 0 : i32
    return %arg0, %arg1 : i32, i32
  }
}

</mosaic_0001>

<llo_original>
// kernel: rwkv_tmix_forward.5
$region0: #{rwkv_tmix_forward.5}
  #allocation0 [shape = 'u32[]', space=smem, size = 0x4, offset = 0x4, fixed_abs, tag = 'smem constant byte address 0x4 - core index']
  #allocation1 [shape = 'u32[144,128]{1,0:T(1,128)}', space=vmem, size = 0x12000, scoped, tag = 'internal scratch']
  %s0 = inlined_call_operand.vmem [shape: bf16[128,64], index: 0, kind: input, shape index: {}]
  %s1 = inlined_call_operand.vmem [shape: bf16[64,64], index: 1, kind: input, shape index: {}]
  %s2 = inlined_call_operand.vmem [shape: f32[1,64], index: 2, kind: input, shape index: {}]
  %s3 = inlined_call_operand.hbm [shape: f32[128,64], index: 3, kind: output, shape index: {}]
  %s4 = sld [smem:[#allocation0]]
  $region45: #{rwkv_tmix_forward.5} parent=0
    _
  %s6 = ssub.s32 1, %s4
  %s7 = scalar_select 0, %s6, %s4
  $region1: #{rwkv_tmix_forward.5} parent=0
    #allocation2 [shape = 'u8[32768]{0}', space=vmem, size = 0x8000, scoped, tag = 'output window, operand 0']
    #allocation3 [shape = 's32[2]{0}', space=sflag, size = 0x8, scoped, tag = 'scoped memory for rwkv_tmix_forward.5']
    %8 = vsyncpa [#allocation3], 0
    %s9 = scalar_lea.sflag [#allocation3], 1
    %10 = vsyncpa %s9, 0
    loop: start=0, step=1, limit=6
    $region2: #{rwkv_tmix_forward.5} parent=1 // loop_pre_header
      _
    $region3: #{rwkv_tmix_forward.5} parent=1 // loop_header
      %s12 = sphi 0, %s16
      %p13 = scmp.ge.s32.totalorder %s12, 6
      %s19 = sphi 0, %s31
      %s20 = sphi 0, %s27
      %s21 = sphi 0, %s19
      %s22 = sphi 0, %s20
      %s23 = sphi 0, %s21
      %s24 = sphi 0, %s22
      %s34 = sphi 0, %s36
      %s37 = sphi 0, %s34
      %s38 = sphi 0, %s37
      %s54 = sphi 0, %s38
      %s60 = sphi 0, %s62
      %s63 = sphi 0, %s60
      %s64 = sphi 0, %s63
      %s80 = sphi 0, %s64
      %s86 = sphi 0, %s88
      %s89 = sphi 0, %s86
      %s90 = sphi 0, %s89
      %s106 = sphi 0, %s90
      %s114 = sphi 0, %s116
      %s117 = sphi 0, %s114
      %s118 = sphi 0, %s117
      %s134 = sphi 0, %s118
    $region4: #{rwkv_tmix_forward.5} parent=1 // loop_header_branch
      %15 = sbr.rel (%p13) target = $region8
    $region5: #{rwkv_tmix_forward.5} parent=1 // loop_body
      %s17 = ssub.s32 %s12, 1
      %s18 = ssub.s32 %s12, 2
      %s25 = sadd.s32 1, %s20
      %p26 = scmp.ge.s32.totalorder %s25, 1
      %s27 = scalar_select %p26, 0, %s25
      %s28 = sadd.s32 1, %s19
      %s29 = scalar_select %p26, %s28, %s19
      %p30 = scmp.ge.s32.totalorder %s29, 4
      %s31 = scalar_select %p30, 0, %s29
      %s32 = ssub.s32 %s19, %s31
      %p33 = scmp.eq.s32.totalorder %s32, 0
      %s35 = sadd.s32 %s34, 1
      %s36 = scalar_select %p33, %s34, %s35
      %p39 = pneg %p33
      %p40 = scmp.eq.s32.totalorder %s12, 3
      %p41 = por %p39, %p40
      %p42 = scmp.ne.s32.totalorder %s34, %s37
      %p43 = scmp.eq.s32.totalorder %s12, 0
      %p44 = por %p42, %p43
      %p45 = scmp.ne.s32.totalorder %s34, %s37
      %p46 = scmp.eq.s32.totalorder %s17, 3
      %p47 = por %p45, %p46
      %p48 = scmp.ne.s32.totalorder %s37, %s38
      %p49 = scmp.eq.s32.totalorder %s17, 0
      %p50 = por %p48, %p49
      %p51 = scmp.ne.s32.totalorder %s37, %s38
      %p52 = scmp.eq.s32.totalorder %s18, 3
      %p53 = por %p51, %p52
      %p55 = scmp.ne.s32.totalorder %s38, %s54
      %p56 = scmp.eq.s32.totalorder %s18, 0
      %p57 = por %p55, %p56
      %s58 = ssub.s32 %s20, %s27
      %p59 = scmp.eq.s32.totalorder %s58, 0
      %s61 = sadd.s32 %s60, 1
      %s62 = scalar_select %p59, %s60, %s61
      %p65 = pneg %p59
      %p66 = scmp.eq.s32.totalorder %s12, 3
      %p67 = por %p65, %p66
      %p68 = scmp.ne.s32.totalorder %s60, %s63
      %p69 = scmp.eq.s32.totalorder %s12, 0
      %p70 = por %p68, %p69
      %p71 = scmp.ne.s32.totalorder %s60, %s63
      %p72 = scmp.eq.s32.totalorder %s17, 3
      %p73 = por %p71, %p72
      %p74 = scmp.ne.s32.totalorder %s63, %s64
      %p75 = scmp.eq.s32.totalorder %s17, 0
      %p76 = por %p74, %p75
      %p77 = scmp.ne.s32.totalorder %s63, %s64
      %p78 = scmp.eq.s32.totalorder %s18, 3
      %p79 = por %p77, %p78
      %p81 = scmp.ne.s32.totalorder %s64, %s80
      %p82 = scmp.eq.s32.totalorder %s18, 0
      %p83 = por %p81, %p82
      %s84 = ssub.s32 %s20, %s27
      %p85 = scmp.eq.s32.totalorder %s84, 0
      %s87 = sadd.s32 %s86, 1
      %s88 = scalar_select %p85, %s86, %s87
      %p91 = pneg %p85
      %p92 = scmp.eq.s32.totalorder %s12, 3
      %p93 = por %p91, %p92
      %p94 = scmp.ne.s32.totalorder %s86, %s89
      %p95 = scmp.eq.s32.totalorder %s12, 0
      %p96 = por %p94, %p95
      %p97 = scmp.ne.s32.totalorder %s86, %s89
      %p98 = scmp.eq.s32.totalorder %s17, 3
      %p99 = por %p97, %p98
      %p100 = scmp.ne.s32.totalorder %s89, %s90
      %p101 = scmp.eq.s32.totalorder %s17, 0
      %p102 = por %p100, %p101
      %p103 = scmp.ne.s32.totalorder %s89, %s90
      %p104 = scmp.eq.s32.totalorder %s18, 3
      %p105 = por %p103, %p104
      %p107 = scmp.ne.s32.totalorder %s90, %s106
      %p108 = scmp.eq.s32.totalorder %s18, 0
      %p109 = por %p107, %p108
      %s110 = ssub.s32 %s19, %s31
      %s111 = ssub.s32 %s20, %s27
      %s112 = sor.u32 %s110, %s111
      %p113 = scmp.eq.s32.totalorder %s112, 0
      %s115 = sadd.s32 %s114, 1
      %s116 = scalar_select %p113, %s114, %s115
      %p119 = pneg %p113
      %p120 = scmp.eq.s32.totalorder %s12, 3
      %p121 = por %p119, %p120
      %p122 = scmp.ne.s32.totalorder %s114, %s117
      %p123 = scmp.eq.s32.totalorder %s12, 0
      %p124 = por %p122, %p123
      %p125 = scmp.ne.s32.totalorder %s114, %s117
      %p126 = scmp.eq.s32.totalorder %s17, 3
      %p127 = por %p125, %p126
      %p128 = scmp.ne.s32.totalorder %s117, %s118
      %p129 = scmp.eq.s32.totalorder %s17, 0
      %p130 = por %p128, %p129
      %p131 = scmp.ne.s32.totalorder %s117, %s118
      %p132 = scmp.eq.s32.totalorder %s18, 3
      %p133 = por %p131, %p132
      %p135 = scmp.ne.s32.totalorder %s118, %s134
      %p136 = scmp.eq.s32.totalorder %s18, 0
      %p137 = por %p135, %p136
      %p138 = scmp.le.s32.totalorder 1, %s12
      %p139 = scmp.lt.s32.totalorder %s12, 5
      %p140 = pnand %p138, %p139
      %p141 = pneg %p140
      // Predicated region
      $region9: #{rwkv_tmix_forward.5} parent=5 // pred_check
        _
      $region10: #{rwkv_tmix_forward.5} parent=5 // pred_check_branch
        %143 = sbr.rel (%p140) target = $region12
      $region11: #{rwkv_tmix_forward.5} parent=5 // pred_region
        %s144 = ssub.s32 %s12, 1
        // Predicated region
        $region13: #{rwkv_tmix_forward.5} parent=11 // pred_check
          %p145 = pneg %p76
        $region14: #{rwkv_tmix_forward.5} parent=11 // pred_check_branch
          %147 = sbr.rel (%p145) target = $region16
        $region15: #{rwkv_tmix_forward.5} parent=11 // pred_region
          %p148 = scmp.lt.s32.totalorder %s22, 0
          %s149 = scalar_select %p148, %s22, 0
          %s150 = smul.addr %s149, 4
          %s151 = scalar_lea.vmem %s1, %s150
        $region16: #{rwkv_tmix_forward.5} parent=11 // pred_fallthru
          _
        // Predicated region
        $region17: #{rwkv_tmix_forward.5} parent=11 // pred_check
          %p152 = pneg %p102
        $region18: #{rwkv_tmix_forward.5} parent=11 // pred_check_branch
          %154 = sbr.rel (%p152) target = $region20
        $region19: #{rwkv_tmix_forward.5} parent=11 // pred_region
          %p155 = scmp.lt.s32.totalorder %s22, 0
          %s156 = scalar_select %p155, %s22, 0
          %s157 = scalar_lea.vmem %s2, %s156
        $region20: #{rwkv_tmix_forward.5} parent=11 // pred_fallthru
          _
      $region12: #{rwkv_tmix_forward.5} parent=5 // pred_fallthru
        _
      %p158 = scmp.lt.s32.totalorder %s12, 4
      // Predicated region
      $region21: #{rwkv_tmix_forward.5} parent=5 // pred_check
        %p159 = pneg %p158
      $region22: #{rwkv_tmix_forward.5} parent=5 // pred_check_branch
        %161 = sbr.rel (%p159) target = $region24
      $region23: #{rwkv_tmix_forward.5} parent=5 // pred_region
        // Predicated region
        $region25: #{rwkv_tmix_forward.5} parent=23 // pred_check
          %p162 = pneg %p44
        $region26: #{rwkv_tmix_forward.5} parent=23 // pred_check_branch
          %164 = sbr.rel (%p162) target = $region28
        $region27: #{rwkv_tmix_forward.5} parent=23 // pred_region
          %s165 = smul.u32 4, %s19
          %p166 = scmp.lt.s32.totalorder %s165, 15
          %s167 = scalar_select %p166, %s165, 15
          %s168 = smul.addr %s167, 4
          %s169 = scalar_lea.vmem %s0, %s168
          %s170 = smul.u32 4, %s19
        $region28: #{rwkv_tmix_forward.5} parent=23 // pred_fallthru
          _
      $region24: #{rwkv_tmix_forward.5} parent=5 // pred_fallthru
        _
      %p171 = scmp.le.s32.totalorder 1, %s12
      %p172 = scmp.lt.s32.totalorder %s12, 5
      %p173 = pnand %p171, %p172
      %p174 = pneg %p173
      // Predicated region
      $region29: #{rwkv_tmix_forward.5} parent=5 // pred_check
        _
      $region30: #{rwkv_tmix_forward.5} parent=5 // pred_check_branch
        %176 = sbr.rel (%p173) target = $region32
      $region31: #{rwkv_tmix_forward.5} parent=5 // pred_region
        %s177 = ssub.s32 %s12, 1
        %s178 = smul.u32 4, %s21
        %p179 = scmp.lt.s32.totalorder %s178, 15
        %s180 = scalar_select %p179, %s178, 15
        %s181 = smul.addr %s180, 4
        %s182 = scalar_lea.vmem %s0, %s181
        %p183 = pneg %p50
        %p184 = pneg %p47
        %p185 = scmp.lt.s32.totalorder %s22, 0
        %s186 = scalar_select %p185, %s22, 0
        %s187 = smul.addr %s186, 4
        %s188 = scalar_lea.vmem %s1, %s187
        %p189 = pneg %p76
        %p190 = pneg %p73
        %p191 = scmp.lt.s32.totalorder %s22, 0
        %s192 = scalar_select %p191, %s22, 0
        %s193 = scalar_lea.vmem %s2, %s192
        %p194 = pneg %p102
        %p195 = pneg %p99
        %p196 = pneg %p130
        %p197 = pneg %p127
        %s198 = sand.u32 %s117, 1
        %s199 = scalar_lea.sflag [#allocation3], %s198
        %s200 = sand.u32 %s117, 1
        %s201 = smul.addr %s200, 32
        %s202 = scalar_lea.vmem [#allocation2], %s201
        %s203 = smul.u32 4, %s21
        %p204 = scmp.lt.s32.totalorder %s203, 15
        %s205 = scalar_select %p204, %s203, 15
        %s206 = smul.addr %s205, 4
        %s207 = scalar_lea.vmem %s0, %s206
        %s208 = smul.u32 4, %s21
        %p209 = scmp.lt.s32.totalorder %s22, 0
        %s210 = scalar_select %p209, %s22, 0
        %s211 = smul.addr %s210, 4
        %s212 = scalar_lea.vmem %s1, %s211
        %p213 = scmp.lt.s32.totalorder %s22, 0
        %s214 = scalar_select %p213, %s22, 0
        %s215 = scalar_lea.vmem %s2, %s214
        %s216 = smul.u32 4, %s21
        %v218 = vld [vmem:[%s207] sm:$0xf]
        %v219 = vld [vmem:[%s207 + $0x4] sm:$0xf]
        %v220 = vld [vmem:[%s207 + $0x8] sm:$0xf]
        %v221 = vld [vmem:[%s207 + $0xc] sm:$0xf]
        %v222 = vld [vmem:[%s212] sm:$0xf]
        %v223 = vld [vmem:[%s212 + $0x4] sm:$0xf]
        %v224 = vld [vmem:[%s212 + $0x8] sm:$0xf]
        %v225 = vld [vmem:[%s212 + $0xc] sm:$0xf]
        %v226 = vld [vmem:[%s212 + $0x10] sm:$0xf]
        %v227 = vld [vmem:[%s212 + $0x14] sm:$0xf]
        %v228 = vld [vmem:[%s212 + $0x18] sm:$0xf]
        %v229 = vld [vmem:[%s212 + $0x1c] sm:$0xf]
        %v230 = vld [vmem:[%s215] sm:$0x1]
        %v232 = vlaneseq
        %v233 = vshrl.u32 %v232, 7
        %v234 = vsub.s32 0, %v233
        %v235 = vrot.slane %v230, %v234
        %v241 = vunpack.c.l.b16 %v218
        %v242 = vunpack.c.l.b16 %v219
        %v243 = vunpack.c.l.b16 %v220
        %v244 = vunpack.c.l.b16 %v221
        %v245 = vpack.c.b16 %v242, %v241
        %v246 = vpack.c.b16 %v244, %v243
        %v255 = vunpack.c.l.b16 %v222
        %v256 = vunpack.c.l.b16 %v223
        %v257 = vunpack.c.l.b16 %v224
        %v258 = vunpack.c.l.b16 %v225
        %v259 = vunpack.c.l.b16 %v226
        %v260 = vunpack.c.l.b16 %v227
        %v261 = vunpack.c.l.b16 %v228
        %v262 = vunpack.c.l.b16 %v229
        %v263 = vpack.c.b16 %v256, %v255
        %v264 = vpack.c.b16 %v258, %v257
        %v265 = vpack.c.b16 %v260, %v259
        %v266 = vpack.c.b16 %v262, %v261
        %vm271 = vcmask 523264
        %v273 = vsel %vm271, %v245, 0
        %v276 = vsel %vm271, %v246, 0
        %278 = vmatprep.subr.bf16.mxu0 0
        %279 = vmatpush1.bf16.msra.mxu0 %v263
        %280 = vmatprep.subr.bf16.mxu0 0
        %281 = vmatpush1.bf16.msra.mxu0 %v264
        %282 = vmatprep.subr.bf16.mxu0 0
        %283 = vmatpush1.bf16.msra.mxu0 %v265
        %284 = vmatprep.subr.bf16.mxu0 0
        %285 = vmatpush1.bf16.msra.mxu0 %v266
        %286 = vmatprep.subr.bf16.mxu0 0
        %287 = vmatpush1.bf16.msra.mxu0 0
        %288 = vmatprep.subr.bf16.mxu0 0
        %289 = vmatpush1.bf16.msra.mxu0 0
        %290 = vmatprep.subr.bf16.mxu0 0
        %291 = vmatpush1.bf16.msra.mxu0 0
        %292 = vmatprep.subr.bf16.mxu0 0
        %293 = vmatpush1.bf16.msra.mxu0 0
        %294 = vmatprep.subr.bf16.mxu0 0
        %295 = vmatpush1.bf16.msra.mxu0 0
        %296 = vmatprep.subr.bf16.mxu0 0
        %297 = vmatpush1.bf16.msra.mxu0 0
        %298 = vmatprep.subr.bf16.mxu0 0
        %299 = vmatpush1.bf16.msra.mxu0 0
        %300 = vmatprep.subr.bf16.mxu0 0
        %301 = vmatpush1.bf16.msra.mxu0 0
        %302 = vmatprep.subr.bf16.mxu0 0
        %303 = vmatpush1.bf16.msra.mxu0 0
        %304 = vmatprep.subr.bf16.mxu0 0
        %305 = vmatpush1.bf16.msra.mxu0 0
        %306 = vmatprep.subr.bf16.mxu0 0
        %307 = vmatpush1.bf16.msra.mxu0 0
        %308 = vmatprep.subr.bf16.mxu0 0
        %309 = vmatpush1.bf16.msra.mxu0 0
        %310 = vmatprep.mubr.bf16.mxu0 0
        %311 = vmatmul.mubr.bf16.gmra.mrb[0].mxu0 %v273
        %v312 = vpop.f32.mrb[0].mxu0
        %v313 = vadd.f32 %v235, %v312
        %v314 = vpop.f32.mrb[0].mxu0
        %v315 = vpop.f32.mrb[0].mxu0
        %v316 = vadd.f32 %v235, %v315
        %v317 = vpop.f32.mrb[0].mxu0
        %318 = vmatprep.mubr.bf16.mxu0 0
        %319 = vmatmul.mubr.bf16.gmra.mrb[0].mxu0 %v276
        %v320 = vpop.f32.mrb[0].mxu0
        %v321 = vadd.f32 %v235, %v320
        %v322 = vpop.f32.mrb[0].mxu0
        %v323 = vpop.f32.mrb[0].mxu0
        %v324 = vadd.f32 %v235, %v323
        %v325 = vpop.f32.mrb[0].mxu0
        %326 = vdwg.mxu0
        %327 = vst.msk [vmem:[%s202] sm:$0xff] %vm271, %v313
        %328 = vst.msk [vmem:[%s202 + $0x8] sm:$0xff] %vm271, %v316
        %329 = vst.msk [vmem:[%s202 + $0x10] sm:$0xff] %vm271, %v321
        %330 = vst.msk [vmem:[%s202 + $0x18] sm:$0xff] %vm271, %v324
        %s331 = sand.u32 %s117, 1
        %s332 = scalar_lea.sflag [#allocation3], %s331
        %s333 = sand.u32 %s117, 1
        %s334 = smul.addr %s333, 32
        %s335 = scalar_lea.vmem [#allocation2], %s334
        // Predicated region
        $region33: #{rwkv_tmix_forward.5} parent=31 // pred_check
          %p336 = pneg %p127
        $region34: #{rwkv_tmix_forward.5} parent=31 // pred_check_branch
          %338 = sbr.rel (%p336) target = $region36
        $region35: #{rwkv_tmix_forward.5} parent=31 // pred_region
          %s339 = smul.u32 4, %s21
          %s341 = ssub.s32 512, 512
          %342 = vsyncadd %s332, %s341
          %s343 = sadd.s32 %s22, %s339
          %s344 = smul.addr %s343, 128
          %s345 = scalar_lea.hbm %s3, %s344
          %s346 = sshll.u32 %s335, 4
          %s347 = int_to_ptr.vmem [resolvable:$true] %s346
          %352 = dma.vmem_to_hbm [thread:$0]  %s347, 512, %s345, %s332, 128, 128, 8
        $region36: #{rwkv_tmix_forward.5} parent=31 // pred_fallthru
          _
      $region32: #{rwkv_tmix_forward.5} parent=5 // pred_fallthru
        _
      %p353 = scmp.le.s32.totalorder 2, %s12
      // Predicated region
      $region37: #{rwkv_tmix_forward.5} parent=5 // pred_check
        %p354 = pneg %p353
      $region38: #{rwkv_tmix_forward.5} parent=5 // pred_check_branch
        %356 = sbr.rel (%p354) target = $region40
      $region39: #{rwkv_tmix_forward.5} parent=5 // pred_region
        %s357 = ssub.s32 %s12, 2
        // Predicated region
        $region41: #{rwkv_tmix_forward.5} parent=39 // pred_check
          %p358 = pneg %p133
        $region42: #{rwkv_tmix_forward.5} parent=39 // pred_check_branch
          %360 = sbr.rel (%p358) target = $region44
        $region43: #{rwkv_tmix_forward.5} parent=39 // pred_region
          %s361 = sand.u32 %s118, 1
          %s362 = scalar_lea.sflag [#allocation3], %s361
          %s363 = sand.u32 %s118, 1
          %s364 = smul.addr %s363, 32
          %s365 = scalar_lea.vmem [#allocation2], %s364
          %366 = dma.done %s362, 512
        $region44: #{rwkv_tmix_forward.5} parent=39 // pred_fallthru
          _
      $region40: #{rwkv_tmix_forward.5} parent=5 // pred_fallthru
        _
    $region6: #{rwkv_tmix_forward.5} parent=1 // loop_footer
      %s16 = sadd.s32 1, %s12
    $region7: #{rwkv_tmix_forward.5} parent=1 // loop_footer_branch
      %11 = sbr.rel target = $region3
    $region8: #{rwkv_tmix_forward.5} parent=1 // loop_exit
      _
    %367 = vsyncpa [#allocation3], 1
    %s368 = scalar_lea.sflag [#allocation3], 1
    %369 = vsyncpa %s368, 1

// kernel: rwkv_tmix_forward.4
$region0: #{rwkv_tmix_forward.4}
  #allocation0 [shape = 'u32[]', space=smem, size = 0x4, offset = 0x4, fixed_abs, tag = 'smem constant byte address 0x4 - core index']
  #allocation1 [shape = 'u32[144,128]{1,0:T(1,128)}', space=vmem, size = 0x12000, scoped, tag = 'internal scratch']
  #allocation2 [shape = 'f32[4,16,16]{2,1,0:T(8,128)}', space=vmem, size = 0x8000, scoped, tag = 'scratch operand']
  #allocation3 [shape = 'f32[16,4,16]{2,1,0:T(4,128)}', space=vmem, size = 0x8000, scoped, tag = 'scratch operand']
  %s0 = inlined_call_operand.vmem [shape: f32[4,16], index: 0, kind: input, shape index: {}]
  %s1 = inlined_call_operand.vmem [shape: f32[2,64,4,16], index: 1, kind: input, shape index: {}]
  %s2 = inlined_call_operand.vmem [shape: bf16[2,64,4,16], index: 2, kind: input, shape index: {}]
  %s3 = inlined_call_operand.vmem [shape: bf16[2,64,4,16], index: 3, kind: input, shape index: {}]
  %s4 = inlined_call_operand.vmem [shape: f32[2,64,4,16], index: 4, kind: input, shape index: {}]
  %s5 = inlined_call_operand.vmem [shape: bf16[2,64,4,16], index: 5, kind: input, shape index: {}]
  %s6 = inlined_call_operand.vmem [shape: bf16[2,64,4,16], index: 6, kind: input, shape index: {}]
  %s7 = inlined_call_operand.vmem [shape: bf16[2,64,4,16], index: 7, kind: input, shape index: {}]
  %s8 = inlined_call_operand.vmem [shape: bf16[2,64,4,16], index: 8, kind: output, shape index: {}]
  %s9 = sld [smem:[#allocation0]]
  $region76: #{rwkv_tmix_forward.4} parent=0
    _
  %s11 = ssub.s32 1, %s9
  %s12 = scalar_select 0, %s11, %s9
  loop: start=0, step=1, limit=10
  $region2: #{rwkv_tmix_forward.4} parent=0 // loop_pre_header
    _
  $region3: #{rwkv_tmix_forward.4} parent=0 // loop_header
    %s14 = sphi 0, %s18
    %p15 = scmp.ge.s32.totalorder %s14, 10
    %s21 = sphi 0, %s33
    %s22 = sphi 0, %s29
    %s23 = sphi 0, %s21
    %s24 = sphi 0, %s22
    %s25 = sphi 0, %s23
    %s26 = sphi 0, %s24
    %s34 = sphi 0, %s34
    %s36 = sphi 0, %s34
    %s37 = sphi 0, %s36
    %s51 = sphi 0, %s37
    %s59 = sphi 0, %s61
    %s62 = sphi 0, %s59
    %s63 = sphi 0, %s62
    %s79 = sphi 0, %s63
    %s87 = sphi 0, %s89
    %s90 = sphi 0, %s87
    %s91 = sphi 0, %s90
    %s107 = sphi 0, %s91
    %s115 = sphi 0, %s117
    %s118 = sphi 0, %s115
    %s119 = sphi 0, %s118
    %s135 = sphi 0, %s119
    %s143 = sphi 0, %s145
    %s146 = sphi 0, %s143
    %s147 = sphi 0, %s146
    %s163 = sphi 0, %s147
    %s171 = sphi 0, %s173
    %s174 = sphi 0, %s171
    %s175 = sphi 0, %s174
    %s191 = sphi 0, %s175
    %s199 = sphi 0, %s201
    %s202 = sphi 0, %s199
    %s203 = sphi 0, %s202
    %s219 = sphi 0, %s203
    %s227 = sphi 0, %s229
    %s230 = sphi 0, %s227
    %s231 = sphi 0, %s230
    %s247 = sphi 0, %s231
    %s255 = sphi 0, %s257
    %s258 = sphi 0, %s255
    %s259 = sphi 0, %s258
    %s275 = sphi 0, %s259
  $region4: #{rwkv_tmix_forward.4} parent=0 // loop_header_branch
    %17 = sbr.rel (%p15) target = $region8
  $region5: #{rwkv_tmix_forward.4} parent=0 // loop_body
    %s19 = ssub.s32 %s14, 1
    %s20 = ssub.s32 %s14, 2
    %s27 = sadd.s32 1, %s22
    %p28 = scmp.ge.s32.totalorder %s27, 4
    %s29 = scalar_select %p28, 0, %s27
    %s30 = sadd.s32 1, %s21
    %s31 = scalar_select %p28, %s30, %s21
    %p32 = scmp.ge.s32.totalorder %s31, 2
    %s33 = scalar_select %p32, 0, %s31
    %s35 = sadd.s32 %s34, 1
    %p38 = scmp.eq.s32.totalorder %s14, 7
    %p39 = scmp.ne.s32.totalorder %s34, %s36
    %p40 = scmp.eq.s32.totalorder %s14, 0
    %p41 = por %p39, %p40
    %p42 = scmp.ne.s32.totalorder %s34, %s36
    %p43 = scmp.eq.s32.totalorder %s19, 7
    %p44 = por %p42, %p43
    %p45 = scmp.ne.s32.totalorder %s36, %s37
    %p46 = scmp.eq.s32.totalorder %s19, 0
    %p47 = por %p45, %p46
    %p48 = scmp.ne.s32.totalorder %s36, %s37
    %p49 = scmp.eq.s32.totalorder %s20, 7
    %p50 = por %p48, %p49
    %p52 = scmp.ne.s32.totalorder %s37, %s51
    %p53 = scmp.eq.s32.totalorder %s20, 0
    %p54 = por %p52, %p53
    %s55 = ssub.s32 %s21, %s33
    %s56 = ssub.s32 %s22, %s29
    %s57 = sor.u32 %s55, %s56
    %p58 = scmp.eq.s32.totalorder %s57, 0
    %s60 = sadd.s32 %s59, 1
    %s61 = scalar_select %p58, %s59, %s60
    %p64 = pneg %p58
    %p65 = scmp.eq.s32.totalorder %s14, 7
    %p66 = por %p64, %p65
    %p67 = scmp.ne.s32.totalorder %s59, %s62
    %p68 = scmp.eq.s32.totalorder %s14, 0
    %p69 = por %p67, %p68
    %p70 = scmp.ne.s32.totalorder %s59, %s62
    %p71 = scmp.eq.s32.totalorder %s19, 7
    %p72 = por %p70, %p71
    %p73 = scmp.ne.s32.totalorder %s62, %s63
    %p74 = scmp.eq.s32.totalorder %s19, 0
    %p75 = por %p73, %p74
    %p76 = scmp.ne.s32.totalorder %s62, %s63
    %p77 = scmp.eq.s32.totalorder %s20, 7
    %p78 = por %p76, %p77
    %p80 = scmp.ne.s32.totalorder %s63, %s79
    %p81 = scmp.eq.s32.totalorder %s20, 0
    %p82 = por %p80, %p81
    %s83 = ssub.s32 %s21, %s33
    %s84 = ssub.s32 %s22, %s29
    %s85 = sor.u32 %s83, %s84
    %p86 = scmp.eq.s32.totalorder %s85, 0
    %s88 = sadd.s32 %s87, 1
    %s89 = scalar_select %p86, %s87, %s88
    %p92 = pneg %p86
    %p93 = scmp.eq.s32.totalorder %s14, 7
    %p94 = por %p92, %p93
    %p95 = scmp.ne.s32.totalorder %s87, %s90
    %p96 = scmp.eq.s32.totalorder %s14, 0
    %p97 = por %p95, %p96
    %p98 = scmp.ne.s32.totalorder %s87, %s90
    %p99 = scmp.eq.s32.totalorder %s19, 7
    %p100 = por %p98, %p99
    %p101 = scmp.ne.s32.totalorder %s90, %s91
    %p102 = scmp.eq.s32.totalorder %s19, 0
    %p103 = por %p101, %p102
    %p104 = scmp.ne.s32.totalorder %s90, %s91
    %p105 = scmp.eq.s32.totalorder %s20, 7
    %p106 = por %p104, %p105
    %p108 = scmp.ne.s32.totalorder %s91, %s107
    %p109 = scmp.eq.s32.totalorder %s20, 0
    %p110 = por %p108, %p109
    %s111 = ssub.s32 %s21, %s33
    %s112 = ssub.s32 %s22, %s29
    %s113 = sor.u32 %s111, %s112
    %p114 = scmp.eq.s32.totalorder %s113, 0
    %s116 = sadd.s32 %s115, 1
    %s117 = scalar_select %p114, %s115, %s116
    %p120 = pneg %p114
    %p121 = scmp.eq.s32.totalorder %s14, 7
    %p122 = por %p120, %p121
    %p123 = scmp.ne.s32.totalorder %s115, %s118
    %p124 = scmp.eq.s32.totalorder %s14, 0
    %p125 = por %p123, %p124
    %p126 = scmp.ne.s32.totalorder %s115, %s118
    %p127 = scmp.eq.s32.totalorder %s19, 7
    %p128 = por %p126, %p127
    %p129 = scmp.ne.s32.totalorder %s118, %s119
    %p130 = scmp.eq.s32.totalorder %s19, 0
    %p131 = por %p129, %p130
    %p132 = scmp.ne.s32.totalorder %s118, %s119
    %p133 = scmp.eq.s32.totalorder %s20, 7
    %p134 = por %p132, %p133
    %p136 = scmp.ne.s32.totalorder %s119, %s135
    %p137 = scmp.eq.s32.totalorder %s20, 0
    %p138 = por %p136, %p137
    %s139 = ssub.s32 %s21, %s33
    %s140 = ssub.s32 %s22, %s29
    %s141 = sor.u32 %s139, %s140
    %p142 = scmp.eq.s32.totalorder %s141, 0
    %s144 = sadd.s32 %s143, 1
    %s145 = scalar_select %p142, %s143, %s144
    %p148 = pneg %p142
    %p149 = scmp.eq.s32.totalorder %s14, 7
    %p150 = por %p148, %p149
    %p151 = scmp.ne.s32.totalorder %s143, %s146
    %p152 = scmp.eq.s32.totalorder %s14, 0
    %p153 = por %p151, %p152
    %p154 = scmp.ne.s32.totalorder %s143, %s146
    %p155 = scmp.eq.s32.totalorder %s19, 7
    %p156 = por %p154, %p155
    %p157 = scmp.ne.s32.totalorder %s146, %s147
    %p158 = scmp.eq.s32.totalorder %s19, 0
    %p159 = por %p157, %p158
    %p160 = scmp.ne.s32.totalorder %s146, %s147
    %p161 = scmp.eq.s32.totalorder %s20, 7
    %p162 = por %p160, %p161
    %p164 = scmp.ne.s32.totalorder %s147, %s163
    %p165 = scmp.eq.s32.totalorder %s20, 0
    %p166 = por %p164, %p165
    %s167 = ssub.s32 %s21, %s33
    %s168 = ssub.s32 %s22, %s29
    %s169 = sor.u32 %s167, %s168
    %p170 = scmp.eq.s32.totalorder %s169, 0
    %s172 = sadd.s32 %s171, 1
    %s173 = scalar_select %p170, %s171, %s172
    %p176 = pneg %p170
    %p177 = scmp.eq.s32.totalorder %s14, 7
    %p178 = por %p176, %p177
    %p179 = scmp.ne.s32.totalorder %s171, %s174
    %p180 = scmp.eq.s32.totalorder %s14, 0
    %p181 = por %p179, %p180
    %p182 = scmp.ne.s32.totalorder %s171, %s174
    %p183 = scmp.eq.s32.totalorder %s19, 7
    %p184 = por %p182, %p183
    %p185 = scmp.ne.s32.totalorder %s174, %s175
    %p186 = scmp.eq.s32.totalorder %s19, 0
    %p187 = por %p185, %p186
    %p188 = scmp.ne.s32.totalorder %s174, %s175
    %p189 = scmp.eq.s32.totalorder %s20, 7
    %p190 = por %p188, %p189
    %p192 = scmp.ne.s32.totalorder %s175, %s191
    %p193 = scmp.eq.s32.totalorder %s20, 0
    %p194 = por %p192, %p193
    %s195 = ssub.s32 %s21, %s33
    %s196 = ssub.s32 %s22, %s29
    %s197 = sor.u32 %s195, %s196
    %p198 = scmp.eq.s32.totalorder %s197, 0
    %s200 = sadd.s32 %s199, 1
    %s201 = scalar_select %p198, %s199, %s200
    %p204 = pneg %p198
    %p205 = scmp.eq.s32.totalorder %s14, 7
    %p206 = por %p204, %p205
    %p207 = scmp.ne.s32.totalorder %s199, %s202
    %p208 = scmp.eq.s32.totalorder %s14, 0
    %p209 = por %p207, %p208
    %p210 = scmp.ne.s32.totalorder %s199, %s202
    %p211 = scmp.eq.s32.totalorder %s19, 7
    %p212 = por %p210, %p211
    %p213 = scmp.ne.s32.totalorder %s202, %s203
    %p214 = scmp.eq.s32.totalorder %s19, 0
    %p215 = por %p213, %p214
    %p216 = scmp.ne.s32.totalorder %s202, %s203
    %p217 = scmp.eq.s32.totalorder %s20, 7
    %p218 = por %p216, %p217
    %p220 = scmp.ne.s32.totalorder %s203, %s219
    %p221 = scmp.eq.s32.totalorder %s20, 0
    %p222 = por %p220, %p221
    %s223 = ssub.s32 %s21, %s33
    %s224 = ssub.s32 %s22, %s29
    %s225 = sor.u32 %s223, %s224
    %p226 = scmp.eq.s32.totalorder %s225, 0
    %s228 = sadd.s32 %s227, 1
    %s229 = scalar_select %p226, %s227, %s228
    %p232 = pneg %p226
    %p233 = scmp.eq.s32.totalorder %s14, 7
    %p234 = por %p232, %p233
    %p235 = scmp.ne.s32.totalorder %s227, %s230
    %p236 = scmp.eq.s32.totalorder %s14, 0
    %p237 = por %p235, %p236
    %p238 = scmp.ne.s32.totalorder %s227, %s230
    %p239 = scmp.eq.s32.totalorder %s19, 7
    %p240 = por %p238, %p239
    %p241 = scmp.ne.s32.totalorder %s230, %s231
    %p242 = scmp.eq.s32.totalorder %s19, 0
    %p243 = por %p241, %p242
    %p244 = scmp.ne.s32.totalorder %s230, %s231
    %p245 = scmp.eq.s32.totalorder %s20, 7
    %p246 = por %p244, %p245
    %p248 = scmp.ne.s32.totalorder %s231, %s247
    %p249 = scmp.eq.s32.totalorder %s20, 0
    %p250 = por %p248, %p249
    %s251 = ssub.s32 %s21, %s33
    %s252 = ssub.s32 %s22, %s29
    %s253 = sor.u32 %s251, %s252
    %p254 = scmp.eq.s32.totalorder %s253, 0
    %s256 = sadd.s32 %s255, 1
    %s257 = scalar_select %p254, %s255, %s256
    %p260 = pneg %p254
    %p261 = scmp.eq.s32.totalorder %s14, 7
    %p262 = por %p260, %p261
    %p263 = scmp.ne.s32.totalorder %s255, %s258
    %p264 = scmp.eq.s32.totalorder %s14, 0
    %p265 = por %p263, %p264
    %p266 = scmp.ne.s32.totalorder %s255, %s258
    %p267 = scmp.eq.s32.totalorder %s19, 7
    %p268 = por %p266, %p267
    %p269 = scmp.ne.s32.totalorder %s258, %s259
    %p270 = scmp.eq.s32.totalorder %s19, 0
    %p271 = por %p269, %p270
    %p272 = scmp.ne.s32.totalorder %s258, %s259
    %p273 = scmp.eq.s32.totalorder %s20, 7
    %p274 = por %p272, %p273
    %p276 = scmp.ne.s32.totalorder %s259, %s275
    %p277 = scmp.eq.s32.totalorder %s20, 0
    %p278 = por %p276, %p277
    %p279 = scmp.le.s32.totalorder 1, %s14
    %p280 = scmp.lt.s32.totalorder %s14, 9
    %p281 = pnand %p279, %p280
    %p282 = pneg %p281
    // Predicated region
    $region9: #{rwkv_tmix_forward.4} parent=5 // pred_check
      _
    $region10: #{rwkv_tmix_forward.4} parent=5 // pred_check_branch
      %284 = sbr.rel (%p281) target = $region12
    $region11: #{rwkv_tmix_forward.4} parent=5 // pred_region
      %s285 = ssub.s32 %s14, 1
      // Predicated region
      $region13: #{rwkv_tmix_forward.4} parent=11 // pred_check
        %p286 = pneg %p47
      $region14: #{rwkv_tmix_forward.4} parent=11 // pred_check_branch
        %288 = sbr.rel (%p286) target = $region16
      $region15: #{rwkv_tmix_forward.4} parent=11 // pred_region
        _
      $region16: #{rwkv_tmix_forward.4} parent=11 // pred_fallthru
        _
    $region12: #{rwkv_tmix_forward.4} parent=5 // pred_fallthru
      _
    %p289 = scmp.lt.s32.totalorder %s14, 8
    // Predicated region
    $region17: #{rwkv_tmix_forward.4} parent=5 // pred_check
      %p290 = pneg %p289
    $region18: #{rwkv_tmix_forward.4} parent=5 // pred_check_branch
      %292 = sbr.rel (%p290) target = $region20
    $region19: #{rwkv_tmix_forward.4} parent=5 // pred_region
      // Predicated region
      $region21: #{rwkv_tmix_forward.4} parent=19 // pred_check
        %p293 = pneg %p69
      $region22: #{rwkv_tmix_forward.4} parent=19 // pred_check_branch
        %295 = sbr.rel (%p293) target = $region24
      $region23: #{rwkv_tmix_forward.4} parent=19 // pred_region
        %s296 = smul.u32 16, %s22
        %p297 = scmp.lt.s32.totalorder %s21, 1
        %s298 = scalar_select %p297, %s21, 1
        %p299 = scmp.lt.s32.totalorder %s296, 63
        %s300 = scalar_select %p299, %s296, 63
        %s301 = smul.addr %s298, 64
        %s302 = sadd.s32 %s300, %s301
        %s303 = smul.addr %s302, 4
        %s304 = scalar_lea.vmem %s1, %s303
        %s305 = smul.u32 16, %s22
      $region24: #{rwkv_tmix_forward.4} parent=19 // pred_fallthru
        _
      // Predicated region
      $region25: #{rwkv_tmix_forward.4} parent=19 // pred_check
        %p306 = pneg %p97
      $region26: #{rwkv_tmix_forward.4} parent=19 // pred_check_branch
        %308 = sbr.rel (%p306) target = $region28
      $region27: #{rwkv_tmix_forward.4} parent=19 // pred_region
        %s309 = smul.u32 16, %s22
        %p310 = scmp.lt.s32.totalorder %s21, 1
        %s311 = scalar_select %p310, %s21, 1
        %p312 = scmp.lt.s32.totalorder %s309, 63
        %s313 = scalar_select %p312, %s309, 63
        %s314 = smul.addr %s311, 64
        %s315 = sadd.s32 %s313, %s314
        %s316 = smul.addr %s315, 2
        %s317 = scalar_lea.vmem %s2, %s316
        %s318 = smul.u32 16, %s22
      $region28: #{rwkv_tmix_forward.4} parent=19 // pred_fallthru
        _
      // Predicated region
      $region29: #{rwkv_tmix_forward.4} parent=19 // pred_check
        %p319 = pneg %p125
      $region30: #{rwkv_tmix_forward.4} parent=19 // pred_check_branch
        %321 = sbr.rel (%p319) target = $region32
      $region31: #{rwkv_tmix_forward.4} parent=19 // pred_region
        %s322 = smul.u32 16, %s22
        %p323 = scmp.lt.s32.totalorder %s21, 1
        %s324 = scalar_select %p323, %s21, 1
        %p325 = scmp.lt.s32.totalorder %s322, 63
        %s326 = scalar_select %p325, %s322, 63
        %s327 = smul.addr %s324, 64
        %s328 = sadd.s32 %s326, %s327
        %s329 = smul.addr %s328, 2
        %s330 = scalar_lea.vmem %s3, %s329
        %s331 = smul.u32 16, %s22
      $region32: #{rwkv_tmix_forward.4} parent=19 // pred_fallthru
        _
      // Predicated region
      $region33: #{rwkv_tmix_forward.4} parent=19 // pred_check
        %p332 = pneg %p153
      $region34: #{rwkv_tmix_forward.4} parent=19 // pred_check_branch
        %334 = sbr.rel (%p332) target = $region36
      $region35: #{rwkv_tmix_forward.4} parent=19 // pred_region
        %s335 = smul.u32 16, %s22
        %p336 = scmp.lt.s32.totalorder %s21, 1
        %s337 = scalar_select %p336, %s21, 1
        %p338 = scmp.lt.s32.totalorder %s335, 63
        %s339 = scalar_select %p338, %s335, 63
        %s340 = smul.addr %s337, 64
        %s341 = sadd.s32 %s339, %s340
        %s342 = smul.addr %s341, 4
        %s343 = scalar_lea.vmem %s4, %s342
        %s344 = smul.u32 16, %s22
      $region36: #{rwkv_tmix_forward.4} parent=19 // pred_fallthru
        _
      // Predicated region
      $region37: #{rwkv_tmix_forward.4} parent=19 // pred_check
        %p345 = pneg %p181
      $region38: #{rwkv_tmix_forward.4} parent=19 // pred_check_branch
        %347 = sbr.rel (%p345) target = $region40
      $region39: #{rwkv_tmix_forward.4} parent=19 // pred_region
        %s348 = smul.u32 16, %s22
        %p349 = scmp.lt.s32.totalorder %s21, 1
        %s350 = scalar_select %p349, %s21, 1
        %p351 = scmp.lt.s32.totalorder %s348, 63
        %s352 = scalar_select %p351, %s348, 63
        %s353 = smul.addr %s350, 64
        %s354 = sadd.s32 %s352, %s353
        %s355 = smul.addr %s354, 2
        %s356 = scalar_lea.vmem %s5, %s355
        %s357 = smul.u32 16, %s22
      $region40: #{rwkv_tmix_forward.4} parent=19 // pred_fallthru
        _
      // Predicated region
      $region41: #{rwkv_tmix_forward.4} parent=19 // pred_check
        %p358 = pneg %p209
      $region42: #{rwkv_tmix_forward.4} parent=19 // pred_check_branch
        %360 = sbr.rel (%p358) target = $region44
      $region43: #{rwkv_tmix_forward.4} parent=19 // pred_region
        %s361 = smul.u32 16, %s22
        %p362 = scmp.lt.s32.totalorder %s21, 1
        %s363 = scalar_select %p362, %s21, 1
        %p364 = scmp.lt.s32.totalorder %s361, 63
        %s365 = scalar_select %p364, %s361, 63
        %s366 = smul.addr %s363, 64
        %s367 = sadd.s32 %s365, %s366
        %s368 = smul.addr %s367, 2
        %s369 = scalar_lea.vmem %s6, %s368
        %s370 = smul.u32 16, %s22
      $region44: #{rwkv_tmix_forward.4} parent=19 // pred_fallthru
        _
      // Predicated region
      $region45: #{rwkv_tmix_forward.4} parent=19 // pred_check
        %p371 = pneg %p237
      $region46: #{rwkv_tmix_forward.4} parent=19 // pred_check_branch
        %373 = sbr.rel (%p371) target = $region48
      $region47: #{rwkv_tmix_forward.4} parent=19 // pred_region
        %s374 = smul.u32 16, %s22
        %p375 = scmp.lt.s32.totalorder %s21, 1
        %s376 = scalar_select %p375, %s21, 1
        %p377 = scmp.lt.s32.totalorder %s374, 63
        %s378 = scalar_select %p377, %s374, 63
        %s379 = smul.addr %s376, 64
        %s380 = sadd.s32 %s378, %s379
        %s381 = smul.addr %s380, 2
        %s382 = scalar_lea.vmem %s7, %s381
        %s383 = smul.u32 16, %s22
      $region48: #{rwkv_tmix_forward.4} parent=19 // pred_fallthru
        _
    $region20: #{rwkv_tmix_forward.4} parent=5 // pred_fallthru
      _
    %p384 = scmp.le.s32.totalorder 1, %s14
    %p385 = scmp.lt.s32.totalorder %s14, 9
    %p386 = pnand %p384, %p385
    %p387 = pneg %p386
    // Predicated region
    $region49: #{rwkv_tmix_forward.4} parent=5 // pred_check
      _
    $region50: #{rwkv_tmix_forward.4} parent=5 // pred_check_branch
      %389 = sbr.rel (%p386) target = $region52
    $region51: #{rwkv_tmix_forward.4} parent=5 // pred_region
      %s390 = ssub.s32 %s14, 1
      %p391 = pneg %p47
      %p392 = pneg %p44
      %s393 = smul.u32 16, %s24
      %p394 = scmp.lt.s32.totalorder %s23, 1
      %s395 = scalar_select %p394, %s23, 1
      %p396 = scmp.lt.s32.totalorder %s393, 63
      %s397 = scalar_select %p396, %s393, 63
      %s398 = smul.addr %s395, 64
      %s399 = sadd.s32 %s397, %s398
      %s400 = smul.addr %s399, 4
      %s401 = scalar_lea.vmem %s1, %s400
      %p402 = pneg %p75
      %p403 = pneg %p72
      %s404 = smul.u32 16, %s24
      %p405 = scmp.lt.s32.totalorder %s23, 1
      %s406 = scalar_select %p405, %s23, 1
      %p407 = scmp.lt.s32.totalorder %s404, 63
      %s408 = scalar_select %p407, %s404, 63
      %s409 = smul.addr %s406, 64
      %s410 = sadd.s32 %s408, %s409
      %s411 = smul.addr %s410, 2
      %s412 = scalar_lea.vmem %s2, %s411
      %p413 = pneg %p103
      %p414 = pneg %p100
      %s415 = smul.u32 16, %s24
      %p416 = scmp.lt.s32.totalorder %s23, 1
      %s417 = scalar_select %p416, %s23, 1
      %p418 = scmp.lt.s32.totalorder %s415, 63
      %s419 = scalar_select %p418, %s415, 63
      %s420 = smul.addr %s417, 64
      %s421 = sadd.s32 %s419, %s420
      %s422 = smul.addr %s421, 2
      %s423 = scalar_lea.vmem %s3, %s422
      %p424 = pneg %p131
      %p425 = pneg %p128
      %s426 = smul.u32 16, %s24
      %p427 = scmp.lt.s32.totalorder %s23, 1
      %s428 = scalar_select %p427, %s23, 1
      %p429 = scmp.lt.s32.totalorder %s426, 63
      %s430 = scalar_select %p429, %s426, 63
      %s431 = smul.addr %s428, 64
      %s432 = sadd.s32 %s430, %s431
      %s433 = smul.addr %s432, 4
      %s434 = scalar_lea.vmem %s4, %s433
      %p435 = pneg %p159
      %p436 = pneg %p156
      %s437 = smul.u32 16, %s24
      %p438 = scmp.lt.s32.totalorder %s23, 1
      %s439 = scalar_select %p438, %s23, 1
      %p440 = scmp.lt.s32.totalorder %s437, 63
      %s441 = scalar_select %p440, %s437, 63
      %s442 = smul.addr %s439, 64
      %s443 = sadd.s32 %s441, %s442
      %s444 = smul.addr %s443, 2
      %s445 = scalar_lea.vmem %s5, %s444
      %p446 = pneg %p187
      %p447 = pneg %p184
      %s448 = smul.u32 16, %s24
      %p449 = scmp.lt.s32.totalorder %s23, 1
      %s450 = scalar_select %p449, %s23, 1
      %p451 = scmp.lt.s32.totalorder %s448, 63
      %s452 = scalar_select %p451, %s448, 63
      %s453 = smul.addr %s450, 64
      %s454 = sadd.s32 %s452, %s453
      %s455 = smul.addr %s454, 2
      %s456 = scalar_lea.vmem %s6, %s455
      %p457 = pneg %p215
      %p458 = pneg %p212
      %s459 = smul.u32 16, %s24
      %p460 = scmp.lt.s32.totalorder %s23, 1
      %s461 = scalar_select %p460, %s23, 1
      %p462 = scmp.lt.s32.totalorder %s459, 63
      %s463 = scalar_select %p462, %s459, 63
      %s464 = smul.addr %s461, 64
      %s465 = sadd.s32 %s463, %s464
      %s466 = smul.addr %s465, 2
      %s467 = scalar_lea.vmem %s7, %s466
      %p468 = pneg %p243
      %p469 = pneg %p240
      %p470 = pneg %p271
      %p471 = pneg %p268
      %s472 = smul.u32 16, %s24
      %p473 = scmp.lt.s32.totalorder %s23, 1
      %s474 = scalar_select %p473, %s23, 1
      %p475 = scmp.lt.s32.totalorder %s472, 63
      %s476 = scalar_select %p475, %s472, 63
      %s477 = smul.addr %s474, 64
      %s478 = sadd.s32 %s476, %s477
      %s479 = smul.addr %s478, 2
      %s480 = scalar_lea.vmem %s8, %s479
      %s481 = smul.u32 16, %s24
      %p482 = scmp.lt.s32.totalorder %s23, 1
      %s483 = scalar_select %p482, %s23, 1
      %p484 = scmp.lt.s32.totalorder %s481, 63
      %s485 = scalar_select %p484, %s481, 63
      %s486 = smul.addr %s483, 64
      %s487 = sadd.s32 %s485, %s486
      %s488 = smul.addr %s487, 4
      %s489 = scalar_lea.vmem %s1, %s488
      %s490 = smul.u32 16, %s24
      %s491 = smul.u32 16, %s24
      %p492 = scmp.lt.s32.totalorder %s23, 1
      %s493 = scalar_select %p492, %s23, 1
      %p494 = scmp.lt.s32.totalorder %s491, 63
      %s495 = scalar_select %p494, %s491, 63
      %s496 = smul.addr %s493, 64
      %s497 = sadd.s32 %s495, %s496
      %s498 = smul.addr %s497, 2
      %s499 = scalar_lea.vmem %s2, %s498
      %s500 = smul.u32 16, %s24
      %s501 = smul.u32 16, %s24
      %p502 = scmp.lt.s32.totalorder %s23, 1
      %s503 = scalar_select %p502, %s23, 1
      %p504 = scmp.lt.s32.totalorder %s501, 63
      %s505 = scalar_select %p504, %s501, 63
      %s506 = smul.addr %s503, 64
      %s507 = sadd.s32 %s505, %s506
      %s508 = smul.addr %s507, 2
      %s509 = scalar_lea.vmem %s3, %s508
      %s510 = smul.u32 16, %s24
      %s511 = smul.u32 16, %s24
      %p512 = scmp.lt.s32.totalorder %s23, 1
      %s513 = scalar_select %p512, %s23, 1
      %p514 = scmp.lt.s32.totalorder %s511, 63
      %s515 = scalar_select %p514, %s511, 63
      %s516 = smul.addr %s513, 64
      %s517 = sadd.s32 %s515, %s516
      %s518 = smul.addr %s517, 4
      %s519 = scalar_lea.vmem %s4, %s518
      %s520 = smul.u32 16, %s24
      %s521 = smul.u32 16, %s24
      %p522 = scmp.lt.s32.totalorder %s23, 1
      %s523 = scalar_select %p522, %s23, 1
      %p524 = scmp.lt.s32.totalorder %s521, 63
      %s525 = scalar_select %p524, %s521, 63
      %s526 = smul.addr %s523, 64
      %s527 = sadd.s32 %s525, %s526
      %s528 = smul.addr %s527, 2
      %s529 = scalar_lea.vmem %s5, %s528
      %s530 = smul.u32 16, %s24
      %s531 = smul.u32 16, %s24
      %p532 = scmp.lt.s32.totalorder %s23, 1
      %s533 = scalar_select %p532, %s23, 1
      %p534 = scmp.lt.s32.totalorder %s531, 63
      %s535 = scalar_select %p534, %s531, 63
      %s536 = smul.addr %s533, 64
      %s537 = sadd.s32 %s535, %s536
      %s538 = smul.addr %s537, 2
      %s539 = scalar_lea.vmem %s6, %s538
      %s540 = smul.u32 16, %s24
      %s541 = smul.u32 16, %s24
      %p542 = scmp.lt.s32.totalorder %s23, 1
      %s543 = scalar_select %p542, %s23, 1
      %p544 = scmp.lt.s32.totalorder %s541, 63
      %s545 = scalar_select %p544, %s541, 63
      %s546 = smul.addr %s543, 64
      %s547 = sadd.s32 %s545, %s546
      %s548 = smul.addr %s547, 2
      %s549 = scalar_lea.vmem %s7, %s548
      %s550 = smul.u32 16, %s24
      %s551 = smul.u32 16, %s24
      %p552 = scmp.lt.s32.totalorder %s23, 1
      %s553 = scalar_select %p552, %s23, 1
      %p554 = scmp.lt.s32.totalorder %s551, 63
      %s555 = scalar_select %p554, %s551, 63
      %s556 = smul.addr %s553, 64
      %s557 = sadd.s32 %s555, %s556
      %s558 = smul.addr %s557, 2
      %s559 = scalar_lea.vmem %s8, %s558
      %s560 = smul.u32 16, %s24
      %p561 = scmp.eq.s32.totalorder %s24, 0
      // Predicated region
      $region53: #{rwkv_tmix_forward.4} parent=51 // pred_check
        %p562 = pneg %p561
      $region54: #{rwkv_tmix_forward.4} parent=51 // pred_check_branch
        %564 = sbr.rel (%p562) target = $region56
      $region55: #{rwkv_tmix_forward.4} parent=51 // pred_region
        %vm565 = vcmask 130048
        %566 = vst.msk [vmem:[#allocation2] sm:$0xff] %vm565, 0.0
        %567 = vst.msk [vmem:[#allocation2 + $0x8] sm:$0xff] %vm565, 0.0
        %568 = vst.msk [vmem:[#allocation2 + $0x10] sm:$0xff] %vm565, 0.0
        %569 = vst.msk [vmem:[#allocation2 + $0x18] sm:$0xff] %vm565, 0.0
        %570 = vst.msk [vmem:[#allocation2 + $0x20] sm:$0xff] %vm565, 0.0
        %571 = vst.msk [vmem:[#allocation2 + $0x28] sm:$0xff] %vm565, 0.0
        %572 = vst.msk [vmem:[#allocation2 + $0x30] sm:$0xff] %vm565, 0.0
        %573 = vst.msk [vmem:[#allocation2 + $0x38] sm:$0xff] %vm565, 0.0
      $region56: #{rwkv_tmix_forward.4} parent=51 // pred_fallthru
        _
      %v574 = vld [vmem:[#allocation2] sm:$0xff]
      %v575 = vld [vmem:[#allocation2 + $0x8] sm:$0xff]
      %v576 = vld [vmem:[#allocation2 + $0x10] sm:$0xff]
      %v577 = vld [vmem:[#allocation2 + $0x18] sm:$0xff]
      %v578 = vld [vmem:[#allocation2 + $0x20] sm:$0xff]
      %v579 = vld [vmem:[#allocation2 + $0x28] sm:$0xff]
      %v580 = vld [vmem:[#allocation2 + $0x30] sm:$0xff]
      %v581 = vld [vmem:[#allocation2 + $0x38] sm:$0xff]
      loop: start=0, step=1, limit=16
      $region57: #{rwkv_tmix_forward.4} parent=51 // loop_pre_header
        _
      $region58: #{rwkv_tmix_forward.4} parent=51 // loop_header
        %s583 = sphi 0, %s587
        %p584 = scmp.ge.s32.totalorder %s583, 16
        %v588 = vphi %v574, %v906
        %v589 = vphi %v575, %v907
        %v590 = vphi %v576, %v908
        %v591 = vphi %v577, %v909
        %v592 = vphi %v578, %v910
        %v593 = vphi %v579, %v911
        %v594 = vphi %v580, %v912
        %v595 = vphi %v581, %v913
      $region59: #{rwkv_tmix_forward.4} parent=51 // loop_header_branch
        %586 = sbr.rel (%p584) target = $region63
      $region60: #{rwkv_tmix_forward.4} parent=51 // loop_body
        %s596 = smul.u32 %s583, 4
        %s597 = scalar_lea.vmem %s489, %s596
        %v598 = vld [vmem:[%s597] sm:$0xf]
        %s599 = smul.addr %s583, 2
        %s600 = scalar_lea.vmem %s499, %s599
        %v601 = vld [vmem:[%s600] sm:$0x3]
        %v602 = vunpack.c.l.bf16 %v601
        %s603 = smul.addr %s583, 2
        %s604 = scalar_lea.vmem %s509, %s603
        %v605 = vld [vmem:[%s604] sm:$0x3]
        %v606 = vunpack.c.l.bf16 %v605
        %s607 = scalar_lea.vmem %s519, %s596
        %v608 = vld [vmem:[%s607] sm:$0xf]
        %s609 = smul.addr %s583, 2
        %s610 = scalar_lea.vmem %s529, %s609
        %v611 = vld [vmem:[%s610] sm:$0x3]
        %v612 = vunpack.c.l.bf16 %v611
        %s613 = smul.addr %s583, 2
        %s614 = scalar_lea.vmem %s539, %s613
        %v615 = vld [vmem:[%s614] sm:$0x3]
        %v616 = vunpack.c.l.bf16 %v615
        %v619 = vunpack.c.l.s4 1966171168
        %v620 = vunpack.c.0.s8 %v619
        %v621 = vlaneseq
        %v622 = vshrl.u32 %v621, 7
        %v623 = vsub.s32 %v620, %v622
        %v624 = vrot.slane %v612, %v623
        %v625 = vcombine.high %v624, %v624
        %v627 = vunpack.c.l.s4 1966171168
        %v628 = vunpack.c.0.s8 %v627
        %v629 = vlaneseq
        %v630 = vshrl.u32 %v629, 7
        %v631 = vsub.s32 %v628, %v630
        %v632 = vrot.slane %v624, %v631
        %v634 = vunpack.c.l.s4 1966171168
        %v635 = vunpack.c.0.s8 %v634
        %v636 = vlaneseq
        %v637 = vshrl.u32 %v636, 7
        %v638 = vsub.s32 %v635, %v637
        %v639 = vrot.slane %v625, %v638
        %v640 = vcombine.high %v632, %v632
        %v641 = vcombine.high %v639, %v639
        %v642 = vlaneseq
        %v643 = vshrl.u32 %v642, 7
        %v644 = vsub.s32 0, %v643
        %v645 = vrot.slane %v632, %v644
        %v646 = vlaneseq
        %v647 = vshrl.u32 %v646, 7
        %v648 = vsub.s32 0, %v647
        %v649 = vrot.slane %v639, %v648
        %v650 = vlaneseq
        %v651 = vshrl.u32 %v650, 7
        %v652 = vsub.s32 0, %v651
        %v653 = vrot.slane %v640, %v652
        %v654 = vlaneseq
        %v655 = vshrl.u32 %v654, 7
        %v656 = vsub.s32 0, %v655
        %v657 = vrot.slane %v641, %v656
        %v662 = vmul.f32 %v588, %v645
        %v663 = vmul.f32 %v589, %v645
        %v664 = vmul.f32 %v590, %v649
        %v665 = vmul.f32 %v591, %v649
        %v666 = vmul.f32 %v592, %v653
        %v667 = vmul.f32 %v593, %v653
        %v668 = vmul.f32 %v594, %v657
        %v669 = vmul.f32 %v595, %v657
        %vm670 = vcmask 130048
        %v671 = vsel %vm670, %v662, 0.0
        %672 = vadd.xlane.f32.xlu0 %v671
        %v673 = vpop.xlane.xlu0 %672
        %v674 = vsel %vm670, %v663, 0.0
        %675 = vadd.xlane.f32.xlu0 %v674
        %v676 = vpop.xlane.xlu0 %675
        %v677 = vsel %vm670, %v664, 0.0
        %678 = vadd.xlane.f32.xlu0 %v677
        %v679 = vpop.xlane.xlu0 %678
        %v680 = vsel %vm670, %v665, 0.0
        %681 = vadd.xlane.f32.xlu0 %v680
        %v682 = vpop.xlane.xlu0 %681
        %v683 = vsel %vm670, %v666, 0.0
        %684 = vadd.xlane.f32.xlu0 %v683
        %v685 = vpop.xlane.xlu0 %684
        %v686 = vsel %vm670, %v667, 0.0
        %687 = vadd.xlane.f32.xlu0 %v686
        %v688 = vpop.xlane.xlu0 %687
        %v689 = vsel %vm670, %v668, 0.0
        %690 = vadd.xlane.f32.xlu0 %v689
        %v691 = vpop.xlane.xlu0 %690
        %v692 = vsel %vm670, %v669, 0.0
        %693 = vadd.xlane.f32.xlu0 %v692
        %v694 = vpop.xlane.xlu0 %693
        %v697 = vunpack.c.l.s4 1966171168
        %v698 = vunpack.c.0.s8 %v697
        %v699 = vlaneseq
        %v700 = vshrl.u32 %v699, 7
        %v701 = vsub.s32 %v698, %v700
        %v702 = vrot.slane %v598, %v701
        %v703 = vcombine.high %v702, %v702
        %v705 = vunpack.c.l.s4 1966171168
        %v706 = vunpack.c.0.s8 %v705
        %v707 = vlaneseq
        %v708 = vshrl.u32 %v707, 7
        %v709 = vsub.s32 %v706, %v708
        %v710 = vrot.slane %v702, %v709
        %v712 = vunpack.c.l.s4 1966171168
        %v713 = vunpack.c.0.s8 %v712
        %v714 = vlaneseq
        %v715 = vshrl.u32 %v714, 7
        %v716 = vsub.s32 %v713, %v715
        %v717 = vrot.slane %v703, %v716
        %v718 = vcombine.high %v710, %v710
        %v719 = vcombine.high %v717, %v717
        %v720 = vlaneseq
        %v721 = vshrl.u32 %v720, 7
        %v722 = vsub.s32 0, %v721
        %v723 = vrot.slane %v710, %v722
        %v724 = vlaneseq
        %v725 = vshrl.u32 %v724, 7
        %v726 = vsub.s32 0, %v725
        %v727 = vrot.slane %v717, %v726
        %v728 = vlaneseq
        %v729 = vshrl.u32 %v728, 7
        %v730 = vsub.s32 0, %v729
        %v731 = vrot.slane %v718, %v730
        %v732 = vlaneseq
        %v733 = vshrl.u32 %v732, 7
        %v734 = vsub.s32 0, %v733
        %v735 = vrot.slane %v719, %v734
        %v740 = vmul.f32 %v588, %v723
        %v741 = vmul.f32 %v589, %v723
        %v742 = vmul.f32 %v590, %v727
        %v743 = vmul.f32 %v591, %v727
        %v744 = vmul.f32 %v592, %v731
        %v745 = vmul.f32 %v593, %v731
        %v746 = vmul.f32 %v594, %v735
        %v747 = vmul.f32 %v595, %v735
        %v748 = vlaneseq
        %v749 = vshrl.u32 %v748, 7
        %v750 = vsub.s32 0, %v749
        %v751 = vrot.slane %v608, %v750
        %753 = vbcast.lane.b32.xlu0 %v751, 256
        %v754 = vpop.permute.xlu0 %753
        %s756 = sor.u32 256, 8
        %757 = vbcast.lane.b32.xlu0 %v751, %s756
        %v758 = vpop.permute.xlu0 %757
        %v759 = vlaneseq
        %v760 = vshrl.u32 %v759, 7
        %v761 = vsub.s32 1, %v760
        %v762 = vrot.slane %v608, %v761
        %764 = vbcast.lane.b32.xlu0 %v762, 256
        %v765 = vpop.permute.xlu0 %764
        %s767 = sor.u32 256, 8
        %768 = vbcast.lane.b32.xlu0 %v762, %s767
        %v769 = vpop.permute.xlu0 %768
        %v770 = vlaneseq
        %v771 = vshrl.u32 %v770, 7
        %v772 = vsub.s32 2, %v771
        %v773 = vrot.slane %v608, %v772
        %775 = vbcast.lane.b32.xlu0 %v773, 256
        %v776 = vpop.permute.xlu0 %775
        %s778 = sor.u32 256, 8
        %779 = vbcast.lane.b32.xlu0 %v773, %s778
        %v780 = vpop.permute.xlu0 %779
        %v781 = vlaneseq
        %v782 = vshrl.u32 %v781, 7
        %v783 = vsub.s32 3, %v782
        %v784 = vrot.slane %v608, %v783
        %786 = vbcast.lane.b32.xlu0 %v784, 256
        %v787 = vpop.permute.xlu0 %786
        %s789 = sor.u32 256, 8
        %790 = vbcast.lane.b32.xlu0 %v784, %s789
        %v791 = vpop.permute.xlu0 %790
        %v794 = vunpack.c.l.s4 1966171168
        %v795 = vunpack.c.0.s8 %v794
        %v796 = vlaneseq
        %v797 = vshrl.u32 %v796, 7
        %v798 = vsub.s32 %v795, %v797
        %v799 = vrot.slane %v606, %v798
        %v800 = vcombine.high %v799, %v799
        %v802 = vunpack.c.l.s4 1966171168
        %v803 = vunpack.c.0.s8 %v802
        %v804 = vlaneseq
        %v805 = vshrl.u32 %v804, 7
        %v806 = vsub.s32 %v803, %v805
        %v807 = vrot.slane %v799, %v806
        %v809 = vunpack.c.l.s4 1966171168
        %v810 = vunpack.c.0.s8 %v809
        %v811 = vlaneseq
        %v812 = vshrl.u32 %v811, 7
        %v813 = vsub.s32 %v810, %v812
        %v814 = vrot.slane %v800, %v813
        %v815 = vcombine.high %v807, %v807
        %v816 = vcombine.high %v814, %v814
        %v817 = vlaneseq
        %v818 = vshrl.u32 %v817, 7
        %v819 = vsub.s32 0, %v818
        %v820 = vrot.slane %v807, %v819
        %v821 = vlaneseq
        %v822 = vshrl.u32 %v821, 7
        %v823 = vsub.s32 0, %v822
        %v824 = vrot.slane %v814, %v823
        %v825 = vlaneseq
        %v826 = vshrl.u32 %v825, 7
        %v827 = vsub.s32 0, %v826
        %v828 = vrot.slane %v815, %v827
        %v829 = vlaneseq
        %v830 = vshrl.u32 %v829, 7
        %v831 = vsub.s32 0, %v830
        %v832 = vrot.slane %v816, %v831
        %v837 = vmul.f32 %v754, %v820
        %v838 = vmul.f32 %v758, %v820
        %v839 = vmul.f32 %v765, %v824
        %v840 = vmul.f32 %v769, %v824
        %v841 = vmul.f32 %v776, %v828
        %v842 = vmul.f32 %v780, %v828
        %v843 = vmul.f32 %v787, %v832
        %v844 = vmul.f32 %v791, %v832
        %v845 = vadd.f32 %v740, %v837
        %v846 = vadd.f32 %v741, %v838
        %v847 = vadd.f32 %v742, %v839
        %v848 = vadd.f32 %v743, %v840
        %v849 = vadd.f32 %v744, %v841
        %v850 = vadd.f32 %v745, %v842
        %v851 = vadd.f32 %v746, %v843
        %v852 = vadd.f32 %v747, %v844
        %v855 = vunpack.c.l.s4 1966171168
        %v856 = vunpack.c.0.s8 %v855
        %v857 = vlaneseq
        %v858 = vshrl.u32 %v857, 7
        %v859 = vsub.s32 %v856, %v858
        %v860 = vrot.slane %v616, %v859
        %v861 = vcombine.high %v860, %v860
        %v863 = vunpack.c.l.s4 1966171168
        %v864 = vunpack.c.0.s8 %v863
        %v865 = vlaneseq
        %v866 = vshrl.u32 %v865, 7
        %v867 = vsub.s32 %v864, %v866
        %v868 = vrot.slane %v860, %v867
        %v870 = vunpack.c.l.s4 1966171168
        %v871 = vunpack.c.0.s8 %v870
        %v872 = vlaneseq
        %v873 = vshrl.u32 %v872, 7
        %v874 = vsub.s32 %v871, %v873
        %v875 = vrot.slane %v861, %v874
        %v876 = vcombine.high %v868, %v868
        %v877 = vcombine.high %v875, %v875
        %v878 = vlaneseq
        %v879 = vshrl.u32 %v878, 7
        %v880 = vsub.s32 0, %v879
        %v881 = vrot.slane %v868, %v880
        %v882 = vlaneseq
        %v883 = vshrl.u32 %v882, 7
        %v884 = vsub.s32 0, %v883
        %v885 = vrot.slane %v875, %v884
        %v886 = vlaneseq
        %v887 = vshrl.u32 %v886, 7
        %v888 = vsub.s32 0, %v887
        %v889 = vrot.slane %v876, %v888
        %v890 = vlaneseq
        %v891 = vshrl.u32 %v890, 7
        %v892 = vsub.s32 0, %v891
        %v893 = vrot.slane %v877, %v892
        %v898 = vmul.f32 %v673, %v881
        %v899 = vmul.f32 %v676, %v881
        %v900 = vmul.f32 %v679, %v885
        %v901 = vmul.f32 %v682, %v885
        %v902 = vmul.f32 %v685, %v889
        %v903 = vmul.f32 %v688, %v889
        %v904 = vmul.f32 %v691, %v893
        %v905 = vmul.f32 %v694, %v893
        %v906 = vadd.f32 %v845, %v898
        %v907 = vadd.f32 %v846, %v899
        %v908 = vadd.f32 %v847, %v900
        %v909 = vadd.f32 %v848, %v901
        %v910 = vadd.f32 %v849, %v902
        %v911 = vadd.f32 %v850, %v903
        %v912 = vadd.f32 %v851, %v904
        %v913 = vadd.f32 %v852, %v905
        %v916 = vunpack.c.l.s4 1966171168
        %v917 = vunpack.c.0.s8 %v916
        %v918 = vlaneseq
        %v919 = vshrl.u32 %v918, 7
        %v920 = vsub.s32 %v917, %v919
        %v921 = vrot.slane %v602, %v920
        %v922 = vcombine.high %v921, %v921
        %v924 = vunpack.c.l.s4 1966171168
        %v925 = vunpack.c.0.s8 %v924
        %v926 = vlaneseq
        %v927 = vshrl.u32 %v926, 7
        %v928 = vsub.s32 %v925, %v927
        %v929 = vrot.slane %v921, %v928
        %v931 = vunpack.c.l.s4 1966171168
        %v932 = vunpack.c.0.s8 %v931
        %v933 = vlaneseq
        %v934 = vshrl.u32 %v933, 7
        %v935 = vsub.s32 %v932, %v934
        %v936 = vrot.slane %v922, %v935
        %v937 = vcombine.high %v929, %v929
        %v938 = vcombine.high %v936, %v936
        %v939 = vlaneseq
        %v940 = vshrl.u32 %v939, 7
        %v941 = vsub.s32 0, %v940
        %v942 = vrot.slane %v929, %v941
        %v943 = vlaneseq
        %v944 = vshrl.u32 %v943, 7
        %v945 = vsub.s32 0, %v944
        %v946 = vrot.slane %v936, %v945
        %v947 = vlaneseq
        %v948 = vshrl.u32 %v947, 7
        %v949 = vsub.s32 0, %v948
        %v950 = vrot.slane %v937, %v949
        %v951 = vlaneseq
        %v952 = vshrl.u32 %v951, 7
        %v953 = vsub.s32 0, %v952
        %v954 = vrot.slane %v938, %v953
        %v959 = vmul.f32 %v906, %v942
        %v960 = vmul.f32 %v907, %v942
        %v961 = vmul.f32 %v908, %v946
        %v962 = vmul.f32 %v909, %v946
        %v963 = vmul.f32 %v910, %v950
        %v964 = vmul.f32 %v911, %v950
        %v965 = vmul.f32 %v912, %v954
        %v966 = vmul.f32 %v913, %v954
        %v967 = vsel %vm670, %v959, 0.0
        %968 = vadd.xlane.f32.xlu0 %v967
        %v969 = vpop.xlane.xlu0 %968
        %v970 = vsel %vm670, %v960, 0.0
        %971 = vadd.xlane.f32.xlu0 %v970
        %v972 = vpop.xlane.xlu0 %971
        %v973 = vsel %vm670, %v961, 0.0
        %974 = vadd.xlane.f32.xlu0 %v973
        %v975 = vpop.xlane.xlu0 %974
        %v976 = vsel %vm670, %v962, 0.0
        %977 = vadd.xlane.f32.xlu0 %v976
        %v978 = vpop.xlane.xlu0 %977
        %v979 = vsel %vm670, %v963, 0.0
        %980 = vadd.xlane.f32.xlu0 %v979
        %v981 = vpop.xlane.xlu0 %980
        %v982 = vsel %vm670, %v964, 0.0
        %983 = vadd.xlane.f32.xlu0 %v982
        %v984 = vpop.xlane.xlu0 %983
        %v985 = vsel %vm670, %v965, 0.0
        %986 = vadd.xlane.f32.xlu0 %v985
        %v987 = vpop.xlane.xlu0 %986
        %v988 = vsel %vm670, %v966, 0.0
        %989 = vadd.xlane.f32.xlu0 %v988
        %v990 = vpop.xlane.xlu0 %989
        %v999 = vlaneseq
        %v1000 = vand.u32 %v999, 127
        %v1001 = vlaneseq
        %v1002 = vshrl.u32 %v1001, 7
        %v1003 = vsub.s32 %v1000, %v1002
        %v1004 = vrot.slane %v969, %v1003
        %v1005 = vadd.s32 %v1000, 4294967288
        %v1006 = vlaneseq
        %v1007 = vshrl.u32 %v1006, 7
        %v1008 = vsub.s32 %v1005, %v1007
        %v1009 = vrot.slane %v972, %v1008
        %vm1010 = vcmask 130112
        %v1011 = vsel %vm1010, %v1009, %v1004
        %v1012 = vlaneseq
        %v1013 = vshrl.u32 %v1012, 7
        %v1014 = vsub.s32 %v1000, %v1013
        %v1015 = vrot.slane %v975, %v1014
        %v1016 = vlaneseq
        %v1017 = vshrl.u32 %v1016, 7
        %v1018 = vsub.s32 %v1005, %v1017
        %v1019 = vrot.slane %v978, %v1018
        %v1020 = vsel %vm1010, %v1019, %v1015
        %v1021 = vlaneseq
        %v1022 = vshrl.u32 %v1021, 7
        %v1023 = vsub.s32 %v1000, %v1022
        %v1024 = vrot.slane %v981, %v1023
        %v1025 = vlaneseq
        %v1026 = vshrl.u32 %v1025, 7
        %v1027 = vsub.s32 %v1005, %v1026
        %v1028 = vrot.slane %v984, %v1027
        %v1029 = vsel %vm1010, %v1028, %v1024
        %v1030 = vlaneseq
        %v1031 = vshrl.u32 %v1030, 7
        %v1032 = vsub.s32 %v1000, %v1031
        %v1033 = vrot.slane %v987, %v1032
        %v1034 = vlaneseq
        %v1035 = vshrl.u32 %v1034, 7
        %v1036 = vsub.s32 %v1005, %v1035
        %v1037 = vrot.slane %v990, %v1036
        %v1038 = vsel %vm1010, %v1037, %v1033
        %vm1039 = vcmask 1041409
        %v1040 = vsel %vm1039, %v1020, %v1011
        %vm1041 = vcmask 1042434
        %v1042 = vsel %vm1041, %v1029, %v1040
        %vm1043 = vcmask 1043459
        %v1044 = vsel %vm1043, %v1038, %v1042
        %s1046 = scalar_lea.vmem [#allocation3], %s596
        %vm1047 = vcmask 125952
        %1048 = vst.msk [vmem:[%s1046] sm:$0xf] %vm1047, %v1044
      $region61: #{rwkv_tmix_forward.4} parent=51 // loop_footer
        %s587 = sadd.s32 1, %s583
      $region62: #{rwkv_tmix_forward.4} parent=51 // loop_footer_branch
        %582 = sbr.rel target = $region58
      $region63: #{rwkv_tmix_forward.4} parent=51 // loop_exit
        _
      %vm1049 = vcmask 130048
      %1050 = vst.msk [vmem:[#allocation2] sm:$0xff] %vm1049, %v588
      %1051 = vst.msk [vmem:[#allocation2 + $0x8] sm:$0xff] %vm1049, %v589
      %1052 = vst.msk [vmem:[#allocation2 + $0x10] sm:$0xff] %vm1049, %v590
      %1053 = vst.msk [vmem:[#allocation2 + $0x18] sm:$0xff] %vm1049, %v591
      %1054 = vst.msk [vmem:[#allocation2 + $0x20] sm:$0xff] %vm1049, %v592
      %1055 = vst.msk [vmem:[#allocation2 + $0x28] sm:$0xff] %vm1049, %v593
      %1056 = vst.msk [vmem:[#allocation2 + $0x30] sm:$0xff] %vm1049, %v594
      %1057 = vst.msk [vmem:[#allocation2 + $0x38] sm:$0xff] %vm1049, %v595
      %v1058 = vld [vmem:[%s499] sm:$0x3]
      %v1059 = vld [vmem:[%s499 + $0x2] sm:$0x3]
      %v1060 = vld [vmem:[%s499 + $0x4] sm:$0x3]
      %v1061 = vld [vmem:[%s499 + $0x6] sm:$0x3]
      %v1062 = vld [vmem:[%s499 + $0x8] sm:$0x3]
      %v1063 = vld [vmem:[%s499 + $0xa] sm:$0x3]
      %v1064 = vld [vmem:[%s499 + $0xc] sm:$0x3]
      %v1065 = vld [vmem:[%s499 + $0xe] sm:$0x3]
      %v1066 = vld [vmem:[%s499 + $0x10] sm:$0x3]
      %v1067 = vld [vmem:[%s499 + $0x12] sm:$0x3]
      %v1068 = vld [vmem:[%s499 + $0x14] sm:$0x3]
      %v1069 = vld [vmem:[%s499 + $0x16] sm:$0x3]
      %v1070 = vld [vmem:[%s499 + $0x18] sm:$0x3]
      %v1071 = vld [vmem:[%s499 + $0x1a] sm:$0x3]
      %v1072 = vld [vmem:[%s499 + $0x1c] sm:$0x3]
      %v1073 = vld [vmem:[%s499 + $0x1e] sm:$0x3]
      %v1074 = vunpack.c.l.bf16 %v1058
      %v1075 = vunpack.c.l.bf16 %v1059
      %v1076 = vunpack.c.l.bf16 %v1060
      %v1077 = vunpack.c.l.bf16 %v1061
      %v1078 = vunpack.c.l.bf16 %v1062
      %v1079 = vunpack.c.l.bf16 %v1063
      %v1080 = vunpack.c.l.bf16 %v1064
      %v1081 = vunpack.c.l.bf16 %v1065
      %v1082 = vunpack.c.l.bf16 %v1066
      %v1083 = vunpack.c.l.bf16 %v1067
      %v1084 = vunpack.c.l.bf16 %v1068
      %v1085 = vunpack.c.l.bf16 %v1069
      %v1086 = vunpack.c.l.bf16 %v1070
      %v1087 = vunpack.c.l.bf16 %v1071
      %v1088 = vunpack.c.l.bf16 %v1072
      %v1089 = vunpack.c.l.bf16 %v1073
      %v1090 = vld [vmem:[%s509] sm:$0x3]
      %v1091 = vld [vmem:[%s509 + $0x2] sm:$0x3]
      %v1092 = vld [vmem:[%s509 + $0x4] sm:$0x3]
      %v1093 = vld [vmem:[%s509 + $0x6] sm:$0x3]
      %v1094 = vld [vmem:[%s509 + $0x8] sm:$0x3]
      %v1095 = vld [vmem:[%s509 + $0xa] sm:$0x3]
      %v1096 = vld [vmem:[%s509 + $0xc] sm:$0x3]
      %v1097 = vld [vmem:[%s509 + $0xe] sm:$0x3]
      %v1098 = vld [vmem:[%s509 + $0x10] sm:$0x3]
      %v1099 = vld [vmem:[%s509 + $0x12] sm:$0x3]
      %v1100 = vld [vmem:[%s509 + $0x14] sm:$0x3]
      %v1101 = vld [vmem:[%s509 + $0x16] sm:$0x3]
      %v1102 = vld [vmem:[%s509 + $0x18] sm:$0x3]
      %v1103 = vld [vmem:[%s509 + $0x1a] sm:$0x3]
      %v1104 = vld [vmem:[%s509 + $0x1c] sm:$0x3]
      %v1105 = vld [vmem:[%s509 + $0x1e] sm:$0x3]
      %v1106 = vunpack.c.l.bf16 %v1090
      %v1107 = vunpack.c.l.bf16 %v1091
      %v1108 = vunpack.c.l.bf16 %v1092
      %v1109 = vunpack.c.l.bf16 %v1093
      %v1110 = vunpack.c.l.bf16 %v1094
      %v1111 = vunpack.c.l.bf16 %v1095
      %v1112 = vunpack.c.l.bf16 %v1096
      %v1113 = vunpack.c.l.bf16 %v1097
      %v1114 = vunpack.c.l.bf16 %v1098
      %v1115 = vunpack.c.l.bf16 %v1099
      %v1116 = vunpack.c.l.bf16 %v1100
      %v1117 = vunpack.c.l.bf16 %v1101
      %v1118 = vunpack.c.l.bf16 %v1102
      %v1119 = vunpack.c.l.bf16 %v1103
      %v1120 = vunpack.c.l.bf16 %v1104
      %v1121 = vunpack.c.l.bf16 %v1105
      %v1122 = vld [vmem:[%s519] sm:$0xf]
      %v1123 = vld [vmem:[%s519 + $0x4] sm:$0xf]
      %v1124 = vld [vmem:[%s519 + $0x8] sm:$0xf]
      %v1125 = vld [vmem:[%s519 + $0xc] sm:$0xf]
      %v1126 = vld [vmem:[%s519 + $0x10] sm:$0xf]
      %v1127 = vld [vmem:[%s519 + $0x14] sm:$0xf]
      %v1128 = vld [vmem:[%s519 + $0x18] sm:$0xf]
      %v1129 = vld [vmem:[%s519 + $0x1c] sm:$0xf]
      %v1130 = vld [vmem:[%s519 + $0x20] sm:$0xf]
      %v1131 = vld [vmem:[%s519 + $0x24] sm:$0xf]
      %v1132 = vld [vmem:[%s519 + $0x28] sm:$0xf]
      %v1133 = vld [vmem:[%s519 + $0x2c] sm:$0xf]
      %v1134 = vld [vmem:[%s519 + $0x30] sm:$0xf]
      %v1135 = vld [vmem:[%s519 + $0x34] sm:$0xf]
      %v1136 = vld [vmem:[%s519 + $0x38] sm:$0xf]
      %v1137 = vld [vmem:[%s519 + $0x3c] sm:$0xf]
      %v1138 = vmul.f32 %v1074, %v1106
      %v1139 = vmul.f32 %v1075, %v1107
      %v1140 = vmul.f32 %v1076, %v1108
      %v1141 = vmul.f32 %v1077, %v1109
      %v1142 = vmul.f32 %v1078, %v1110
      %v1143 = vmul.f32 %v1079, %v1111
      %v1144 = vmul.f32 %v1080, %v1112
      %v1145 = vmul.f32 %v1081, %v1113
      %v1146 = vmul.f32 %v1082, %v1114
      %v1147 = vmul.f32 %v1083, %v1115
      %v1148 = vmul.f32 %v1084, %v1116
      %v1149 = vmul.f32 %v1085, %v1117
      %v1150 = vmul.f32 %v1086, %v1118
      %v1151 = vmul.f32 %v1087, %v1119
      %v1152 = vmul.f32 %v1088, %v1120
      %v1153 = vmul.f32 %v1089, %v1121
      %v1154 = vld [vmem:[%s0] sm:$0xf]
      %v1155 = vmul.f32 %v1138, %v1154
      %v1156 = vmul.f32 %v1139, %v1154
      %v1157 = vmul.f32 %v1140, %v1154
      %v1158 = vmul.f32 %v1141, %v1154
      %v1159 = vmul.f32 %v1142, %v1154
      %v1160 = vmul.f32 %v1143, %v1154
      %v1161 = vmul.f32 %v1144, %v1154
      %v1162 = vmul.f32 %v1145, %v1154
      %v1163 = vmul.f32 %v1146, %v1154
      %v1164 = vmul.f32 %v1147, %v1154
      %v1165 = vmul.f32 %v1148, %v1154
      %v1166 = vmul.f32 %v1149, %v1154
      %v1167 = vmul.f32 %v1150, %v1154
      %v1168 = vmul.f32 %v1151, %v1154
      %v1169 = vmul.f32 %v1152, %v1154
      %v1170 = vmul.f32 %v1153, %v1154
      %vm1171 = vcmask 125952
      %v1172 = vsel %vm1171, %v1155, 0.0
      %1173 = vadd.xlane.f32.xlu0 %v1172
      %v1174 = vpop.xlane.xlu0 %1173
      %v1175 = vsel %vm1171, %v1156, 0.0
      %1176 = vadd.xlane.f32.xlu0 %v1175
      %v1177 = vpop.xlane.xlu0 %1176
      %v1178 = vsel %vm1171, %v1157, 0.0
      %1179 = vadd.xlane.f32.xlu0 %v1178
      %v1180 = vpop.xlane.xlu0 %1179
      %v1181 = vsel %vm1171, %v1158, 0.0
      %1182 = vadd.xlane.f32.xlu0 %v1181
      %v1183 = vpop.xlane.xlu0 %1182
      %v1184 = vsel %vm1171, %v1159, 0.0
      %1185 = vadd.xlane.f32.xlu0 %v1184
      %v1186 = vpop.xlane.xlu0 %1185
      %v1187 = vsel %vm1171, %v1160, 0.0
      %1188 = vadd.xlane.f32.xlu0 %v1187
      %v1189 = vpop.xlane.xlu0 %1188
      %v1190 = vsel %vm1171, %v1161, 0.0
      %1191 = vadd.xlane.f32.xlu0 %v1190
      %v1192 = vpop.xlane.xlu0 %1191
      %v1193 = vsel %vm1171, %v1162, 0.0
      %1194 = vadd.xlane.f32.xlu0 %v1193
      %v1195 = vpop.xlane.xlu0 %1194
      %v1196 = vsel %vm1171, %v1163, 0.0
      %1197 = vadd.xlane.f32.xlu0 %v1196
      %v1198 = vpop.xlane.xlu0 %1197
      %v1199 = vsel %vm1171, %v1164, 0.0
      %1200 = vadd.xlane.f32.xlu0 %v1199
      %v1201 = vpop.xlane.xlu0 %1200
      %v1202 = vsel %vm1171, %v1165, 0.0
      %1203 = vadd.xlane.f32.xlu0 %v1202
      %v1204 = vpop.xlane.xlu0 %1203
      %v1205 = vsel %vm1171, %v1166, 0.0
      %1206 = vadd.xlane.f32.xlu0 %v1205
      %v1207 = vpop.xlane.xlu0 %1206
      %v1208 = vsel %vm1171, %v1167, 0.0
      %1209 = vadd.xlane.f32.xlu0 %v1208
      %v1210 = vpop.xlane.xlu0 %1209
      %v1211 = vsel %vm1171, %v1168, 0.0
      %1212 = vadd.xlane.f32.xlu0 %v1211
      %v1213 = vpop.xlane.xlu0 %1212
      %v1214 = vsel %vm1171, %v1169, 0.0
      %1215 = vadd.xlane.f32.xlu0 %v1214
      %v1216 = vpop.xlane.xlu0 %1215
      %v1217 = vsel %vm1171, %v1170, 0.0
      %1218 = vadd.xlane.f32.xlu0 %v1217
      %v1219 = vpop.xlane.xlu0 %1218
      %v1220 = vmul.f32 %v1174, %v1122
      %v1221 = vmul.f32 %v1177, %v1123
      %v1222 = vmul.f32 %v1180, %v1124
      %v1223 = vmul.f32 %v1183, %v1125
      %v1224 = vmul.f32 %v1186, %v1126
      %v1225 = vmul.f32 %v1189, %v1127
      %v1226 = vmul.f32 %v1192, %v1128
      %v1227 = vmul.f32 %v1195, %v1129
      %v1228 = vmul.f32 %v1198, %v1130
      %v1229 = vmul.f32 %v1201, %v1131
      %v1230 = vmul.f32 %v1204, %v1132
      %v1231 = vmul.f32 %v1207, %v1133
      %v1232 = vmul.f32 %v1210, %v1134
      %v1233 = vmul.f32 %v1213, %v1135
      %v1234 = vmul.f32 %v1216, %v1136
      %v1235 = vmul.f32 %v1219, %v1137
      %v1236 = vld [vmem:[#allocation3] sm:$0xf]
      %v1237 = vld [vmem:[#allocation3 + $0x4] sm:$0xf]
      %v1238 = vld [vmem:[#allocation3 + $0x8] sm:$0xf]
      %v1239 = vld [vmem:[#allocation3 + $0xc] sm:$0xf]
      %v1240 = vld [vmem:[#allocation3 + $0x10] sm:$0xf]
      %v1241 = vld [vmem:[#allocation3 + $0x14] sm:$0xf]
      %v1242 = vld [vmem:[#allocation3 + $0x18] sm:$0xf]
      %v1243 = vld [vmem:[#allocation3 + $0x1c] sm:$0xf]
      %v1244 = vld [vmem:[#allocation3 + $0x20] sm:$0xf]
      %v1245 = vld [vmem:[#allocation3 + $0x24] sm:$0xf]
      %v1246 = vld [vmem:[#allocation3 + $0x28] sm:$0xf]
      %v1247 = vld [vmem:[#allocation3 + $0x2c] sm:$0xf]
      %v1248 = vld [vmem:[#allocation3 + $0x30] sm:$0xf]
      %v1249 = vld [vmem:[#allocation3 + $0x34] sm:$0xf]
      %v1250 = vld [vmem:[#allocation3 + $0x38] sm:$0xf]
      %v1251 = vld [vmem:[#allocation3 + $0x3c] sm:$0xf]
      %v1252 = vadd.f32 %v1236, %v1220
      %v1253 = vadd.f32 %v1237, %v1221
      %v1254 = vadd.f32 %v1238, %v1222
      %v1255 = vadd.f32 %v1239, %v1223
      %v1256 = vadd.f32 %v1240, %v1224
      %v1257 = vadd.f32 %v1241, %v1225
      %v1258 = vadd.f32 %v1242, %v1226
      %v1259 = vadd.f32 %v1243, %v1227
      %v1260 = vadd.f32 %v1244, %v1228
      %v1261 = vadd.f32 %v1245, %v1229
      %v1262 = vadd.f32 %v1246, %v1230
      %v1263 = vadd.f32 %v1247, %v1231
      %v1264 = vadd.f32 %v1248, %v1232
      %v1265 = vadd.f32 %v1249, %v1233
      %v1266 = vadd.f32 %v1250, %v1234
      %v1267 = vadd.f32 %v1251, %v1235
      %v1268 = vld [vmem:[%s549] sm:$0x3]
      %v1269 = vld [vmem:[%s549 + $0x2] sm:$0x3]
      %v1270 = vld [vmem:[%s549 + $0x4] sm:$0x3]
      %v1271 = vld [vmem:[%s549 + $0x6] sm:$0x3]
      %v1272 = vld [vmem:[%s549 + $0x8] sm:$0x3]
      %v1273 = vld [vmem:[%s549 + $0xa] sm:$0x3]
      %v1274 = vld [vmem:[%s549 + $0xc] sm:$0x3]
      %v1275 = vld [vmem:[%s549 + $0xe] sm:$0x3]
      %v1276 = vld [vmem:[%s549 + $0x10] sm:$0x3]
      %v1277 = vld [vmem:[%s549 + $0x12] sm:$0x3]
      %v1278 = vld [vmem:[%s549 + $0x14] sm:$0x3]
      %v1279 = vld [vmem:[%s549 + $0x16] sm:$0x3]
      %v1280 = vld [vmem:[%s549 + $0x18] sm:$0x3]
      %v1281 = vld [vmem:[%s549 + $0x1a] sm:$0x3]
      %v1282 = vld [vmem:[%s549 + $0x1c] sm:$0x3]
      %v1283 = vld [vmem:[%s549 + $0x1e] sm:$0x3]
      %v1284 = vunpack.c.l.bf16 %v1268
      %v1285 = vunpack.c.l.bf16 %v1269
      %v1286 = vunpack.c.l.bf16 %v1270
      %v1287 = vunpack.c.l.bf16 %v1271
      %v1288 = vunpack.c.l.bf16 %v1272
      %v1289 = vunpack.c.l.bf16 %v1273
      %v1290 = vunpack.c.l.bf16 %v1274
      %v1291 = vunpack.c.l.bf16 %v1275
      %v1292 = vunpack.c.l.bf16 %v1276
      %v1293 = vunpack.c.l.bf16 %v1277
      %v1294 = vunpack.c.l.bf16 %v1278
      %v1295 = vunpack.c.l.bf16 %v1279
      %v1296 = vunpack.c.l.bf16 %v1280
      %v1297 = vunpack.c.l.bf16 %v1281
      %v1298 = vunpack.c.l.bf16 %v1282
      %v1299 = vunpack.c.l.bf16 %v1283
      %v1300 = vmul.f32 %v1252, %v1284
      %v1301 = vmul.f32 %v1253, %v1285
      %v1302 = vmul.f32 %v1254, %v1286
      %v1303 = vmul.f32 %v1255, %v1287
      %v1304 = vmul.f32 %v1256, %v1288
      %v1305 = vmul.f32 %v1257, %v1289
      %v1306 = vmul.f32 %v1258, %v1290
      %v1307 = vmul.f32 %v1259, %v1291
      %v1308 = vmul.f32 %v1260, %v1292
      %v1309 = vmul.f32 %v1261, %v1293
      %v1310 = vmul.f32 %v1262, %v1294
      %v1311 = vmul.f32 %v1263, %v1295
      %v1312 = vmul.f32 %v1264, %v1296
      %v1313 = vmul.f32 %v1265, %v1297
      %v1314 = vmul.f32 %v1266, %v1298
      %v1315 = vmul.f32 %v1267, %v1299
      %v1316 = vpack.c.bf16 %v1300, %v1300
      %v1317 = vpack.c.bf16 %v1301, %v1301
      %v1318 = vpack.c.bf16 %v1302, %v1302
      %v1319 = vpack.c.bf16 %v1303, %v1303
      %v1320 = vpack.c.bf16 %v1304, %v1304
      %v1321 = vpack.c.bf16 %v1305, %v1305
      %v1322 = vpack.c.bf16 %v1306, %v1306
      %v1323 = vpack.c.bf16 %v1307, %v1307
      %v1324 = vpack.c.bf16 %v1308, %v1308
      %v1325 = vpack.c.bf16 %v1309, %v1309
      %v1326 = vpack.c.bf16 %v1310, %v1310
      %v1327 = vpack.c.bf16 %v1311, %v1311
      %v1328 = vpack.c.bf16 %v1312, %v1312
      %v1329 = vpack.c.bf16 %v1313, %v1313
      %v1330 = vpack.c.bf16 %v1314, %v1314
      %v1331 = vpack.c.bf16 %v1315, %v1315
      %vm1332 = vcmask 123904
      %1333 = vst.msk [vmem:[%s559] sm:$0x3] %vm1332, %v1316
      %1334 = vst.msk [vmem:[%s559 + $0x2] sm:$0x3] %vm1332, %v1317
      %1335 = vst.msk [vmem:[%s559 + $0x4] sm:$0x3] %vm1332, %v1318
      %1336 = vst.msk [vmem:[%s559 + $0x6] sm:$0x3] %vm1332, %v1319
      %1337 = vst.msk [vmem:[%s559 + $0x8] sm:$0x3] %vm1332, %v1320
      %1338 = vst.msk [vmem:[%s559 + $0xa] sm:$0x3] %vm1332, %v1321
      %1339 = vst.msk [vmem:[%s559 + $0xc] sm:$0x3] %vm1332, %v1322
      %1340 = vst.msk [vmem:[%s559 + $0xe] sm:$0x3] %vm1332, %v1323
      %1341 = vst.msk [vmem:[%s559 + $0x10] sm:$0x3] %vm1332, %v1324
      %1342 = vst.msk [vmem:[%s559 + $0x12] sm:$0x3] %vm1332, %v1325
      %1343 = vst.msk [vmem:[%s559 + $0x14] sm:$0x3] %vm1332, %v1326
      %1344 = vst.msk [vmem:[%s559 + $0x16] sm:$0x3] %vm1332, %v1327
      %1345 = vst.msk [vmem:[%s559 + $0x18] sm:$0x3] %vm1332, %v1328
      %1346 = vst.msk [vmem:[%s559 + $0x1a] sm:$0x3] %vm1332, %v1329
      %1347 = vst.msk [vmem:[%s559 + $0x1c] sm:$0x3] %vm1332, %v1330
      %1348 = vst.msk [vmem:[%s559 + $0x1e] sm:$0x3] %vm1332, %v1331
      %s1349 = smul.u32 16, %s24
      %p1350 = scmp.lt.s32.totalorder %s23, 1
      %s1351 = scalar_select %p1350, %s23, 1
      %p1352 = scmp.lt.s32.totalorder %s1349, 63
      %s1353 = scalar_select %p1352, %s1349, 63
      %s1354 = smul.addr %s1351, 64
      %s1355 = sadd.s32 %s1353, %s1354
      %s1356 = smul.addr %s1355, 2
      %s1357 = scalar_lea.vmem %s8, %s1356
      // Predicated region
      $region64: #{rwkv_tmix_forward.4} parent=51 // pred_check
        %p1358 = pneg %p268
      $region65: #{rwkv_tmix_forward.4} parent=51 // pred_check_branch
        %1360 = sbr.rel (%p1358) target = $region67
      $region66: #{rwkv_tmix_forward.4} parent=51 // pred_region
        %s1361 = smul.u32 16, %s24
      $region67: #{rwkv_tmix_forward.4} parent=51 // pred_fallthru
        _
    $region52: #{rwkv_tmix_forward.4} parent=5 // pred_fallthru
      _
    %p1362 = scmp.le.s32.totalorder 2, %s14
    // Predicated region
    $region68: #{rwkv_tmix_forward.4} parent=5 // pred_check
      %p1363 = pneg %p1362
    $region69: #{rwkv_tmix_forward.4} parent=5 // pred_check_branch
      %1365 = sbr.rel (%p1363) target = $region71
    $region70: #{rwkv_tmix_forward.4} parent=5 // pred_region
      %s1366 = ssub.s32 %s14, 2
      // Predicated region
      $region72: #{rwkv_tmix_forward.4} parent=70 // pred_check
        %p1367 = pneg %p274
      $region73: #{rwkv_tmix_forward.4} parent=70 // pred_check_branch
        %1369 = sbr.rel (%p1367) target = $region75
      $region74: #{rwkv_tmix_forward.4} parent=70 // pred_region
        %s1370 = smul.u32 16, %s26
        %p1371 = scmp.lt.s32.totalorder %s25, 1
        %s1372 = scalar_select %p1371, %s25, 1
        %p1373 = scmp.lt.s32.totalorder %s1370, 63
        %s1374 = scalar_select %p1373, %s1370, 63
        %s1375 = smul.addr %s1372, 64
        %s1376 = sadd.s32 %s1374, %s1375
        %s1377 = smul.addr %s1376, 2
        %s1378 = scalar_lea.vmem %s8, %s1377
      $region75: #{rwkv_tmix_forward.4} parent=70 // pred_fallthru
        _
    $region71: #{rwkv_tmix_forward.4} parent=5 // pred_fallthru
      _
  $region6: #{rwkv_tmix_forward.4} parent=0 // loop_footer
    %s18 = sadd.s32 1, %s14
  $region7: #{rwkv_tmix_forward.4} parent=0 // loop_footer_branch
    %13 = sbr.rel target = $region3
  $region8: #{rwkv_tmix_forward.4} parent=0 // loop_exit
    _

// kernel: rwkv_tmix_forward.3
$region0: #{rwkv_tmix_forward.3}
  #allocation0 [shape = 'u32[]', space=smem, size = 0x4, offset = 0x4, fixed_abs, tag = 'smem constant byte address 0x4 - core index']
  #allocation1 [shape = 'u32[144,128]{1,0:T(1,128)}', space=vmem, size = 0x12000, scoped, tag = 'internal scratch']
  %s0 = inlined_call_operand.vmem [shape: f32[128,64], index: 0, kind: input, shape index: {}]
  %s1 = inlined_call_operand.vmem [shape: f32[128,1], index: 1, kind: input, shape index: {}]
  %s2 = inlined_call_operand.vmem [shape: bf16[64,64], index: 2, kind: input, shape index: {}]
  %s3 = inlined_call_operand.vmem [shape: f32[1,64], index: 3, kind: input, shape index: {}]
  %s4 = inlined_call_operand.vmem [shape: bf16[64,64], index: 4, kind: input, shape index: {}]
  %s5 = inlined_call_operand.vmem [shape: f32[1,64], index: 5, kind: input, shape index: {}]
  %s6 = inlined_call_operand.vmem [shape: bf16[64,64], index: 6, kind: input, shape index: {}]
  %s7 = inlined_call_operand.vmem [shape: f32[1,64], index: 7, kind: input, shape index: {}]
  %s8 = inlined_call_operand.vmem [shape: bf16[64,32], index: 8, kind: input, shape index: {}]
  %s9 = inlined_call_operand.vmem [shape: bf16[32,64], index: 9, kind: input, shape index: {}]
  %s10 = inlined_call_operand.vmem [shape: f32[1,64], index: 10, kind: input, shape index: {}]
  %s11 = inlined_call_operand.vmem [shape: bf16[64,32], index: 11, kind: input, shape index: {}]
  %s12 = inlined_call_operand.vmem [shape: bf16[32,64], index: 12, kind: input, shape index: {}]
  %s13 = inlined_call_operand.vmem [shape: f32[1,64], index: 13, kind: input, shape index: {}]
  %s14 = inlined_call_operand.vmem [shape: bf16[64,32], index: 14, kind: input, shape index: {}]
  %s15 = inlined_call_operand.vmem [shape: bf16[32,64], index: 15, kind: input, shape index: {}]
  %s16 = inlined_call_operand.vmem [shape: f32[1,64], index: 16, kind: input, shape index: {}]
  %s17 = inlined_call_operand.vmem [shape: f32[1,64], index: 17, kind: input, shape index: {}]
  %s18 = inlined_call_operand.vmem [shape: f32[64,4], index: 18, kind: input, shape index: {}]
  %s19 = inlined_call_operand.vmem [shape: f32[4,64], index: 19, kind: input, shape index: {}]
  %s20 = inlined_call_operand.vmem [shape: bf16[128,64], index: 20, kind: output, shape index: {0}]
  %s21 = inlined_call_operand.vmem [shape: f32[128,64], index: 21, kind: output, shape index: {1}]
  %s22 = inlined_call_operand.vmem [shape: bf16[128,64], index: 22, kind: output, shape index: {2}]
  %s23 = inlined_call_operand.vmem [shape: f32[128,64], index: 23, kind: output, shape index: {3}]
  %s24 = inlined_call_operand.vmem [shape: bf16[128,64], index: 24, kind: output, shape index: {4}]
  %s25 = inlined_call_operand.vmem [shape: bf16[128,64], index: 25, kind: output, shape index: {5}]
  %s26 = inlined_call_operand.vmem [shape: bf16[128,64], index: 26, kind: output, shape index: {6}]
  %27 = xla_tuple %s20, %s21, %s22, %s23, %s24, %s25, %s26
  %s28 = sld [smem:[#allocation0]]
  $region161: #{rwkv_tmix_forward.3} parent=0
    _
  %s30 = ssub.s32 1, %s28
  %s31 = scalar_select 0, %s30, %s28
  loop: start=0, step=1, limit=6
  $region2: #{rwkv_tmix_forward.3} parent=0 // loop_pre_header
    _
  $region3: #{rwkv_tmix_forward.3} parent=0 // loop_header
    %s33 = sphi 0, %s37
    %p34 = scmp.ge.s32.totalorder %s33, 6
    %s43 = sphi 0, %s45
    %s46 = sphi 0, %s43
    %s47 = sphi 0, %s46
    %s63 = sphi 0, %s47
    %s69 = sphi 0, %s71
    %s72 = sphi 0, %s69
    %s73 = sphi 0, %s72
    %s89 = sphi 0, %s73
    %s93 = sphi 0, %s93
    %s95 = sphi 0, %s93
    %s96 = sphi 0, %s95
    %s110 = sphi 0, %s96
    %s114 = sphi 0, %s114
    %s116 = sphi 0, %s114
    %s117 = sphi 0, %s116
    %s131 = sphi 0, %s117
    %s135 = sphi 0, %s135
    %s137 = sphi 0, %s135
    %s138 = sphi 0, %s137
    %s152 = sphi 0, %s138
    %s156 = sphi 0, %s156
    %s158 = sphi 0, %s156
    %s159 = sphi 0, %s158
    %s173 = sphi 0, %s159
    %s177 = sphi 0, %s177
    %s179 = sphi 0, %s177
    %s180 = sphi 0, %s179
    %s194 = sphi 0, %s180
    %s198 = sphi 0, %s198
    %s200 = sphi 0, %s198
    %s201 = sphi 0, %s200
    %s215 = sphi 0, %s201
    %s219 = sphi 0, %s219
    %s221 = sphi 0, %s219
    %s222 = sphi 0, %s221
    %s236 = sphi 0, %s222
    %s240 = sphi 0, %s240
    %s242 = sphi 0, %s240
    %s243 = sphi 0, %s242
    %s257 = sphi 0, %s243
    %s261 = sphi 0, %s261
    %s263 = sphi 0, %s261
    %s264 = sphi 0, %s263
    %s278 = sphi 0, %s264
    %s282 = sphi 0, %s282
    %s284 = sphi 0, %s282
    %s285 = sphi 0, %s284
    %s299 = sphi 0, %s285
    %s303 = sphi 0, %s303
    %s305 = sphi 0, %s303
    %s306 = sphi 0, %s305
    %s320 = sphi 0, %s306
    %s324 = sphi 0, %s324
    %s326 = sphi 0, %s324
    %s327 = sphi 0, %s326
    %s341 = sphi 0, %s327
    %s345 = sphi 0, %s345
    %s347 = sphi 0, %s345
    %s348 = sphi 0, %s347
    %s362 = sphi 0, %s348
    %s366 = sphi 0, %s366
    %s368 = sphi 0, %s366
    %s369 = sphi 0, %s368
    %s383 = sphi 0, %s369
    %s387 = sphi 0, %s387
    %s389 = sphi 0, %s387
    %s390 = sphi 0, %s389
    %s404 = sphi 0, %s390
    %s408 = sphi 0, %s408
    %s410 = sphi 0, %s408
    %s411 = sphi 0, %s410
    %s425 = sphi 0, %s411
    %s429 = sphi 0, %s429
    %s431 = sphi 0, %s429
    %s432 = sphi 0, %s431
    %s446 = sphi 0, %s432
    %s450 = sphi 0, %s450
    %s452 = sphi 0, %s450
    %s453 = sphi 0, %s452
    %s467 = sphi 0, %s453
    %s473 = sphi 0, %s475
    %s476 = sphi 0, %s473
    %s477 = sphi 0, %s476
    %s493 = sphi 0, %s477
    %s499 = sphi 0, %s501
    %s502 = sphi 0, %s499
    %s503 = sphi 0, %s502
    %s519 = sphi 0, %s503
    %s525 = sphi 0, %s527
    %s528 = sphi 0, %s525
    %s529 = sphi 0, %s528
    %s545 = sphi 0, %s529
    %s551 = sphi 0, %s553
    %s554 = sphi 0, %s551
    %s555 = sphi 0, %s554
    %s571 = sphi 0, %s555
    %s577 = sphi 0, %s579
    %s580 = sphi 0, %s577
    %s581 = sphi 0, %s580
    %s597 = sphi 0, %s581
    %s603 = sphi 0, %s605
    %s606 = sphi 0, %s603
    %s607 = sphi 0, %s606
    %s623 = sphi 0, %s607
    %s629 = sphi 0, %s631
    %s632 = sphi 0, %s629
    %s633 = sphi 0, %s632
    %s649 = sphi 0, %s633
  $region4: #{rwkv_tmix_forward.3} parent=0 // loop_header_branch
    %36 = sbr.rel (%p34) target = $region8
  $region5: #{rwkv_tmix_forward.3} parent=0 // loop_body
    %s38 = ssub.s32 %s33, 1
    %s39 = ssub.s32 %s33, 2
    %s40 = sadd.s32 %s33, 1
    %s41 = ssub.s32 %s33, %s40
    %p42 = scmp.eq.s32.totalorder %s41, 0
    %s44 = sadd.s32 %s43, 1
    %s45 = scalar_select %p42, %s43, %s44
    %p48 = pneg %p42
    %p49 = scmp.eq.s32.totalorder %s33, 3
    %p50 = por %p48, %p49
    %p51 = scmp.ne.s32.totalorder %s43, %s46
    %p52 = scmp.eq.s32.totalorder %s33, 0
    %p53 = por %p51, %p52
    %p54 = scmp.ne.s32.totalorder %s43, %s46
    %p55 = scmp.eq.s32.totalorder %s38, 3
    %p56 = por %p54, %p55
    %p57 = scmp.ne.s32.totalorder %s46, %s47
    %p58 = scmp.eq.s32.totalorder %s38, 0
    %p59 = por %p57, %p58
    %p60 = scmp.ne.s32.totalorder %s46, %s47
    %p61 = scmp.eq.s32.totalorder %s39, 3
    %p62 = por %p60, %p61
    %p64 = scmp.ne.s32.totalorder %s47, %s63
    %p65 = scmp.eq.s32.totalorder %s39, 0
    %p66 = por %p64, %p65
    %s67 = ssub.s32 %s33, %s40
    %p68 = scmp.eq.s32.totalorder %s67, 0
    %s70 = sadd.s32 %s69, 1
    %s71 = scalar_select %p68, %s69, %s70
    %p74 = pneg %p68
    %p75 = scmp.eq.s32.totalorder %s33, 3
    %p76 = por %p74, %p75
    %p77 = scmp.ne.s32.totalorder %s69, %s72
    %p78 = scmp.eq.s32.totalorder %s33, 0
    %p79 = por %p77, %p78
    %p80 = scmp.ne.s32.totalorder %s69, %s72
    %p81 = scmp.eq.s32.totalorder %s38, 3
    %p82 = por %p80, %p81
    %p83 = scmp.ne.s32.totalorder %s72, %s73
    %p84 = scmp.eq.s32.totalorder %s38, 0
    %p85 = por %p83, %p84
    %p86 = scmp.ne.s32.totalorder %s72, %s73
    %p87 = scmp.eq.s32.totalorder %s39, 3
    %p88 = por %p86, %p87
    %p90 = scmp.ne.s32.totalorder %s73, %s89
    %p91 = scmp.eq.s32.totalorder %s39, 0
    %p92 = por %p90, %p91
    %s94 = sadd.s32 %s93, 1
    %p97 = scmp.eq.s32.totalorder %s33, 3
    %p98 = scmp.ne.s32.totalorder %s93, %s95
    %p99 = scmp.eq.s32.totalorder %s33, 0
    %p100 = por %p98, %p99
    %p101 = scmp.ne.s32.totalorder %s93, %s95
    %p102 = scmp.eq.s32.totalorder %s38, 3
    %p103 = por %p101, %p102
    %p104 = scmp.ne.s32.totalorder %s95, %s96
    %p105 = scmp.eq.s32.totalorder %s38, 0
    %p106 = por %p104, %p105
    %p107 = scmp.ne.s32.totalorder %s95, %s96
    %p108 = scmp.eq.s32.totalorder %s39, 3
    %p109 = por %p107, %p108
    %p111 = scmp.ne.s32.totalorder %s96, %s110
    %p112 = scmp.eq.s32.totalorder %s39, 0
    %p113 = por %p111, %p112
    %s115 = sadd.s32 %s114, 1
    %p118 = scmp.eq.s32.totalorder %s33, 3
    %p119 = scmp.ne.s32.totalorder %s114, %s116
    %p120 = scmp.eq.s32.totalorder %s33, 0
    %p121 = por %p119, %p120
    %p122 = scmp.ne.s32.totalorder %s114, %s116
    %p123 = scmp.eq.s32.totalorder %s38, 3
    %p124 = por %p122, %p123
    %p125 = scmp.ne.s32.totalorder %s116, %s117
    %p126 = scmp.eq.s32.totalorder %s38, 0
    %p127 = por %p125, %p126
    %p128 = scmp.ne.s32.totalorder %s116, %s117
    %p129 = scmp.eq.s32.totalorder %s39, 3
    %p130 = por %p128, %p129
    %p132 = scmp.ne.s32.totalorder %s117, %s131
    %p133 = scmp.eq.s32.totalorder %s39, 0
    %p134 = por %p132, %p133
    %s136 = sadd.s32 %s135, 1
    %p139 = scmp.eq.s32.totalorder %s33, 3
    %p140 = scmp.ne.s32.totalorder %s135, %s137
    %p141 = scmp.eq.s32.totalorder %s33, 0
    %p142 = por %p140, %p141
    %p143 = scmp.ne.s32.totalorder %s135, %s137
    %p144 = scmp.eq.s32.totalorder %s38, 3
    %p145 = por %p143, %p144
    %p146 = scmp.ne.s32.totalorder %s137, %s138
    %p147 = scmp.eq.s32.totalorder %s38, 0
    %p148 = por %p146, %p147
    %p149 = scmp.ne.s32.totalorder %s137, %s138
    %p150 = scmp.eq.s32.totalorder %s39, 3
    %p151 = por %p149, %p150
    %p153 = scmp.ne.s32.totalorder %s138, %s152
    %p154 = scmp.eq.s32.totalorder %s39, 0
    %p155 = por %p153, %p154
    %s157 = sadd.s32 %s156, 1
    %p160 = scmp.eq.s32.totalorder %s33, 3
    %p161 = scmp.ne.s32.totalorder %s156, %s158
    %p162 = scmp.eq.s32.totalorder %s33, 0
    %p163 = por %p161, %p162
    %p164 = scmp.ne.s32.totalorder %s156, %s158
    %p165 = scmp.eq.s32.totalorder %s38, 3
    %p166 = por %p164, %p165
    %p167 = scmp.ne.s32.totalorder %s158, %s159
    %p168 = scmp.eq.s32.totalorder %s38, 0
    %p169 = por %p167, %p168
    %p170 = scmp.ne.s32.totalorder %s158, %s159
    %p171 = scmp.eq.s32.totalorder %s39, 3
    %p172 = por %p170, %p171
    %p174 = scmp.ne.s32.totalorder %s159, %s173
    %p175 = scmp.eq.s32.totalorder %s39, 0
    %p176 = por %p174, %p175
    %s178 = sadd.s32 %s177, 1
    %p181 = scmp.eq.s32.totalorder %s33, 3
    %p182 = scmp.ne.s32.totalorder %s177, %s179
    %p183 = scmp.eq.s32.totalorder %s33, 0
    %p184 = por %p182, %p183
    %p185 = scmp.ne.s32.totalorder %s177, %s179
    %p186 = scmp.eq.s32.totalorder %s38, 3
    %p187 = por %p185, %p186
    %p188 = scmp.ne.s32.totalorder %s179, %s180
    %p189 = scmp.eq.s32.totalorder %s38, 0
    %p190 = por %p188, %p189
    %p191 = scmp.ne.s32.totalorder %s179, %s180
    %p192 = scmp.eq.s32.totalorder %s39, 3
    %p193 = por %p191, %p192
    %p195 = scmp.ne.s32.totalorder %s180, %s194
    %p196 = scmp.eq.s32.totalorder %s39, 0
    %p197 = por %p195, %p196
    %s199 = sadd.s32 %s198, 1
    %p202 = scmp.eq.s32.totalorder %s33, 3
    %p203 = scmp.ne.s32.totalorder %s198, %s200
    %p204 = scmp.eq.s32.totalorder %s33, 0
    %p205 = por %p203, %p204
    %p206 = scmp.ne.s32.totalorder %s198, %s200
    %p207 = scmp.eq.s32.totalorder %s38, 3
    %p208 = por %p206, %p207
    %p209 = scmp.ne.s32.totalorder %s200, %s201
    %p210 = scmp.eq.s32.totalorder %s38, 0
    %p211 = por %p209, %p210
    %p212 = scmp.ne.s32.totalorder %s200, %s201
    %p213 = scmp.eq.s32.totalorder %s39, 3
    %p214 = por %p212, %p213
    %p216 = scmp.ne.s32.totalorder %s201, %s215
    %p217 = scmp.eq.s32.totalorder %s39, 0
    %p218 = por %p216, %p217
    %s220 = sadd.s32 %s219, 1
    %p223 = scmp.eq.s32.totalorder %s33, 3
    %p224 = scmp.ne.s32.totalorder %s219, %s221
    %p225 = scmp.eq.s32.totalorder %s33, 0
    %p226 = por %p224, %p225
    %p227 = scmp.ne.s32.totalorder %s219, %s221
    %p228 = scmp.eq.s32.totalorder %s38, 3
    %p229 = por %p227, %p228
    %p230 = scmp.ne.s32.totalorder %s221, %s222
    %p231 = scmp.eq.s32.totalorder %s38, 0
    %p232 = por %p230, %p231
    %p233 = scmp.ne.s32.totalorder %s221, %s222
    %p234 = scmp.eq.s32.totalorder %s39, 3
    %p235 = por %p233, %p234
    %p237 = scmp.ne.s32.totalorder %s222, %s236
    %p238 = scmp.eq.s32.totalorder %s39, 0
    %p239 = por %p237, %p238
    %s241 = sadd.s32 %s240, 1
    %p244 = scmp.eq.s32.totalorder %s33, 3
    %p245 = scmp.ne.s32.totalorder %s240, %s242
    %p246 = scmp.eq.s32.totalorder %s33, 0
    %p247 = por %p245, %p246
    %p248 = scmp.ne.s32.totalorder %s240, %s242
    %p249 = scmp.eq.s32.totalorder %s38, 3
    %p250 = por %p248, %p249
    %p251 = scmp.ne.s32.totalorder %s242, %s243
    %p252 = scmp.eq.s32.totalorder %s38, 0
    %p253 = por %p251, %p252
    %p254 = scmp.ne.s32.totalorder %s242, %s243
    %p255 = scmp.eq.s32.totalorder %s39, 3
    %p256 = por %p254, %p255
    %p258 = scmp.ne.s32.totalorder %s243, %s257
    %p259 = scmp.eq.s32.totalorder %s39, 0
    %p260 = por %p258, %p259
    %s262 = sadd.s32 %s261, 1
    %p265 = scmp.eq.s32.totalorder %s33, 3
    %p266 = scmp.ne.s32.totalorder %s261, %s263
    %p267 = scmp.eq.s32.totalorder %s33, 0
    %p268 = por %p266, %p267
    %p269 = scmp.ne.s32.totalorder %s261, %s263
    %p270 = scmp.eq.s32.totalorder %s38, 3
    %p271 = por %p269, %p270
    %p272 = scmp.ne.s32.totalorder %s263, %s264
    %p273 = scmp.eq.s32.totalorder %s38, 0
    %p274 = por %p272, %p273
    %p275 = scmp.ne.s32.totalorder %s263, %s264
    %p276 = scmp.eq.s32.totalorder %s39, 3
    %p277 = por %p275, %p276
    %p279 = scmp.ne.s32.totalorder %s264, %s278
    %p280 = scmp.eq.s32.totalorder %s39, 0
    %p281 = por %p279, %p280
    %s283 = sadd.s32 %s282, 1
    %p286 = scmp.eq.s32.totalorder %s33, 3
    %p287 = scmp.ne.s32.totalorder %s282, %s284
    %p288 = scmp.eq.s32.totalorder %s33, 0
    %p289 = por %p287, %p288
    %p290 = scmp.ne.s32.totalorder %s282, %s284
    %p291 = scmp.eq.s32.totalorder %s38, 3
    %p292 = por %p290, %p291
    %p293 = scmp.ne.s32.totalorder %s284, %s285
    %p294 = scmp.eq.s32.totalorder %s38, 0
    %p295 = por %p293, %p294
    %p296 = scmp.ne.s32.totalorder %s284, %s285
    %p297 = scmp.eq.s32.totalorder %s39, 3
    %p298 = por %p296, %p297
    %p300 = scmp.ne.s32.totalorder %s285, %s299
    %p301 = scmp.eq.s32.totalorder %s39, 0
    %p302 = por %p300, %p301
    %s304 = sadd.s32 %s303, 1
    %p307 = scmp.eq.s32.totalorder %s33, 3
    %p308 = scmp.ne.s32.totalorder %s303, %s305
    %p309 = scmp.eq.s32.totalorder %s33, 0
    %p310 = por %p308, %p309
    %p311 = scmp.ne.s32.totalorder %s303, %s305
    %p312 = scmp.eq.s32.totalorder %s38, 3
    %p313 = por %p311, %p312
    %p314 = scmp.ne.s32.totalorder %s305, %s306
    %p315 = scmp.eq.s32.totalorder %s38, 0
    %p316 = por %p314, %p315
    %p317 = scmp.ne.s32.totalorder %s305, %s306
    %p318 = scmp.eq.s32.totalorder %s39, 3
    %p319 = por %p317, %p318
    %p321 = scmp.ne.s32.totalorder %s306, %s320
    %p322 = scmp.eq.s32.totalorder %s39, 0
    %p323 = por %p321, %p322
    %s325 = sadd.s32 %s324, 1
    %p328 = scmp.eq.s32.totalorder %s33, 3
    %p329 = scmp.ne.s32.totalorder %s324, %s326
    %p330 = scmp.eq.s32.totalorder %s33, 0
    %p331 = por %p329, %p330
    %p332 = scmp.ne.s32.totalorder %s324, %s326
    %p333 = scmp.eq.s32.totalorder %s38, 3
    %p334 = por %p332, %p333
    %p335 = scmp.ne.s32.totalorder %s326, %s327
    %p336 = scmp.eq.s32.totalorder %s38, 0
    %p337 = por %p335, %p336
    %p338 = scmp.ne.s32.totalorder %s326, %s327
    %p339 = scmp.eq.s32.totalorder %s39, 3
    %p340 = por %p338, %p339
    %p342 = scmp.ne.s32.totalorder %s327, %s341
    %p343 = scmp.eq.s32.totalorder %s39, 0
    %p344 = por %p342, %p343
    %s346 = sadd.s32 %s345, 1
    %p349 = scmp.eq.s32.totalorder %s33, 3
    %p350 = scmp.ne.s32.totalorder %s345, %s347
    %p351 = scmp.eq.s32.totalorder %s33, 0
    %p352 = por %p350, %p351
    %p353 = scmp.ne.s32.totalorder %s345, %s347
    %p354 = scmp.eq.s32.totalorder %s38, 3
    %p355 = por %p353, %p354
    %p356 = scmp.ne.s32.totalorder %s347, %s348
    %p357 = scmp.eq.s32.totalorder %s38, 0
    %p358 = por %p356, %p357
    %p359 = scmp.ne.s32.totalorder %s347, %s348
    %p360 = scmp.eq.s32.totalorder %s39, 3
    %p361 = por %p359, %p360
    %p363 = scmp.ne.s32.totalorder %s348, %s362
    %p364 = scmp.eq.s32.totalorder %s39, 0
    %p365 = por %p363, %p364
    %s367 = sadd.s32 %s366, 1
    %p370 = scmp.eq.s32.totalorder %s33, 3
    %p371 = scmp.ne.s32.totalorder %s366, %s368
    %p372 = scmp.eq.s32.totalorder %s33, 0
    %p373 = por %p371, %p372
    %p374 = scmp.ne.s32.totalorder %s366, %s368
    %p375 = scmp.eq.s32.totalorder %s38, 3
    %p376 = por %p374, %p375
    %p377 = scmp.ne.s32.totalorder %s368, %s369
    %p378 = scmp.eq.s32.totalorder %s38, 0
    %p379 = por %p377, %p378
    %p380 = scmp.ne.s32.totalorder %s368, %s369
    %p381 = scmp.eq.s32.totalorder %s39, 3
    %p382 = por %p380, %p381
    %p384 = scmp.ne.s32.totalorder %s369, %s383
    %p385 = scmp.eq.s32.totalorder %s39, 0
    %p386 = por %p384, %p385
    %s388 = sadd.s32 %s387, 1
    %p391 = scmp.eq.s32.totalorder %s33, 3
    %p392 = scmp.ne.s32.totalorder %s387, %s389
    %p393 = scmp.eq.s32.totalorder %s33, 0
    %p394 = por %p392, %p393
    %p395 = scmp.ne.s32.totalorder %s387, %s389
    %p396 = scmp.eq.s32.totalorder %s38, 3
    %p397 = por %p395, %p396
    %p398 = scmp.ne.s32.totalorder %s389, %s390
    %p399 = scmp.eq.s32.totalorder %s38, 0
    %p400 = por %p398, %p399
    %p401 = scmp.ne.s32.totalorder %s389, %s390
    %p402 = scmp.eq.s32.totalorder %s39, 3
    %p403 = por %p401, %p402
    %p405 = scmp.ne.s32.totalorder %s390, %s404
    %p406 = scmp.eq.s32.totalorder %s39, 0
    %p407 = por %p405, %p406
    %s409 = sadd.s32 %s408, 1
    %p412 = scmp.eq.s32.totalorder %s33, 3
    %p413 = scmp.ne.s32.totalorder %s408, %s410
    %p414 = scmp.eq.s32.totalorder %s33, 0
    %p415 = por %p413, %p414
    %p416 = scmp.ne.s32.totalorder %s408, %s410
    %p417 = scmp.eq.s32.totalorder %s38, 3
    %p418 = por %p416, %p417
    %p419 = scmp.ne.s32.totalorder %s410, %s411
    %p420 = scmp.eq.s32.totalorder %s38, 0
    %p421 = por %p419, %p420
    %p422 = scmp.ne.s32.totalorder %s410, %s411
    %p423 = scmp.eq.s32.totalorder %s39, 3
    %p424 = por %p422, %p423
    %p426 = scmp.ne.s32.totalorder %s411, %s425
    %p427 = scmp.eq.s32.totalorder %s39, 0
    %p428 = por %p426, %p427
    %s430 = sadd.s32 %s429, 1
    %p433 = scmp.eq.s32.totalorder %s33, 3
    %p434 = scmp.ne.s32.totalorder %s429, %s431
    %p435 = scmp.eq.s32.totalorder %s33, 0
    %p436 = por %p434, %p435
    %p437 = scmp.ne.s32.totalorder %s429, %s431
    %p438 = scmp.eq.s32.totalorder %s38, 3
    %p439 = por %p437, %p438
    %p440 = scmp.ne.s32.totalorder %s431, %s432
    %p441 = scmp.eq.s32.totalorder %s38, 0
    %p442 = por %p440, %p441
    %p443 = scmp.ne.s32.totalorder %s431, %s432
    %p444 = scmp.eq.s32.totalorder %s39, 3
    %p445 = por %p443, %p444
    %p447 = scmp.ne.s32.totalorder %s432, %s446
    %p448 = scmp.eq.s32.totalorder %s39, 0
    %p449 = por %p447, %p448
    %s451 = sadd.s32 %s450, 1
    %p454 = scmp.eq.s32.totalorder %s33, 3
    %p455 = scmp.ne.s32.totalorder %s450, %s452
    %p456 = scmp.eq.s32.totalorder %s33, 0
    %p457 = por %p455, %p456
    %p458 = scmp.ne.s32.totalorder %s450, %s452
    %p459 = scmp.eq.s32.totalorder %s38, 3
    %p460 = por %p458, %p459
    %p461 = scmp.ne.s32.totalorder %s452, %s453
    %p462 = scmp.eq.s32.totalorder %s38, 0
    %p463 = por %p461, %p462
    %p464 = scmp.ne.s32.totalorder %s452, %s453
    %p465 = scmp.eq.s32.totalorder %s39, 3
    %p466 = por %p464, %p465
    %p468 = scmp.ne.s32.totalorder %s453, %s467
    %p469 = scmp.eq.s32.totalorder %s39, 0
    %p470 = por %p468, %p469
    %s471 = ssub.s32 %s33, %s40
    %p472 = scmp.eq.s32.totalorder %s471, 0
    %s474 = sadd.s32 %s473, 1
    %s475 = scalar_select %p472, %s473, %s474
    %p478 = pneg %p472
    %p479 = scmp.eq.s32.totalorder %s33, 3
    %p480 = por %p478, %p479
    %p481 = scmp.ne.s32.totalorder %s473, %s476
    %p482 = scmp.eq.s32.totalorder %s33, 0
    %p483 = por %p481, %p482
    %p484 = scmp.ne.s32.totalorder %s473, %s476
    %p485 = scmp.eq.s32.totalorder %s38, 3
    %p486 = por %p484, %p485
    %p487 = scmp.ne.s32.totalorder %s476, %s477
    %p488 = scmp.eq.s32.totalorder %s38, 0
    %p489 = por %p487, %p488
    %p490 = scmp.ne.s32.totalorder %s476, %s477
    %p491 = scmp.eq.s32.totalorder %s39, 3
    %p492 = por %p490, %p491
    %p494 = scmp.ne.s32.totalorder %s477, %s493
    %p495 = scmp.eq.s32.totalorder %s39, 0
    %p496 = por %p494, %p495
    %s497 = ssub.s32 %s33, %s40
    %p498 = scmp.eq.s32.totalorder %s497, 0
    %s500 = sadd.s32 %s499, 1
    %s501 = scalar_select %p498, %s499, %s500
    %p504 = pneg %p498
    %p505 = scmp.eq.s32.totalorder %s33, 3
    %p506 = por %p504, %p505
    %p507 = scmp.ne.s32.totalorder %s499, %s502
    %p508 = scmp.eq.s32.totalorder %s33, 0
    %p509 = por %p507, %p508
    %p510 = scmp.ne.s32.totalorder %s499, %s502
    %p511 = scmp.eq.s32.totalorder %s38, 3
    %p512 = por %p510, %p511
    %p513 = scmp.ne.s32.totalorder %s502, %s503
    %p514 = scmp.eq.s32.totalorder %s38, 0
    %p515 = por %p513, %p514
    %p516 = scmp.ne.s32.totalorder %s502, %s503
    %p517 = scmp.eq.s32.totalorder %s39, 3
    %p518 = por %p516, %p517
    %p520 = scmp.ne.s32.totalorder %s503, %s519
    %p521 = scmp.eq.s32.totalorder %s39, 0
    %p522 = por %p520, %p521
    %s523 = ssub.s32 %s33, %s40
    %p524 = scmp.eq.s32.totalorder %s523, 0
    %s526 = sadd.s32 %s525, 1
    %s527 = scalar_select %p524, %s525, %s526
    %p530 = pneg %p524
    %p531 = scmp.eq.s32.totalorder %s33, 3
    %p532 = por %p530, %p531
    %p533 = scmp.ne.s32.totalorder %s525, %s528
    %p534 = scmp.eq.s32.totalorder %s33, 0
    %p535 = por %p533, %p534
    %p536 = scmp.ne.s32.totalorder %s525, %s528
    %p537 = scmp.eq.s32.totalorder %s38, 3
    %p538 = por %p536, %p537
    %p539 = scmp.ne.s32.totalorder %s528, %s529
    %p540 = scmp.eq.s32.totalorder %s38, 0
    %p541 = por %p539, %p540
    %p542 = scmp.ne.s32.totalorder %s528, %s529
    %p543 = scmp.eq.s32.totalorder %s39, 3
    %p544 = por %p542, %p543
    %p546 = scmp.ne.s32.totalorder %s529, %s545
    %p547 = scmp.eq.s32.totalorder %s39, 0
    %p548 = por %p546, %p547
    %s549 = ssub.s32 %s33, %s40
    %p550 = scmp.eq.s32.totalorder %s549, 0
    %s552 = sadd.s32 %s551, 1
    %s553 = scalar_select %p550, %s551, %s552
    %p556 = pneg %p550
    %p557 = scmp.eq.s32.totalorder %s33, 3
    %p558 = por %p556, %p557
    %p559 = scmp.ne.s32.totalorder %s551, %s554
    %p560 = scmp.eq.s32.totalorder %s33, 0
    %p561 = por %p559, %p560
    %p562 = scmp.ne.s32.totalorder %s551, %s554
    %p563 = scmp.eq.s32.totalorder %s38, 3
    %p564 = por %p562, %p563
    %p565 = scmp.ne.s32.totalorder %s554, %s555
    %p566 = scmp.eq.s32.totalorder %s38, 0
    %p567 = por %p565, %p566
    %p568 = scmp.ne.s32.totalorder %s554, %s555
    %p569 = scmp.eq.s32.totalorder %s39, 3
    %p570 = por %p568, %p569
    %p572 = scmp.ne.s32.totalorder %s555, %s571
    %p573 = scmp.eq.s32.totalorder %s39, 0
    %p574 = por %p572, %p573
    %s575 = ssub.s32 %s33, %s40
    %p576 = scmp.eq.s32.totalorder %s575, 0
    %s578 = sadd.s32 %s577, 1
    %s579 = scalar_select %p576, %s577, %s578
    %p582 = pneg %p576
    %p583 = scmp.eq.s32.totalorder %s33, 3
    %p584 = por %p582, %p583
    %p585 = scmp.ne.s32.totalorder %s577, %s580
    %p586 = scmp.eq.s32.totalorder %s33, 0
    %p587 = por %p585, %p586
    %p588 = scmp.ne.s32.totalorder %s577, %s580
    %p589 = scmp.eq.s32.totalorder %s38, 3
    %p590 = por %p588, %p589
    %p591 = scmp.ne.s32.totalorder %s580, %s581
    %p592 = scmp.eq.s32.totalorder %s38, 0
    %p593 = por %p591, %p592
    %p594 = scmp.ne.s32.totalorder %s580, %s581
    %p595 = scmp.eq.s32.totalorder %s39, 3
    %p596 = por %p594, %p595
    %p598 = scmp.ne.s32.totalorder %s581, %s597
    %p599 = scmp.eq.s32.totalorder %s39, 0
    %p600 = por %p598, %p599
    %s601 = ssub.s32 %s33, %s40
    %p602 = scmp.eq.s32.totalorder %s601, 0
    %s604 = sadd.s32 %s603, 1
    %s605 = scalar_select %p602, %s603, %s604
    %p608 = pneg %p602
    %p609 = scmp.eq.s32.totalorder %s33, 3
    %p610 = por %p608, %p609
    %p611 = scmp.ne.s32.totalorder %s603, %s606
    %p612 = scmp.eq.s32.totalorder %s33, 0
    %p613 = por %p611, %p612
    %p614 = scmp.ne.s32.totalorder %s603, %s606
    %p615 = scmp.eq.s32.totalorder %s38, 3
    %p616 = por %p614, %p615
    %p617 = scmp.ne.s32.totalorder %s606, %s607
    %p618 = scmp.eq.s32.totalorder %s38, 0
    %p619 = por %p617, %p618
    %p620 = scmp.ne.s32.totalorder %s606, %s607
    %p621 = scmp.eq.s32.totalorder %s39, 3
    %p622 = por %p620, %p621
    %p624 = scmp.ne.s32.totalorder %s607, %s623
    %p625 = scmp.eq.s32.totalorder %s39, 0
    %p626 = por %p624, %p625
    %s627 = ssub.s32 %s33, %s40
    %p628 = scmp.eq.s32.totalorder %s627, 0
    %s630 = sadd.s32 %s629, 1
    %s631 = scalar_select %p628, %s629, %s630
    %p634 = pneg %p628
    %p635 = scmp.eq.s32.totalorder %s33, 3
    %p636 = por %p634, %p635
    %p637 = scmp.ne.s32.totalorder %s629, %s632
    %p638 = scmp.eq.s32.totalorder %s33, 0
    %p639 = por %p637, %p638
    %p640 = scmp.ne.s32.totalorder %s629, %s632
    %p641 = scmp.eq.s32.totalorder %s38, 3
    %p642 = por %p640, %p641
    %p643 = scmp.ne.s32.totalorder %s632, %s633
    %p644 = scmp.eq.s32.totalorder %s38, 0
    %p645 = por %p643, %p644
    %p646 = scmp.ne.s32.totalorder %s632, %s633
    %p647 = scmp.eq.s32.totalorder %s39, 3
    %p648 = por %p646, %p647
    %p650 = scmp.ne.s32.totalorder %s633, %s649
    %p651 = scmp.eq.s32.totalorder %s39, 0
    %p652 = por %p650, %p651
    %p653 = scmp.le.s32.totalorder 1, %s33
    %p654 = scmp.lt.s32.totalorder %s33, 5
    %p655 = pnand %p653, %p654
    %p656 = pneg %p655
    // Predicated region
    $region9: #{rwkv_tmix_forward.3} parent=5 // pred_check
      _
    $region10: #{rwkv_tmix_forward.3} parent=5 // pred_check_branch
      %658 = sbr.rel (%p655) target = $region12
    $region11: #{rwkv_tmix_forward.3} parent=5 // pred_region
      %s659 = ssub.s32 %s33, 1
      // Predicated region
      $region13: #{rwkv_tmix_forward.3} parent=11 // pred_check
        %p660 = pneg %p106
      $region14: #{rwkv_tmix_forward.3} parent=11 // pred_check_branch
        %662 = sbr.rel (%p660) target = $region16
      $region15: #{rwkv_tmix_forward.3} parent=11 // pred_region
        _
      $region16: #{rwkv_tmix_forward.3} parent=11 // pred_fallthru
        _
      // Predicated region
      $region17: #{rwkv_tmix_forward.3} parent=11 // pred_check
        %p663 = pneg %p127
      $region18: #{rwkv_tmix_forward.3} parent=11 // pred_check_branch
        %665 = sbr.rel (%p663) target = $region20
      $region19: #{rwkv_tmix_forward.3} parent=11 // pred_region
        _
      $region20: #{rwkv_tmix_forward.3} parent=11 // pred_fallthru
        _
      // Predicated region
      $region21: #{rwkv_tmix_forward.3} parent=11 // pred_check
        %p666 = pneg %p148
      $region22: #{rwkv_tmix_forward.3} parent=11 // pred_check_branch
        %668 = sbr.rel (%p666) target = $region24
      $region23: #{rwkv_tmix_forward.3} parent=11 // pred_region
        _
      $region24: #{rwkv_tmix_forward.3} parent=11 // pred_fallthru
        _
      // Predicated region
      $region25: #{rwkv_tmix_forward.3} parent=11 // pred_check
        %p669 = pneg %p169
      $region26: #{rwkv_tmix_forward.3} parent=11 // pred_check_branch
        %671 = sbr.rel (%p669) target = $region28
      $region27: #{rwkv_tmix_forward.3} parent=11 // pred_region
        _
      $region28: #{rwkv_tmix_forward.3} parent=11 // pred_fallthru
        _
      // Predicated region
      $region29: #{rwkv_tmix_forward.3} parent=11 // pred_check
        %p672 = pneg %p190
      $region30: #{rwkv_tmix_forward.3} parent=11 // pred_check_branch
        %674 = sbr.rel (%p672) target = $region32
      $region31: #{rwkv_tmix_forward.3} parent=11 // pred_region
        _
      $region32: #{rwkv_tmix_forward.3} parent=11 // pred_fallthru
        _
      // Predicated region
      $region33: #{rwkv_tmix_forward.3} parent=11 // pred_check
        %p675 = pneg %p211
      $region34: #{rwkv_tmix_forward.3} parent=11 // pred_check_branch
        %677 = sbr.rel (%p675) target = $region36
      $region35: #{rwkv_tmix_forward.3} parent=11 // pred_region
        _
      $region36: #{rwkv_tmix_forward.3} parent=11 // pred_fallthru
        _
      // Predicated region
      $region37: #{rwkv_tmix_forward.3} parent=11 // pred_check
        %p678 = pneg %p232
      $region38: #{rwkv_tmix_forward.3} parent=11 // pred_check_branch
        %680 = sbr.rel (%p678) target = $region40
      $region39: #{rwkv_tmix_forward.3} parent=11 // pred_region
        _
      $region40: #{rwkv_tmix_forward.3} parent=11 // pred_fallthru
        _
      // Predicated region
      $region41: #{rwkv_tmix_forward.3} parent=11 // pred_check
        %p681 = pneg %p253
      $region42: #{rwkv_tmix_forward.3} parent=11 // pred_check_branch
        %683 = sbr.rel (%p681) target = $region44
      $region43: #{rwkv_tmix_forward.3} parent=11 // pred_region
        _
      $region44: #{rwkv_tmix_forward.3} parent=11 // pred_fallthru
        _
      // Predicated region
      $region45: #{rwkv_tmix_forward.3} parent=11 // pred_check
        %p684 = pneg %p274
      $region46: #{rwkv_tmix_forward.3} parent=11 // pred_check_branch
        %686 = sbr.rel (%p684) target = $region48
      $region47: #{rwkv_tmix_forward.3} parent=11 // pred_region
        _
      $region48: #{rwkv_tmix_forward.3} parent=11 // pred_fallthru
        _
      // Predicated region
      $region49: #{rwkv_tmix_forward.3} parent=11 // pred_check
        %p687 = pneg %p295
      $region50: #{rwkv_tmix_forward.3} parent=11 // pred_check_branch
        %689 = sbr.rel (%p687) target = $region52
      $region51: #{rwkv_tmix_forward.3} parent=11 // pred_region
        _
      $region52: #{rwkv_tmix_forward.3} parent=11 // pred_fallthru
        _
      // Predicated region
      $region53: #{rwkv_tmix_forward.3} parent=11 // pred_check
        %p690 = pneg %p316
      $region54: #{rwkv_tmix_forward.3} parent=11 // pred_check_branch
        %692 = sbr.rel (%p690) target = $region56
      $region55: #{rwkv_tmix_forward.3} parent=11 // pred_region
        _
      $region56: #{rwkv_tmix_forward.3} parent=11 // pred_fallthru
        _
      // Predicated region
      $region57: #{rwkv_tmix_forward.3} parent=11 // pred_check
        %p693 = pneg %p337
      $region58: #{rwkv_tmix_forward.3} parent=11 // pred_check_branch
        %695 = sbr.rel (%p693) target = $region60
      $region59: #{rwkv_tmix_forward.3} parent=11 // pred_region
        _
      $region60: #{rwkv_tmix_forward.3} parent=11 // pred_fallthru
        _
      // Predicated region
      $region61: #{rwkv_tmix_forward.3} parent=11 // pred_check
        %p696 = pneg %p358
      $region62: #{rwkv_tmix_forward.3} parent=11 // pred_check_branch
        %698 = sbr.rel (%p696) target = $region64
      $region63: #{rwkv_tmix_forward.3} parent=11 // pred_region
        _
      $region64: #{rwkv_tmix_forward.3} parent=11 // pred_fallthru
        _
      // Predicated region
      $region65: #{rwkv_tmix_forward.3} parent=11 // pred_check
        %p699 = pneg %p379
      $region66: #{rwkv_tmix_forward.3} parent=11 // pred_check_branch
        %701 = sbr.rel (%p699) target = $region68
      $region67: #{rwkv_tmix_forward.3} parent=11 // pred_region
        _
      $region68: #{rwkv_tmix_forward.3} parent=11 // pred_fallthru
        _
      // Predicated region
      $region69: #{rwkv_tmix_forward.3} parent=11 // pred_check
        %p702 = pneg %p400
      $region70: #{rwkv_tmix_forward.3} parent=11 // pred_check_branch
        %704 = sbr.rel (%p702) target = $region72
      $region71: #{rwkv_tmix_forward.3} parent=11 // pred_region
        _
      $region72: #{rwkv_tmix_forward.3} parent=11 // pred_fallthru
        _
      // Predicated region
      $region73: #{rwkv_tmix_forward.3} parent=11 // pred_check
        %p705 = pneg %p421
      $region74: #{rwkv_tmix_forward.3} parent=11 // pred_check_branch
        %707 = sbr.rel (%p705) target = $region76
      $region75: #{rwkv_tmix_forward.3} parent=11 // pred_region
        _
      $region76: #{rwkv_tmix_forward.3} parent=11 // pred_fallthru
        _
      // Predicated region
      $region77: #{rwkv_tmix_forward.3} parent=11 // pred_check
        %p708 = pneg %p442
      $region78: #{rwkv_tmix_forward.3} parent=11 // pred_check_branch
        %710 = sbr.rel (%p708) target = $region80
      $region79: #{rwkv_tmix_forward.3} parent=11 // pred_region
        _
      $region80: #{rwkv_tmix_forward.3} parent=11 // pred_fallthru
        _
      // Predicated region
      $region81: #{rwkv_tmix_forward.3} parent=11 // pred_check
        %p711 = pneg %p463
      $region82: #{rwkv_tmix_forward.3} parent=11 // pred_check_branch
        %713 = sbr.rel (%p711) target = $region84
      $region83: #{rwkv_tmix_forward.3} parent=11 // pred_region
        _
      $region84: #{rwkv_tmix_forward.3} parent=11 // pred_fallthru
        _
    $region12: #{rwkv_tmix_forward.3} parent=5 // pred_fallthru
      _
    %p714 = scmp.lt.s32.totalorder %s33, 4
    // Predicated region
    $region85: #{rwkv_tmix_forward.3} parent=5 // pred_check
      %p715 = pneg %p714
    $region86: #{rwkv_tmix_forward.3} parent=5 // pred_check_branch
      %717 = sbr.rel (%p715) target = $region88
    $region87: #{rwkv_tmix_forward.3} parent=5 // pred_region
      // Predicated region
      $region89: #{rwkv_tmix_forward.3} parent=87 // pred_check
        %p718 = pneg %p53
      $region90: #{rwkv_tmix_forward.3} parent=87 // pred_check_branch
        %720 = sbr.rel (%p718) target = $region92
      $region91: #{rwkv_tmix_forward.3} parent=87 // pred_region
        %s721 = smul.u32 4, %s33
        %p722 = scmp.lt.s32.totalorder %s721, 15
        %s723 = scalar_select %p722, %s721, 15
        %s724 = smul.addr %s723, 8
        %s725 = scalar_lea.vmem %s0, %s724
        %s726 = smul.u32 4, %s33
      $region92: #{rwkv_tmix_forward.3} parent=87 // pred_fallthru
        _
      // Predicated region
      $region93: #{rwkv_tmix_forward.3} parent=87 // pred_check
        %p727 = pneg %p79
      $region94: #{rwkv_tmix_forward.3} parent=87 // pred_check_branch
        %729 = sbr.rel (%p727) target = $region96
      $region95: #{rwkv_tmix_forward.3} parent=87 // pred_region
        %s730 = smul.u32 4, %s33
        %p731 = scmp.lt.s32.totalorder %s730, 15
        %s732 = scalar_select %p731, %s730, 15
        %s733 = smul.addr %s732, 8
        %s734 = scalar_lea.vmem %s1, %s733
        %s735 = smul.u32 4, %s33
      $region96: #{rwkv_tmix_forward.3} parent=87 // pred_fallthru
        _
    $region88: #{rwkv_tmix_forward.3} parent=5 // pred_fallthru
      _
    %p736 = scmp.le.s32.totalorder 1, %s33
    %p737 = scmp.lt.s32.totalorder %s33, 5
    %p738 = pnand %p736, %p737
    %p739 = pneg %p738
    // Predicated region
    $region97: #{rwkv_tmix_forward.3} parent=5 // pred_check
      _
    $region98: #{rwkv_tmix_forward.3} parent=5 // pred_check_branch
      %741 = sbr.rel (%p738) target = $region100
    $region99: #{rwkv_tmix_forward.3} parent=5 // pred_region
      %s742 = ssub.s32 %s33, 1
      %s743 = smul.u32 4, %s38
      %p744 = scmp.lt.s32.totalorder %s743, 15
      %s745 = scalar_select %p744, %s743, 15
      %s746 = smul.addr %s745, 8
      %s747 = scalar_lea.vmem %s0, %s746
      %p748 = pneg %p59
      %p749 = pneg %p56
      %s750 = smul.u32 4, %s38
      %p751 = scmp.lt.s32.totalorder %s750, 15
      %s752 = scalar_select %p751, %s750, 15
      %s753 = smul.addr %s752, 8
      %s754 = scalar_lea.vmem %s1, %s753
      %p755 = pneg %p85
      %p756 = pneg %p82
      %p757 = pneg %p106
      %p758 = pneg %p103
      %p759 = pneg %p127
      %p760 = pneg %p124
      %p761 = pneg %p148
      %p762 = pneg %p145
      %p763 = pneg %p169
      %p764 = pneg %p166
      %p765 = pneg %p190
      %p766 = pneg %p187
      %p767 = pneg %p211
      %p768 = pneg %p208
      %p769 = pneg %p232
      %p770 = pneg %p229
      %p771 = pneg %p253
      %p772 = pneg %p250
      %p773 = pneg %p274
      %p774 = pneg %p271
      %p775 = pneg %p295
      %p776 = pneg %p292
      %p777 = pneg %p316
      %p778 = pneg %p313
      %p779 = pneg %p337
      %p780 = pneg %p334
      %p781 = pneg %p358
      %p782 = pneg %p355
      %p783 = pneg %p379
      %p784 = pneg %p376
      %p785 = pneg %p400
      %p786 = pneg %p397
      %p787 = pneg %p421
      %p788 = pneg %p418
      %p789 = pneg %p442
      %p790 = pneg %p439
      %p791 = pneg %p463
      %p792 = pneg %p460
      %p793 = pneg %p489
      %p794 = pneg %p486
      %s795 = smul.u32 4, %s38
      %p796 = scmp.lt.s32.totalorder %s795, 15
      %s797 = scalar_select %p796, %s795, 15
      %s798 = smul.addr %s797, 4
      %s799 = scalar_lea.vmem %s20, %s798
      %p800 = pneg %p515
      %p801 = pneg %p512
      %s802 = smul.u32 4, %s38
      %p803 = scmp.lt.s32.totalorder %s802, 15
      %s804 = scalar_select %p803, %s802, 15
      %s805 = smul.addr %s804, 8
      %s806 = scalar_lea.vmem %s21, %s805
      %p807 = pneg %p541
      %p808 = pneg %p538
      %s809 = smul.u32 4, %s38
      %p810 = scmp.lt.s32.totalorder %s809, 15
      %s811 = scalar_select %p810, %s809, 15
      %s812 = smul.addr %s811, 4
      %s813 = scalar_lea.vmem %s22, %s812
      %p814 = pneg %p567
      %p815 = pneg %p564
      %s816 = smul.u32 4, %s38
      %p817 = scmp.lt.s32.totalorder %s816, 15
      %s818 = scalar_select %p817, %s816, 15
      %s819 = smul.addr %s818, 8
      %s820 = scalar_lea.vmem %s23, %s819
      %p821 = pneg %p593
      %p822 = pneg %p590
      %s823 = smul.u32 4, %s38
      %p824 = scmp.lt.s32.totalorder %s823, 15
      %s825 = scalar_select %p824, %s823, 15
      %s826 = smul.addr %s825, 4
      %s827 = scalar_lea.vmem %s24, %s826
      %p828 = pneg %p619
      %p829 = pneg %p616
      %s830 = smul.u32 4, %s38
      %p831 = scmp.lt.s32.totalorder %s830, 15
      %s832 = scalar_select %p831, %s830, 15
      %s833 = smul.addr %s832, 4
      %s834 = scalar_lea.vmem %s25, %s833
      %p835 = pneg %p645
      %p836 = pneg %p642
      %s837 = smul.u32 4, %s38
      %p838 = scmp.lt.s32.totalorder %s837, 15
      %s839 = scalar_select %p838, %s837, 15
      %s840 = smul.addr %s839, 4
      %s841 = scalar_lea.vmem %s26, %s840
      %s842 = smul.u32 4, %s38
      %p843 = scmp.lt.s32.totalorder %s842, 15
      %s844 = scalar_select %p843, %s842, 15
      %s845 = smul.addr %s844, 8
      %s846 = scalar_lea.vmem %s0, %s845
      %s847 = smul.u32 4, %s38
      %s848 = smul.u32 4, %s38
      %p849 = scmp.lt.s32.totalorder %s848, 15
      %s850 = scalar_select %p849, %s848, 15
      %s851 = smul.addr %s850, 8
      %s852 = scalar_lea.vmem %s1, %s851
      %s853 = smul.u32 4, %s38
      %s854 = smul.u32 4, %s38
      %p855 = scmp.lt.s32.totalorder %s854, 15
      %s856 = scalar_select %p855, %s854, 15
      %s857 = smul.addr %s856, 4
      %s858 = scalar_lea.vmem %s20, %s857
      %s859 = smul.u32 4, %s38
      %s860 = smul.u32 4, %s38
      %p861 = scmp.lt.s32.totalorder %s860, 15
      %s862 = scalar_select %p861, %s860, 15
      %s863 = smul.addr %s862, 8
      %s864 = scalar_lea.vmem %s21, %s863
      %s865 = smul.u32 4, %s38
      %s866 = smul.u32 4, %s38
      %p867 = scmp.lt.s32.totalorder %s866, 15
      %s868 = scalar_select %p867, %s866, 15
      %s869 = smul.addr %s868, 4
      %s870 = scalar_lea.vmem %s22, %s869
      %s871 = smul.u32 4, %s38
      %s872 = smul.u32 4, %s38
      %p873 = scmp.lt.s32.totalorder %s872, 15
      %s874 = scalar_select %p873, %s872, 15
      %s875 = smul.addr %s874, 8
      %s876 = scalar_lea.vmem %s23, %s875
      %s877 = smul.u32 4, %s38
      %s878 = smul.u32 4, %s38
      %p879 = scmp.lt.s32.totalorder %s878, 15
      %s880 = scalar_select %p879, %s878, 15
      %s881 = smul.addr %s880, 4
      %s882 = scalar_lea.vmem %s24, %s881
      %s883 = smul.u32 4, %s38
      %s884 = smul.u32 4, %s38
      %p885 = scmp.lt.s32.totalorder %s884, 15
      %s886 = scalar_select %p885, %s884, 15
      %s887 = smul.addr %s886, 4
      %s888 = scalar_lea.vmem %s25, %s887
      %s889 = smul.u32 4, %s38
      %s890 = smul.u32 4, %s38
      %p891 = scmp.lt.s32.totalorder %s890, 15
      %s892 = scalar_select %p891, %s890, 15
      %s893 = smul.addr %s892, 4
      %s894 = scalar_lea.vmem %s26, %s893
      %s895 = smul.u32 4, %s38
      %v897 = vld [vmem:[%s846] sm:$0xff]
      %v898 = vld [vmem:[%s846 + $0x8] sm:$0xff]
      %v899 = vld [vmem:[%s846 + $0x10] sm:$0xff]
      %v900 = vld [vmem:[%s846 + $0x18] sm:$0xff]
      %v901 = vld [vmem:[%s852] sm:$0xff]
      %v902 = vld [vmem:[%s852 + $0x8] sm:$0xff]
      %v903 = vld [vmem:[%s852 + $0x10] sm:$0xff]
      %v904 = vld [vmem:[%s852 + $0x18] sm:$0xff]
      %906 = vset.pattern.permute.xlu0 0
      %907 = vperm.xlu0 %906, %v901
      %v908 = vpop.permute.xlu0 %907
      %911 = vset.pattern.permute.xlu0 0
      %912 = vperm.xlu0 %911, %v902
      %v913 = vpop.permute.xlu0 %912
      %916 = vset.pattern.permute.xlu0 0
      %917 = vperm.xlu0 %916, %v903
      %v918 = vpop.permute.xlu0 %917
      %921 = vset.pattern.permute.xlu0 0
      %922 = vperm.xlu0 %921, %v904
      %v923 = vpop.permute.xlu0 %922
      %v925 = vmul.f32 %v897, %v908
      %v926 = vmul.f32 %v898, %v913
      %v927 = vmul.f32 %v899, %v918
      %v928 = vmul.f32 %v900, %v923
      %v929 = vpack.c.bf16 %v926, %v925
      %v930 = vpack.c.bf16 %v928, %v927
      %v931 = vld [vmem:[%s2] sm:$0xf]
      %v932 = vld [vmem:[%s2 + $0x4] sm:$0xf]
      %v933 = vld [vmem:[%s2 + $0x8] sm:$0xf]
      %v934 = vld [vmem:[%s2 + $0xc] sm:$0xf]
      %v935 = vld [vmem:[%s2 + $0x10] sm:$0xf]
      %v936 = vld [vmem:[%s2 + $0x14] sm:$0xf]
      %v937 = vld [vmem:[%s2 + $0x18] sm:$0xf]
      %v938 = vld [vmem:[%s2 + $0x1c] sm:$0xf]
      %v939 = vld [vmem:[%s3] sm:$0x1]
      %v941 = vlaneseq
      %v942 = vshrl.u32 %v941, 7
      %v943 = vsub.s32 0, %v942
      %v944 = vrot.slane %v939, %v943
      %v954 = vunpack.c.l.b16 %v931
      %v955 = vunpack.c.l.b16 %v932
      %v956 = vunpack.c.l.b16 %v933
      %v957 = vunpack.c.l.b16 %v934
      %v958 = vunpack.c.l.b16 %v935
      %v959 = vunpack.c.l.b16 %v936
      %v960 = vunpack.c.l.b16 %v937
      %v961 = vunpack.c.l.b16 %v938
      %v962 = vpack.c.b16 %v955, %v954
      %v963 = vpack.c.b16 %v957, %v956
      %v964 = vpack.c.b16 %v959, %v958
      %v965 = vpack.c.b16 %v961, %v960
      %vm970 = vcmask 523264
      %v972 = vsel %vm970, %v929, 0
      %v975 = vsel %vm970, %v930, 0
      %977 = vmatprep.subr.bf16.mxu0 0
      %978 = vmatpush1.bf16.msra.mxu0 %v962
      %979 = vmatprep.subr.bf16.mxu0 0
      %980 = vmatpush1.bf16.msra.mxu0 %v963
      %981 = vmatprep.subr.bf16.mxu0 0
      %982 = vmatpush1.bf16.msra.mxu0 %v964
      %983 = vmatprep.subr.bf16.mxu0 0
      %984 = vmatpush1.bf16.msra.mxu0 %v965
      %985 = vmatprep.subr.bf16.mxu0 0
      %986 = vmatpush1.bf16.msra.mxu0 0
      %987 = vmatprep.subr.bf16.mxu0 0
      %988 = vmatpush1.bf16.msra.mxu0 0
      %989 = vmatprep.subr.bf16.mxu0 0
      %990 = vmatpush1.bf16.msra.mxu0 0
      %991 = vmatprep.subr.bf16.mxu0 0
      %992 = vmatpush1.bf16.msra.mxu0 0
      %993 = vmatprep.subr.bf16.mxu0 0
      %994 = vmatpush1.bf16.msra.mxu0 0
      %995 = vmatprep.subr.bf16.mxu0 0
      %996 = vmatpush1.bf16.msra.mxu0 0
      %997 = vmatprep.subr.bf16.mxu0 0
      %998 = vmatpush1.bf16.msra.mxu0 0
      %999 = vmatprep.subr.bf16.mxu0 0
      %1000 = vmatpush1.bf16.msra.mxu0 0
      %1001 = vmatprep.subr.bf16.mxu0 0
      %1002 = vmatpush1.bf16.msra.mxu0 0
      %1003 = vmatprep.subr.bf16.mxu0 0
      %1004 = vmatpush1.bf16.msra.mxu0 0
      %1005 = vmatprep.subr.bf16.mxu0 0
      %1006 = vmatpush1.bf16.msra.mxu0 0
      %1007 = vmatprep.subr.bf16.mxu0 0
      %1008 = vmatpush1.bf16.msra.mxu0 0
      %1009 = vmatprep.mubr.bf16.mxu0 0
      %1010 = vmatmul.mubr.bf16.gmra.mrb[0].mxu0 %v972
      %v1011 = vpop.f32.mrb[0].mxu0
      %v1012 = vadd.f32 %v944, %v1011
      %v1013 = vpop.f32.mrb[0].mxu0
      %v1014 = vpop.f32.mrb[0].mxu0
      %v1015 = vadd.f32 %v944, %v1014
      %v1016 = vpop.f32.mrb[0].mxu0
      %1017 = vmatprep.mubr.bf16.mxu0 0
      %1018 = vmatmul.mubr.bf16.gmra.mrb[0].mxu0 %v975
      %v1019 = vpop.f32.mrb[0].mxu0
      %v1020 = vadd.f32 %v944, %v1019
      %v1021 = vpop.f32.mrb[0].mxu0
      %v1022 = vpop.f32.mrb[0].mxu0
      %v1023 = vadd.f32 %v944, %v1022
      %v1024 = vpop.f32.mrb[0].mxu0
      %1025 = vdwg.mxu0
      %v1026 = vld [vmem:[%s4] sm:$0xf]
      %v1027 = vld [vmem:[%s4 + $0x4] sm:$0xf]
      %v1028 = vld [vmem:[%s4 + $0x8] sm:$0xf]
      %v1029 = vld [vmem:[%s4 + $0xc] sm:$0xf]
      %v1030 = vld [vmem:[%s4 + $0x10] sm:$0xf]
      %v1031 = vld [vmem:[%s4 + $0x14] sm:$0xf]
      %v1032 = vld [vmem:[%s4 + $0x18] sm:$0xf]
      %v1033 = vld [vmem:[%s4 + $0x1c] sm:$0xf]
      %v1034 = vld [vmem:[%s5] sm:$0x1]
      %v1036 = vlaneseq
      %v1037 = vshrl.u32 %v1036, 7
      %v1038 = vsub.s32 0, %v1037
      %v1039 = vrot.slane %v1034, %v1038
      %v1049 = vunpack.c.l.b16 %v1026
      %v1050 = vunpack.c.l.b16 %v1027
      %v1051 = vunpack.c.l.b16 %v1028
      %v1052 = vunpack.c.l.b16 %v1029
      %v1053 = vunpack.c.l.b16 %v1030
      %v1054 = vunpack.c.l.b16 %v1031
      %v1055 = vunpack.c.l.b16 %v1032
      %v1056 = vunpack.c.l.b16 %v1033
      %v1057 = vpack.c.b16 %v1050, %v1049
      %v1058 = vpack.c.b16 %v1052, %v1051
      %v1059 = vpack.c.b16 %v1054, %v1053
      %v1060 = vpack.c.b16 %v1056, %v1055
      %1065 = vmatprep.subr.bf16.mxu0 0
      %1066 = vmatpush1.bf16.msra.mxu0 %v1057
      %1067 = vmatprep.subr.bf16.mxu0 0
      %1068 = vmatpush1.bf16.msra.mxu0 %v1058
      %1069 = vmatprep.subr.bf16.mxu0 0
      %1070 = vmatpush1.bf16.msra.mxu0 %v1059
      %1071 = vmatprep.subr.bf16.mxu0 0
      %1072 = vmatpush1.bf16.msra.mxu0 %v1060
      %1073 = vmatprep.subr.bf16.mxu0 0
      %1074 = vmatpush1.bf16.msra.mxu0 0
      %1075 = vmatprep.subr.bf16.mxu0 0
      %1076 = vmatpush1.bf16.msra.mxu0 0
      %1077 = vmatprep.subr.bf16.mxu0 0
      %1078 = vmatpush1.bf16.msra.mxu0 0
      %1079 = vmatprep.subr.bf16.mxu0 0
      %1080 = vmatpush1.bf16.msra.mxu0 0
      %1081 = vmatprep.subr.bf16.mxu0 0
      %1082 = vmatpush1.bf16.msra.mxu0 0
      %1083 = vmatprep.subr.bf16.mxu0 0
      %1084 = vmatpush1.bf16.msra.mxu0 0
      %1085 = vmatprep.subr.bf16.mxu0 0
      %1086 = vmatpush1.bf16.msra.mxu0 0
      %1087 = vmatprep.subr.bf16.mxu0 0
      %1088 = vmatpush1.bf16.msra.mxu0 0
      %1089 = vmatprep.subr.bf16.mxu0 0
      %1090 = vmatpush1.bf16.msra.mxu0 0
      %1091 = vmatprep.subr.bf16.mxu0 0
      %1092 = vmatpush1.bf16.msra.mxu0 0
      %1093 = vmatprep.subr.bf16.mxu0 0
      %1094 = vmatpush1.bf16.msra.mxu0 0
      %1095 = vmatprep.subr.bf16.mxu0 0
      %1096 = vmatpush1.bf16.msra.mxu0 0
      %1097 = vmatprep.mubr.bf16.mxu0 0
      %1098 = vmatmul.mubr.bf16.gmra.mrb[0].mxu0 %v972
      %v1099 = vpop.f32.mrb[0].mxu0
      %v1100 = vadd.f32 %v1039, %v1099
      %v1101 = vpop.f32.mrb[0].mxu0
      %v1102 = vpop.f32.mrb[0].mxu0
      %v1103 = vadd.f32 %v1039, %v1102
      %v1104 = vpop.f32.mrb[0].mxu0
      %1105 = vmatprep.mubr.bf16.mxu0 0
      %1106 = vmatmul.mubr.bf16.gmra.mrb[0].mxu0 %v975
      %v1107 = vpop.f32.mrb[0].mxu0
      %v1108 = vadd.f32 %v1039, %v1107
      %v1109 = vpop.f32.mrb[0].mxu0
      %v1110 = vpop.f32.mrb[0].mxu0
      %v1111 = vadd.f32 %v1039, %v1110
      %v1112 = vpop.f32.mrb[0].mxu0
      %1113 = vdwg.mxu0
      %v1114 = vld [vmem:[%s6] sm:$0xf]
      %v1115 = vld [vmem:[%s6 + $0x4] sm:$0xf]
      %v1116 = vld [vmem:[%s6 + $0x8] sm:$0xf]
      %v1117 = vld [vmem:[%s6 + $0xc] sm:$0xf]
      %v1118 = vld [vmem:[%s6 + $0x10] sm:$0xf]
      %v1119 = vld [vmem:[%s6 + $0x14] sm:$0xf]
      %v1120 = vld [vmem:[%s6 + $0x18] sm:$0xf]
      %v1121 = vld [vmem:[%s6 + $0x1c] sm:$0xf]
      %v1122 = vld [vmem:[%s7] sm:$0x1]
      %v1124 = vlaneseq
      %v1125 = vshrl.u32 %v1124, 7
      %v1126 = vsub.s32 0, %v1125
      %v1127 = vrot.slane %v1122, %v1126
      %v1137 = vunpack.c.l.b16 %v1114
      %v1138 = vunpack.c.l.b16 %v1115
      %v1139 = vunpack.c.l.b16 %v1116
      %v1140 = vunpack.c.l.b16 %v1117
      %v1141 = vunpack.c.l.b16 %v1118
      %v1142 = vunpack.c.l.b16 %v1119
      %v1143 = vunpack.c.l.b16 %v1120
      %v1144 = vunpack.c.l.b16 %v1121
      %v1145 = vpack.c.b16 %v1138, %v1137
      %v1146 = vpack.c.b16 %v1140, %v1139
      %v1147 = vpack.c.b16 %v1142, %v1141
      %v1148 = vpack.c.b16 %v1144, %v1143
      %1153 = vmatprep.subr.bf16.mxu0 0
      %1154 = vmatpush1.bf16.msra.mxu0 %v1145
      %1155 = vmatprep.subr.bf16.mxu0 0
      %1156 = vmatpush1.bf16.msra.mxu0 %v1146
      %1157 = vmatprep.subr.bf16.mxu0 0
      %1158 = vmatpush1.bf16.msra.mxu0 %v1147
      %1159 = vmatprep.subr.bf16.mxu0 0
      %1160 = vmatpush1.bf16.msra.mxu0 %v1148
      %1161 = vmatprep.subr.bf16.mxu0 0
      %1162 = vmatpush1.bf16.msra.mxu0 0
      %1163 = vmatprep.subr.bf16.mxu0 0
      %1164 = vmatpush1.bf16.msra.mxu0 0
      %1165 = vmatprep.subr.bf16.mxu0 0
      %1166 = vmatpush1.bf16.msra.mxu0 0
      %1167 = vmatprep.subr.bf16.mxu0 0
      %1168 = vmatpush1.bf16.msra.mxu0 0
      %1169 = vmatprep.subr.bf16.mxu0 0
      %1170 = vmatpush1.bf16.msra.mxu0 0
      %1171 = vmatprep.subr.bf16.mxu0 0
      %1172 = vmatpush1.bf16.msra.mxu0 0
      %1173 = vmatprep.subr.bf16.mxu0 0
      %1174 = vmatpush1.bf16.msra.mxu0 0
      %1175 = vmatprep.subr.bf16.mxu0 0
      %1176 = vmatpush1.bf16.msra.mxu0 0
      %1177 = vmatprep.subr.bf16.mxu0 0
      %1178 = vmatpush1.bf16.msra.mxu0 0
      %1179 = vmatprep.subr.bf16.mxu0 0
      %1180 = vmatpush1.bf16.msra.mxu0 0
      %1181 = vmatprep.subr.bf16.mxu0 0
      %1182 = vmatpush1.bf16.msra.mxu0 0
      %1183 = vmatprep.subr.bf16.mxu0 0
      %1184 = vmatpush1.bf16.msra.mxu0 0
      %1185 = vmatprep.mubr.bf16.mxu0 0
      %1186 = vmatmul.mubr.bf16.gmra.mrb[0].mxu0 %v972
      %v1187 = vpop.f32.mrb[0].mxu0
      %v1188 = vadd.f32 %v1127, %v1187
      %v1189 = vpop.f32.mrb[0].mxu0
      %v1190 = vpop.f32.mrb[0].mxu0
      %v1191 = vadd.f32 %v1127, %v1190
      %v1192 = vpop.f32.mrb[0].mxu0
      %1193 = vmatprep.mubr.bf16.mxu0 0
      %1194 = vmatmul.mubr.bf16.gmra.mrb[0].mxu0 %v975
      %v1195 = vpop.f32.mrb[0].mxu0
      %v1196 = vadd.f32 %v1127, %v1195
      %v1197 = vpop.f32.mrb[0].mxu0
      %v1198 = vpop.f32.mrb[0].mxu0
      %v1199 = vadd.f32 %v1127, %v1198
      %v1200 = vpop.f32.mrb[0].mxu0
      %1201 = vdwg.mxu0
      %v1202 = vld [vmem:[%s8] sm:$0xf]
      %v1203 = vld [vmem:[%s8 + $0x4] sm:$0xf]
      %v1204 = vld [vmem:[%s8 + $0x8] sm:$0xf]
      %v1205 = vld [vmem:[%s8 + $0xc] sm:$0xf]
      %v1206 = vld [vmem:[%s8 + $0x10] sm:$0xf]
      %v1207 = vld [vmem:[%s8 + $0x14] sm:$0xf]
      %v1208 = vld [vmem:[%s8 + $0x18] sm:$0xf]
      %v1209 = vld [vmem:[%s8 + $0x1c] sm:$0xf]
      %v1218 = vunpack.c.l.b16 %v1202
      %v1219 = vunpack.c.l.b16 %v1203
      %v1220 = vunpack.c.l.b16 %v1204
      %v1221 = vunpack.c.l.b16 %v1205
      %v1222 = vunpack.c.l.b16 %v1206
      %v1223 = vunpack.c.l.b16 %v1207
      %v1224 = vunpack.c.l.b16 %v1208
      %v1225 = vunpack.c.l.b16 %v1209
      %v1226 = vpack.c.b16 %v1219, %v1218
      %v1227 = vpack.c.b16 %v1221, %v1220
      %v1228 = vpack.c.b16 %v1223, %v1222
      %v1229 = vpack.c.b16 %v1225, %v1224
      %1234 = vmatprep.subr.bf16.mxu0 0
      %1235 = vmatpush1.bf16.msra.mxu0 %v1226
      %1236 = vmatprep.subr.bf16.mxu0 0
      %1237 = vmatpush1.bf16.msra.mxu0 %v1227
      %1238 = vmatprep.subr.bf16.mxu0 0
      %1239 = vmatpush1.bf16.msra.mxu0 %v1228
      %1240 = vmatprep.subr.bf16.mxu0 0
      %1241 = vmatpush1.bf16.msra.mxu0 %v1229
      %1242 = vmatprep.subr.bf16.mxu0 0
      %1243 = vmatpush1.bf16.msra.mxu0 0
      %1244 = vmatprep.subr.bf16.mxu0 0
      %1245 = vmatpush1.bf16.msra.mxu0 0
      %1246 = vmatprep.subr.bf16.mxu0 0
      %1247 = vmatpush1.bf16.msra.mxu0 0
      %1248 = vmatprep.subr.bf16.mxu0 0
      %1249 = vmatpush1.bf16.msra.mxu0 0
      %1250 = vmatprep.subr.bf16.mxu0 0
      %1251 = vmatpush1.bf16.msra.mxu0 0
      %1252 = vmatprep.subr.bf16.mxu0 0
      %1253 = vmatpush1.bf16.msra.mxu0 0
      %1254 = vmatprep.subr.bf16.mxu0 0
      %1255 = vmatpush1.bf16.msra.mxu0 0
      %1256 = vmatprep.subr.bf16.mxu0 0
      %1257 = vmatpush1.bf16.msra.mxu0 0
      %1258 = vmatprep.subr.bf16.mxu0 0
      %1259 = vmatpush1.bf16.msra.mxu0 0
      %1260 = vmatprep.subr.bf16.mxu0 0
      %1261 = vmatpush1.bf16.msra.mxu0 0
      %1262 = vmatprep.subr.bf16.mxu0 0
      %1263 = vmatpush1.bf16.msra.mxu0 0
      %1264 = vmatprep.subr.bf16.mxu0 0
      %1265 = vmatpush1.bf16.msra.mxu0 0
      %1266 = vmatprep.mubr.bf16.mxu0 0
      %1267 = vmatmul.mubr.bf16.gmra.mrb[0].mxu0 %v972
      %v1268 = vpop.f32.mrb[0].mxu0
      %v1269 = vadd.f32 0.0, %v1268
      %v1270 = vpop.f32.mrb[0].mxu0
      %v1271 = vpop.f32.mrb[0].mxu0
      %v1272 = vadd.f32 0.0, %v1271
      %v1273 = vpop.f32.mrb[0].mxu0
      %1274 = vmatprep.mubr.bf16.mxu0 0
      %1275 = vmatmul.mubr.bf16.gmra.mrb[0].mxu0 %v975
      %v1276 = vpop.f32.mrb[0].mxu0
      %v1277 = vadd.f32 0.0, %v1276
      %v1278 = vpop.f32.mrb[0].mxu0
      %v1279 = vpop.f32.mrb[0].mxu0
      %v1280 = vadd.f32 0.0, %v1279
      %v1281 = vpop.f32.mrb[0].mxu0
      %1282 = vdwg.mxu0
      %v1283 = vtanh.pop %v1269
      %v1284 = vtanh.pop %v1272
      %v1285 = vtanh.pop %v1277
      %v1286 = vtanh.pop %v1280
      %v1287 = vpack.c.bf16 %v1284, %v1283
      %v1288 = vpack.c.bf16 %v1286, %v1285
      %v1289 = vld [vmem:[%s9] sm:$0xf]
      %v1290 = vld [vmem:[%s9 + $0x4] sm:$0xf]
      %v1291 = vld [vmem:[%s9 + $0x8] sm:$0xf]
      %v1292 = vld [vmem:[%s9 + $0xc] sm:$0xf]
      %v1297 = vunpack.c.l.b16 %v1289
      %v1298 = vunpack.c.l.b16 %v1290
      %v1299 = vunpack.c.l.b16 %v1291
      %v1300 = vunpack.c.l.b16 %v1292
      %v1301 = vpack.c.b16 %v1298, %v1297
      %v1302 = vpack.c.b16 %v1300, %v1299
      %vm1305 = vcmask 261120
      %v1307 = vsel %vm1305, %v1287, 0
      %v1310 = vsel %vm1305, %v1288, 0
      %1312 = vmatprep.subr.bf16.mxu0 0
      %1313 = vmatpush1.bf16.msra.mxu0 %v1301
      %1314 = vmatprep.subr.bf16.mxu0 0
      %1315 = vmatpush1.bf16.msra.mxu0 %v1302
      %1316 = vmatprep.subr.bf16.mxu0 0
      %1317 = vmatpush1.bf16.msra.mxu0 0
      %1318 = vmatprep.subr.bf16.mxu0 0
      %1319 = vmatpush1.bf16.msra.mxu0 0
      %1320 = vmatprep.subr.bf16.mxu0 0
      %1321 = vmatpush1.bf16.msra.mxu0 0
      %1322 = vmatprep.subr.bf16.mxu0 0
      %1323 = vmatpush1.bf16.msra.mxu0 0
      %1324 = vmatprep.subr.bf16.mxu0 0
      %1325 = vmatpush1.bf16.msra.mxu0 0
      %1326 = vmatprep.subr.bf16.mxu0 0
      %1327 = vmatpush1.bf16.msra.mxu0 0
      %1328 = vmatprep.subr.bf16.mxu0 0
      %1329 = vmatpush1.bf16.msra.mxu0 0
      %1330 = vmatprep.subr.bf16.mxu0 0
      %1331 = vmatpush1.bf16.msra.mxu0 0
      %1332 = vmatprep.subr.bf16.mxu0 0
      %1333 = vmatpush1.bf16.msra.mxu0 0
      %1334 = vmatprep.subr.bf16.mxu0 0
      %1335 = vmatpush1.bf16.msra.mxu0 0
      %1336 = vmatprep.subr.bf16.mxu0 0
      %1337 = vmatpush1.bf16.msra.mxu0 0
      %1338 = vmatprep.subr.bf16.mxu0 0
      %1339 = vmatpush1.bf16.msra.mxu0 0
      %1340 = vmatprep.subr.bf16.mxu0 0
      %1341 = vmatpush1.bf16.msra.mxu0 0
      %1342 = vmatprep.subr.bf16.mxu0 0
      %1343 = vmatpush1.bf16.msra.mxu0 0
      %1344 = vmatprep.mubr.bf16.mxu0 0
      %1345 = vmatmul.mubr.bf16.gmra.mrb[0].mxu0 %v1307
      %v1346 = vpop.f32.mrb[0].mxu0
      %v1347 = vadd.f32 0.0, %v1346
      %v1348 = vpop.f32.mrb[0].mxu0
      %v1349 = vpop.f32.mrb[0].mxu0
      %v1350 = vadd.f32 0.0, %v1349
      %v1351 = vpop.f32.mrb[0].mxu0
      %1352 = vmatprep.mubr.bf16.mxu0 0
      %1353 = vmatmul.mubr.bf16.gmra.mrb[0].mxu0 %v1310
      %v1354 = vpop.f32.mrb[0].mxu0
      %v1355 = vadd.f32 0.0, %v1354
      %v1356 = vpop.f32.mrb[0].mxu0
      %v1357 = vpop.f32.mrb[0].mxu0
      %v1358 = vadd.f32 0.0, %v1357
      %v1359 = vpop.f32.mrb[0].mxu0
      %1360 = vdwg.mxu0
      %v1361 = vld [vmem:[%s10] sm:$0x1]
      %v1363 = vlaneseq
      %v1364 = vshrl.u32 %v1363, 7
      %v1365 = vsub.s32 0, %v1364
      %v1366 = vrot.slane %v1361, %v1365
      %v1368 = vadd.f32 %v1366, %v1347
      %v1369 = vadd.f32 %v1366, %v1350
      %v1370 = vadd.f32 %v1366, %v1355
      %v1371 = vadd.f32 %v1366, %v1358
      %v1372 = vsub.f32 0.0, %v1368
      %v1373 = vsub.f32 0.0, %v1369
      %v1374 = vsub.f32 0.0, %v1370
      %v1375 = vsub.f32 0.0, %v1371
      %v1376 = vmax.f32 %v1372, 0.0
      %v1377 = vmax.f32 %v1373, 0.0
      %v1378 = vmax.f32 %v1374, 0.0
      %v1379 = vmax.f32 %v1375, 0.0
      %vm1380 = vcmp.ne.f32.partialorder %v1372, %v1372
      %vm1381 = vcmp.ne.f32.partialorder %v1373, %v1373
      %vm1382 = vcmp.ne.f32.partialorder %v1374, %v1374
      %vm1383 = vcmp.ne.f32.partialorder %v1375, %v1375
      %v1384 = vadd.f32 %v1372, 0.0
      %v1385 = vadd.f32 %v1373, 0.0
      %v1386 = vadd.f32 %v1374, 0.0
      %v1387 = vadd.f32 %v1375, 0.0
      %v1388 = vand.u32 2147483647, %v1372
      %v1389 = vand.u32 2147483647, %v1373
      %v1390 = vand.u32 2147483647, %v1374
      %v1391 = vand.u32 2147483647, %v1375
      %v1392 = vsub.f32 0.0, %v1388
      %v1393 = vsub.f32 0.0, %v1389
      %v1394 = vsub.f32 0.0, %v1390
      %v1395 = vsub.f32 0.0, %v1391
      %v1396 = vmul.f32 %v1392, 1.442695
      %v1397 = vpow.pop %v1396
      %v1398 = vmul.f32 %v1393, 1.442695
      %v1399 = vpow.pop %v1398
      %v1400 = vmul.f32 %v1394, 1.442695
      %v1401 = vpow.pop %v1400
      %v1402 = vmul.f32 %v1395, 1.442695
      %v1403 = vpow.pop %v1402
      %v1404 = vadd.f32 %v1397, 1.0
      %v1405 = vlog2.pop %v1404
      %v1406 = vmul.f32 %v1405, 0.6931472
      %v1407 = vmul.f32 -0.5, %v1397
      %v1408 = vadd.f32 %v1407, 1.0
      %v1409 = vmul.f32 %v1408, %v1397
      %v1410 = vand.u32 2147483647, %v1397
      %vm1411 = vcmp.lt.f32.partialorder %v1410, 0.0004427343
      %v1412 = vsel %vm1411, %v1409, %v1406
      %v1413 = vadd.f32 %v1399, 1.0
      %v1414 = vlog2.pop %v1413
      %v1415 = vmul.f32 %v1414, 0.6931472
      %v1416 = vmul.f32 -0.5, %v1399
      %v1417 = vadd.f32 %v1416, 1.0
      %v1418 = vmul.f32 %v1417, %v1399
      %v1419 = vand.u32 2147483647, %v1399
      %vm1420 = vcmp.lt.f32.partialorder %v1419, 0.0004427343
      %v1421 = vsel %vm1420, %v1418, %v1415
      %v1422 = vadd.f32 %v1401, 1.0
      %v1423 = vlog2.pop %v1422
      %v1424 = vmul.f32 %v1423, 0.6931472
      %v1425 = vmul.f32 -0.5, %v1401
      %v1426 = vadd.f32 %v1425, 1.0
      %v1427 = vmul.f32 %v1426, %v1401
      %v1428 = vand.u32 2147483647, %v1401
      %vm1429 = vcmp.lt.f32.partialorder %v1428, 0.0004427343
      %v1430 = vsel %vm1429, %v1427, %v1424
      %v1431 = vadd.f32 %v1403, 1.0
      %v1432 = vlog2.pop %v1431
      %v1433 = vmul.f32 %v1432, 0.6931472
      %v1434 = vmul.f32 -0.5, %v1403
      %v1435 = vadd.f32 %v1434, 1.0
      %v1436 = vmul.f32 %v1435, %v1403
      %v1437 = vand.u32 2147483647, %v1403
      %vm1438 = vcmp.lt.f32.partialorder %v1437, 0.0004427343
      %v1439 = vsel %vm1438, %v1436, %v1433
      %v1440 = vadd.f32 %v1376, %v1412
      %v1441 = vadd.f32 %v1377, %v1421
      %v1442 = vadd.f32 %v1378, %v1430
      %v1443 = vadd.f32 %v1379, %v1439
      %v1444 = vsel %vm1380, %v1384, %v1440
      %v1445 = vsel %vm1381, %v1385, %v1441
      %v1446 = vsel %vm1382, %v1386, %v1442
      %v1447 = vsel %vm1383, %v1387, %v1443
      %v1448 = vsub.f32 0.0, %v1444
      %v1449 = vsub.f32 0.0, %v1445
      %v1450 = vsub.f32 0.0, %v1446
      %v1451 = vsub.f32 0.0, %v1447
      %v1452 = vsub.f32 %v1448, 0.5
      %v1453 = vsub.f32 %v1449, 0.5
      %v1454 = vsub.f32 %v1450, 0.5
      %v1455 = vsub.f32 %v1451, 0.5
      %v1456 = vmul.f32 %v1452, 1.442695
      %v1457 = vpow.pop %v1456
      %v1458 = vmul.f32 %v1453, 1.442695
      %v1459 = vpow.pop %v1458
      %v1460 = vmul.f32 %v1454, 1.442695
      %v1461 = vpow.pop %v1460
      %v1462 = vmul.f32 %v1455, 1.442695
      %v1463 = vpow.pop %v1462
      %v1464 = vsub.f32 0.0, %v1457
      %v1465 = vsub.f32 0.0, %v1459
      %v1466 = vsub.f32 0.0, %v1461
      %v1467 = vsub.f32 0.0, %v1463
      %v1468 = vmul.f32 %v1464, 1.442695
      %v1469 = vpow.pop %v1468
      %v1470 = vmul.f32 %v1465, 1.442695
      %v1471 = vpow.pop %v1470
      %v1472 = vmul.f32 %v1466, 1.442695
      %v1473 = vpow.pop %v1472
      %v1474 = vmul.f32 %v1467, 1.442695
      %v1475 = vpow.pop %v1474
      %v1476 = vld [vmem:[%s11] sm:$0xf]
      %v1477 = vld [vmem:[%s11 + $0x4] sm:$0xf]
      %v1478 = vld [vmem:[%s11 + $0x8] sm:$0xf]
      %v1479 = vld [vmem:[%s11 + $0xc] sm:$0xf]
      %v1480 = vld [vmem:[%s11 + $0x10] sm:$0xf]
      %v1481 = vld [vmem:[%s11 + $0x14] sm:$0xf]
      %v1482 = vld [vmem:[%s11 + $0x18] sm:$0xf]
      %v1483 = vld [vmem:[%s11 + $0x1c] sm:$0xf]
      %v1492 = vunpack.c.l.b16 %v1476
      %v1493 = vunpack.c.l.b16 %v1477
      %v1494 = vunpack.c.l.b16 %v1478
      %v1495 = vunpack.c.l.b16 %v1479
      %v1496 = vunpack.c.l.b16 %v1480
      %v1497 = vunpack.c.l.b16 %v1481
      %v1498 = vunpack.c.l.b16 %v1482
      %v1499 = vunpack.c.l.b16 %v1483
      %v1500 = vpack.c.b16 %v1493, %v1492
      %v1501 = vpack.c.b16 %v1495, %v1494
      %v1502 = vpack.c.b16 %v1497, %v1496
      %v1503 = vpack.c.b16 %v1499, %v1498
      %1508 = vmatprep.subr.bf16.mxu0 0
      %1509 = vmatpush1.bf16.msra.mxu0 %v1500
      %1510 = vmatprep.subr.bf16.mxu0 0
      %1511 = vmatpush1.bf16.msra.mxu0 %v1501
      %1512 = vmatprep.subr.bf16.mxu0 0
      %1513 = vmatpush1.bf16.msra.mxu0 %v1502
      %1514 = vmatprep.subr.bf16.mxu0 0
      %1515 = vmatpush1.bf16.msra.mxu0 %v1503
      %1516 = vmatprep.subr.bf16.mxu0 0
      %1517 = vmatpush1.bf16.msra.mxu0 0
      %1518 = vmatprep.subr.bf16.mxu0 0
      %1519 = vmatpush1.bf16.msra.mxu0 0
      %1520 = vmatprep.subr.bf16.mxu0 0
      %1521 = vmatpush1.bf16.msra.mxu0 0
      %1522 = vmatprep.subr.bf16.mxu0 0
      %1523 = vmatpush1.bf16.msra.mxu0 0
      %1524 = vmatprep.subr.bf16.mxu0 0
      %1525 = vmatpush1.bf16.msra.mxu0 0
      %1526 = vmatprep.subr.bf16.mxu0 0
      %1527 = vmatpush1.bf16.msra.mxu0 0
      %1528 = vmatprep.subr.bf16.mxu0 0
      %1529 = vmatpush1.bf16.msra.mxu0 0
      %1530 = vmatprep.subr.bf16.mxu0 0
      %1531 = vmatpush1.bf16.msra.mxu0 0
      %1532 = vmatprep.subr.bf16.mxu0 0
      %1533 = vmatpush1.bf16.msra.mxu0 0
      %1534 = vmatprep.subr.bf16.mxu0 0
      %1535 = vmatpush1.bf16.msra.mxu0 0
      %1536 = vmatprep.subr.bf16.mxu0 0
      %1537 = vmatpush1.bf16.msra.mxu0 0
      %1538 = vmatprep.subr.bf16.mxu0 0
      %1539 = vmatpush1.bf16.msra.mxu0 0
      %1540 = vmatprep.mubr.bf16.mxu0 0
      %1541 = vmatmul.mubr.bf16.gmra.mrb[0].mxu0 %v972
      %v1542 = vpop.f32.mrb[0].mxu0
      %v1543 = vadd.f32 0.0, %v1542
      %v1544 = vpop.f32.mrb[0].mxu0
      %v1545 = vpop.f32.mrb[0].mxu0
      %v1546 = vadd.f32 0.0, %v1545
      %v1547 = vpop.f32.mrb[0].mxu0
      %1548 = vmatprep.mubr.bf16.mxu0 0
      %1549 = vmatmul.mubr.bf16.gmra.mrb[0].mxu0 %v975
      %v1550 = vpop.f32.mrb[0].mxu0
      %v1551 = vadd.f32 0.0, %v1550
      %v1552 = vpop.f32.mrb[0].mxu0
      %v1553 = vpop.f32.mrb[0].mxu0
      %v1554 = vadd.f32 0.0, %v1553
      %v1555 = vpop.f32.mrb[0].mxu0
      %1556 = vdwg.mxu0
      %v1557 = vld [vmem:[%s13] sm:$0x1]
      %v1558 = vpack.c.bf16 %v1546, %v1543
      %v1559 = vpack.c.bf16 %v1554, %v1551
      %v1560 = vld [vmem:[%s12] sm:$0xf]
      %v1561 = vld [vmem:[%s12 + $0x4] sm:$0xf]
      %v1562 = vld [vmem:[%s12 + $0x8] sm:$0xf]
      %v1563 = vld [vmem:[%s12 + $0xc] sm:$0xf]
      %v1568 = vunpack.c.l.b16 %v1560
      %v1569 = vunpack.c.l.b16 %v1561
      %v1570 = vunpack.c.l.b16 %v1562
      %v1571 = vunpack.c.l.b16 %v1563
      %v1572 = vpack.c.b16 %v1569, %v1568
      %v1573 = vpack.c.b16 %v1571, %v1570
      %v1577 = vsel %vm1305, %v1558, 0
      %v1580 = vsel %vm1305, %v1559, 0
      %1582 = vmatprep.subr.bf16.mxu0 0
      %1583 = vmatpush1.bf16.msra.mxu0 %v1572
      %1584 = vmatprep.subr.bf16.mxu0 0
      %1585 = vmatpush1.bf16.msra.mxu0 %v1573
      %1586 = vmatprep.subr.bf16.mxu0 0
      %1587 = vmatpush1.bf16.msra.mxu0 0
      %1588 = vmatprep.subr.bf16.mxu0 0
      %1589 = vmatpush1.bf16.msra.mxu0 0
      %1590 = vmatprep.subr.bf16.mxu0 0
      %1591 = vmatpush1.bf16.msra.mxu0 0
      %1592 = vmatprep.subr.bf16.mxu0 0
      %1593 = vmatpush1.bf16.msra.mxu0 0
      %1594 = vmatprep.subr.bf16.mxu0 0
      %1595 = vmatpush1.bf16.msra.mxu0 0
      %1596 = vmatprep.subr.bf16.mxu0 0
      %1597 = vmatpush1.bf16.msra.mxu0 0
      %1598 = vmatprep.subr.bf16.mxu0 0
      %1599 = vmatpush1.bf16.msra.mxu0 0
      %1600 = vmatprep.subr.bf16.mxu0 0
      %1601 = vmatpush1.bf16.msra.mxu0 0
      %1602 = vmatprep.subr.bf16.mxu0 0
      %1603 = vmatpush1.bf16.msra.mxu0 0
      %1604 = vmatprep.subr.bf16.mxu0 0
      %1605 = vmatpush1.bf16.msra.mxu0 0
      %1606 = vmatprep.subr.bf16.mxu0 0
      %1607 = vmatpush1.bf16.msra.mxu0 0
      %1608 = vmatprep.subr.bf16.mxu0 0
      %1609 = vmatpush1.bf16.msra.mxu0 0
      %1610 = vmatprep.subr.bf16.mxu0 0
      %1611 = vmatpush1.bf16.msra.mxu0 0
      %1612 = vmatprep.subr.bf16.mxu0 0
      %1613 = vmatpush1.bf16.msra.mxu0 0
      %1614 = vmatprep.mubr.bf16.mxu0 0
      %1615 = vmatmul.mubr.bf16.gmra.mrb[0].mxu0 %v1577
      %v1616 = vpop.f32.mrb[0].mxu0
      %v1617 = vadd.f32 0.0, %v1616
      %v1618 = vpop.f32.mrb[0].mxu0
      %v1619 = vpop.f32.mrb[0].mxu0
      %v1620 = vadd.f32 0.0, %v1619
      %v1621 = vpop.f32.mrb[0].mxu0
      %1622 = vmatprep.mubr.bf16.mxu0 0
      %1623 = vmatmul.mubr.bf16.gmra.mrb[0].mxu0 %v1580
      %v1624 = vpop.f32.mrb[0].mxu0
      %v1625 = vadd.f32 0.0, %v1624
      %v1626 = vpop.f32.mrb[0].mxu0
      %v1627 = vpop.f32.mrb[0].mxu0
      %v1628 = vadd.f32 0.0, %v1627
      %v1629 = vpop.f32.mrb[0].mxu0
      %1630 = vdwg.mxu0
      %v1632 = vlaneseq
      %v1633 = vshrl.u32 %v1632, 7
      %v1634 = vsub.s32 0, %v1633
      %v1635 = vrot.slane %v1557, %v1634
      %v1637 = vadd.f32 %v1635, %v1617
      %v1638 = vadd.f32 %v1635, %v1620
      %v1639 = vadd.f32 %v1635, %v1625
      %v1640 = vadd.f32 %v1635, %v1628
      %v1641 = vxor.u32 %v1637, 2147483648
      %v1642 = vxor.u32 %v1638, 2147483648
      %v1643 = vxor.u32 %v1639, 2147483648
      %v1644 = vxor.u32 %v1640, 2147483648
      %v1645 = vmul.f32 %v1641, 1.442695
      %v1646 = vpow.pop %v1645
      %v1647 = vmul.f32 %v1642, 1.442695
      %v1648 = vpow.pop %v1647
      %v1649 = vmul.f32 %v1643, 1.442695
      %v1650 = vpow.pop %v1649
      %v1651 = vmul.f32 %v1644, 1.442695
      %v1652 = vpow.pop %v1651
      %v1653 = vadd.f32 %v1646, 1.0
      %v1654 = vadd.f32 %v1648, 1.0
      %v1655 = vadd.f32 %v1650, 1.0
      %v1656 = vadd.f32 %v1652, 1.0
      %v1657 = vrcp.pop %v1653
      %v1658 = vmul.f32 1.0, %v1657
      %v1659 = vrcp.pop %v1654
      %v1660 = vmul.f32 1.0, %v1659
      %v1661 = vrcp.pop %v1655
      %v1662 = vmul.f32 1.0, %v1661
      %v1663 = vrcp.pop %v1656
      %v1664 = vmul.f32 1.0, %v1663
      %v1665 = vld [vmem:[%s14] sm:$0xf]
      %v1666 = vld [vmem:[%s14 + $0x4] sm:$0xf]
      %v1667 = vld [vmem:[%s14 + $0x8] sm:$0xf]
      %v1668 = vld [vmem:[%s14 + $0xc] sm:$0xf]
      %v1669 = vld [vmem:[%s14 + $0x10] sm:$0xf]
      %v1670 = vld [vmem:[%s14 + $0x14] sm:$0xf]
      %v1671 = vld [vmem:[%s14 + $0x18] sm:$0xf]
      %v1672 = vld [vmem:[%s14 + $0x1c] sm:$0xf]
      %v1681 = vunpack.c.l.b16 %v1665
      %v1682 = vunpack.c.l.b16 %v1666
      %v1683 = vunpack.c.l.b16 %v1667
      %v1684 = vunpack.c.l.b16 %v1668
      %v1685 = vunpack.c.l.b16 %v1669
      %v1686 = vunpack.c.l.b16 %v1670
      %v1687 = vunpack.c.l.b16 %v1671
      %v1688 = vunpack.c.l.b16 %v1672
      %v1689 = vpack.c.b16 %v1682, %v1681
      %v1690 = vpack.c.b16 %v1684, %v1683
      %v1691 = vpack.c.b16 %v1686, %v1685
      %v1692 = vpack.c.b16 %v1688, %v1687
      %1697 = vmatprep.subr.bf16.mxu0 0
      %1698 = vmatpush1.bf16.msra.mxu0 %v1689
      %1699 = vmatprep.subr.bf16.mxu0 0
      %1700 = vmatpush1.bf16.msra.mxu0 %v1690
      %1701 = vmatprep.subr.bf16.mxu0 0
      %1702 = vmatpush1.bf16.msra.mxu0 %v1691
      %1703 = vmatprep.subr.bf16.mxu0 0
      %1704 = vmatpush1.bf16.msra.mxu0 %v1692
      %1705 = vmatprep.subr.bf16.mxu0 0
      %1706 = vmatpush1.bf16.msra.mxu0 0
      %1707 = vmatprep.subr.bf16.mxu0 0
      %1708 = vmatpush1.bf16.msra.mxu0 0
      %1709 = vmatprep.subr.bf16.mxu0 0
      %1710 = vmatpush1.bf16.msra.mxu0 0
      %1711 = vmatprep.subr.bf16.mxu0 0
      %1712 = vmatpush1.bf16.msra.mxu0 0
      %1713 = vmatprep.subr.bf16.mxu0 0
      %1714 = vmatpush1.bf16.msra.mxu0 0
      %1715 = vmatprep.subr.bf16.mxu0 0
      %1716 = vmatpush1.bf16.msra.mxu0 0
      %1717 = vmatprep.subr.bf16.mxu0 0
      %1718 = vmatpush1.bf16.msra.mxu0 0
      %1719 = vmatprep.subr.bf16.mxu0 0
      %1720 = vmatpush1.bf16.msra.mxu0 0
      %1721 = vmatprep.subr.bf16.mxu0 0
      %1722 = vmatpush1.bf16.msra.mxu0 0
      %1723 = vmatprep.subr.bf16.mxu0 0
      %1724 = vmatpush1.bf16.msra.mxu0 0
      %1725 = vmatprep.subr.bf16.mxu0 0
      %1726 = vmatpush1.bf16.msra.mxu0 0
      %1727 = vmatprep.subr.bf16.mxu0 0
      %1728 = vmatpush1.bf16.msra.mxu0 0
      %1729 = vmatprep.mubr.bf16.mxu0 0
      %1730 = vmatmul.mubr.bf16.gmra.mrb[0].mxu0 %v972
      %v1731 = vpop.f32.mrb[0].mxu0
      %v1732 = vadd.f32 0.0, %v1731
      %v1733 = vpop.f32.mrb[0].mxu0
      %v1734 = vpop.f32.mrb[0].mxu0
      %v1735 = vadd.f32 0.0, %v1734
      %v1736 = vpop.f32.mrb[0].mxu0
      %1737 = vmatprep.mubr.bf16.mxu0 0
      %1738 = vmatmul.mubr.bf16.gmra.mrb[0].mxu0 %v975
      %v1739 = vpop.f32.mrb[0].mxu0
      %v1740 = vadd.f32 0.0, %v1739
      %v1741 = vpop.f32.mrb[0].mxu0
      %v1742 = vpop.f32.mrb[0].mxu0
      %v1743 = vadd.f32 0.0, %v1742
      %v1744 = vpop.f32.mrb[0].mxu0
      %1745 = vdwg.mxu0
      %v1746 = vxor.u32 %v1732, 2147483648
      %v1747 = vxor.u32 %v1735, 2147483648
      %v1748 = vxor.u32 %v1740, 2147483648
      %v1749 = vxor.u32 %v1743, 2147483648
      %v1750 = vmul.f32 %v1746, 1.442695
      %v1751 = vpow.pop %v1750
      %v1752 = vmul.f32 %v1747, 1.442695
      %v1753 = vpow.pop %v1752
      %v1754 = vmul.f32 %v1748, 1.442695
      %v1755 = vpow.pop %v1754
      %v1756 = vmul.f32 %v1749, 1.442695
      %v1757 = vpow.pop %v1756
      %v1758 = vadd.f32 %v1751, 1.0
      %v1759 = vadd.f32 %v1753, 1.0
      %v1760 = vadd.f32 %v1755, 1.0
      %v1761 = vadd.f32 %v1757, 1.0
      %v1762 = vrcp.pop %v1758
      %v1763 = vmul.f32 1.0, %v1762
      %v1764 = vrcp.pop %v1759
      %v1765 = vmul.f32 1.0, %v1764
      %v1766 = vrcp.pop %v1760
      %v1767 = vmul.f32 1.0, %v1766
      %v1768 = vrcp.pop %v1761
      %v1769 = vmul.f32 1.0, %v1768
      %v1770 = vpack.c.bf16 %v1765, %v1763
      %v1771 = vpack.c.bf16 %v1769, %v1767
      %v1772 = vld [vmem:[%s15] sm:$0xf]
      %v1773 = vld [vmem:[%s15 + $0x4] sm:$0xf]
      %v1774 = vld [vmem:[%s15 + $0x8] sm:$0xf]
      %v1775 = vld [vmem:[%s15 + $0xc] sm:$0xf]
      %v1780 = vunpack.c.l.b16 %v1772
      %v1781 = vunpack.c.l.b16 %v1773
      %v1782 = vunpack.c.l.b16 %v1774
      %v1783 = vunpack.c.l.b16 %v1775
      %v1784 = vpack.c.b16 %v1781, %v1780
      %v1785 = vpack.c.b16 %v1783, %v1782
      %v1789 = vsel %vm1305, %v1770, 0
      %v1792 = vsel %vm1305, %v1771, 0
      %1794 = vmatprep.subr.bf16.mxu0 0
      %1795 = vmatpush1.bf16.msra.mxu0 %v1784
      %1796 = vmatprep.subr.bf16.mxu0 0
      %1797 = vmatpush1.bf16.msra.mxu0 %v1785
      %1798 = vmatprep.subr.bf16.mxu0 0
      %1799 = vmatpush1.bf16.msra.mxu0 0
      %1800 = vmatprep.subr.bf16.mxu0 0
      %1801 = vmatpush1.bf16.msra.mxu0 0
      %1802 = vmatprep.subr.bf16.mxu0 0
      %1803 = vmatpush1.bf16.msra.mxu0 0
      %1804 = vmatprep.subr.bf16.mxu0 0
      %1805 = vmatpush1.bf16.msra.mxu0 0
      %1806 = vmatprep.subr.bf16.mxu0 0
      %1807 = vmatpush1.bf16.msra.mxu0 0
      %1808 = vmatprep.subr.bf16.mxu0 0
      %1809 = vmatpush1.bf16.msra.mxu0 0
      %1810 = vmatprep.subr.bf16.mxu0 0
      %1811 = vmatpush1.bf16.msra.mxu0 0
      %1812 = vmatprep.subr.bf16.mxu0 0
      %1813 = vmatpush1.bf16.msra.mxu0 0
      %1814 = vmatprep.subr.bf16.mxu0 0
      %1815 = vmatpush1.bf16.msra.mxu0 0
      %1816 = vmatprep.subr.bf16.mxu0 0
      %1817 = vmatpush1.bf16.msra.mxu0 0
      %1818 = vmatprep.subr.bf16.mxu0 0
      %1819 = vmatpush1.bf16.msra.mxu0 0
      %1820 = vmatprep.subr.bf16.mxu0 0
      %1821 = vmatpush1.bf16.msra.mxu0 0
      %1822 = vmatprep.subr.bf16.mxu0 0
      %1823 = vmatpush1.bf16.msra.mxu0 0
      %1824 = vmatprep.subr.bf16.mxu0 0
      %1825 = vmatpush1.bf16.msra.mxu0 0
      %1826 = vmatprep.mubr.bf16.mxu0 0
      %1827 = vmatmul.mubr.bf16.gmra.mrb[0].mxu0 %v1789
      %v1828 = vpop.f32.mrb[0].mxu0
      %v1829 = vadd.f32 1.0, %v1828
      %v1830 = vpop.f32.mrb[0].mxu0
      %v1831 = vpop.f32.mrb[0].mxu0
      %v1832 = vadd.f32 1.0, %v1831
      %v1833 = vpop.f32.mrb[0].mxu0
      %1834 = vmatprep.mubr.bf16.mxu0 0
      %1835 = vmatmul.mubr.bf16.gmra.mrb[0].mxu0 %v1792
      %v1836 = vpop.f32.mrb[0].mxu0
      %v1837 = vadd.f32 1.0, %v1836
      %v1838 = vpop.f32.mrb[0].mxu0
      %v1839 = vpop.f32.mrb[0].mxu0
      %v1840 = vadd.f32 1.0, %v1839
      %v1841 = vpop.f32.mrb[0].mxu0
      %1842 = vdwg.mxu0
      %v1843 = vld [vmem:[%s16] sm:$0x1]
      %v1845 = vlaneseq
      %v1846 = vshrl.u32 %v1845, 7
      %v1847 = vsub.s32 0, %v1846
      %v1848 = vrot.slane %v1843, %v1847
      %v1850 = vmul.f32 %v1100, %v1848
      %v1851 = vmul.f32 %v1103, %v1848
      %v1852 = vmul.f32 %v1108, %v1848
      %v1853 = vmul.f32 %v1111, %v1848
      %v1854 = vmul.f32 %v1850, %v1850
      %v1855 = vmul.f32 %v1851, %v1851
      %v1856 = vmul.f32 %v1852, %v1852
      %v1857 = vmul.f32 %v1853, %v1853
      %v1858 = vld [vmem:[%s18] sm:$0xff]
      %v1859 = vld [vmem:[%s18 + $0x8] sm:$0xff]
      %v1860 = vld [vmem:[%s18 + $0x10] sm:$0xff]
      %v1861 = vld [vmem:[%s18 + $0x18] sm:$0xff]
      %v1862 = vld [vmem:[%s18 + $0x20] sm:$0xff]
      %v1863 = vld [vmem:[%s18 + $0x28] sm:$0xff]
      %v1864 = vld [vmem:[%s18 + $0x30] sm:$0xff]
      %v1865 = vld [vmem:[%s18 + $0x38] sm:$0xff]
      %v1867 = vsel %vm970, %v1854, 0
      %v1870 = vsel %vm970, %v1855, 0
      %v1873 = vsel %vm970, %v1856, 0
      %v1876 = vsel %vm970, %v1857, 0
      %1878 = vmatprep.subr.mxu0 0.0
      %1879 = vmatpush1.msra.mxu0 %v1858
      %1880 = vmatprep.subr.mxu0 0.0
      %1881 = vmatpush1.msra.mxu0 %v1859
      %1882 = vmatprep.subr.mxu0 0.0
      %1883 = vmatpush1.msra.mxu0 %v1860
      %1884 = vmatprep.subr.mxu0 0.0
      %1885 = vmatpush1.msra.mxu0 %v1861
      %1886 = vmatprep.subr.mxu0 0.0
      %1887 = vmatpush1.msra.mxu0 %v1862
      %1888 = vmatprep.subr.mxu0 0.0
      %1889 = vmatpush1.msra.mxu0 %v1863
      %1890 = vmatprep.subr.mxu0 0.0
      %1891 = vmatpush1.msra.mxu0 %v1864
      %1892 = vmatprep.subr.mxu0 0.0
      %1893 = vmatpush1.msra.mxu0 %v1865
      %1894 = vmatprep.subr.mxu0 0.0
      %1895 = vmatpush1.msra.mxu0 0.0
      %1896 = vmatprep.subr.mxu0 0.0
      %1897 = vmatpush1.msra.mxu0 0.0
      %1898 = vmatprep.subr.mxu0 0.0
      %1899 = vmatpush1.msra.mxu0 0.0
      %1900 = vmatprep.subr.mxu0 0.0
      %1901 = vmatpush1.msra.mxu0 0.0
      %1902 = vmatprep.subr.mxu0 0.0
      %1903 = vmatpush1.msra.mxu0 0.0
      %1904 = vmatprep.subr.mxu0 0.0
      %1905 = vmatpush1.msra.mxu0 0.0
      %1906 = vmatprep.subr.mxu0 0.0
      %1907 = vmatpush1.msra.mxu0 0.0
      %1908 = vmatprep.subr.mxu0 0.0
      %1909 = vmatpush1.msra.mxu0 0.0
      %1910 = vmatprep.subr.mxu0 0.0
      %1911 = vmatpush1.msra.mxu0 0.0
      %1912 = vmatprep.subr.mxu0 0.0
      %1913 = vmatpush1.msra.mxu0 0.0
      %1914 = vmatprep.subr.mxu0 0.0
      %1915 = vmatpush1.msra.mxu0 0.0
      %1916 = vmatprep.subr.mxu0 0.0
      %1917 = vmatpush1.msra.mxu0 0.0
      %1918 = vmatprep.subr.mxu0 0.0
      %1919 = vmatpush1.msra.mxu0 0.0
      %1920 = vmatprep.subr.mxu0 0.0
      %1921 = vmatpush1.msra.mxu0 0.0
      %1922 = vmatprep.subr.mxu0 0.0
      %1923 = vmatpush1.msra.mxu0 0.0
      %1924 = vmatprep.subr.mxu0 0.0
      %1925 = vmatpush1.msra.mxu0 0.0
      %1926 = vmatprep.subr.mxu0 0.0
      %1927 = vmatpush1.msra.mxu0 0.0
      %1928 = vmatprep.subr.mxu0 0.0
      %1929 = vmatpush1.msra.mxu0 0.0
      %1930 = vmatprep.subr.mxu0 0.0
      %1931 = vmatpush1.msra.mxu0 0.0
      %1932 = vmatprep.subr.mxu0 0.0
      %1933 = vmatpush1.msra.mxu0 0.0
      %1934 = vmatprep.subr.mxu0 0.0
      %1935 = vmatpush1.msra.mxu0 0.0
      %1936 = vmatprep.subr.mxu0 0.0
      %1937 = vmatpush1.msra.mxu0 0.0
      %1938 = vmatprep.subr.mxu0 0.0
      %1939 = vmatpush1.msra.mxu0 0.0
      %1940 = vmatprep.subr.mxu0 0.0
      %1941 = vmatpush1.msra.mxu0 0.0
      %1942 = vmatprep.mubr.f32.mxu0 0.0
      %1943 = vmatmul.mubr.f32.gmra.mrb[0].mxu0 %v1867
      %v1944 = vpop.f32.mrb[0].mxu0
      %v1945 = vadd.f32 0.0, %v1944
      %v1946 = vpop.f32.mrb[0].mxu0
      %1947 = vmatprep.mubr.f32.mxu0 0.0
      %1948 = vmatmul.mubr.f32.gmra.mrb[0].mxu0 %v1870
      %v1949 = vpop.f32.mrb[0].mxu0
      %v1950 = vadd.f32 0.0, %v1949
      %v1951 = vpop.f32.mrb[0].mxu0
      %1952 = vmatprep.mubr.f32.mxu0 0.0
      %1953 = vmatmul.mubr.f32.gmra.mrb[0].mxu0 %v1873
      %v1954 = vpop.f32.mrb[0].mxu0
      %v1955 = vadd.f32 0.0, %v1954
      %v1956 = vpop.f32.mrb[0].mxu0
      %1957 = vmatprep.mubr.f32.mxu0 0.0
      %1958 = vmatmul.mubr.f32.gmra.mrb[0].mxu0 %v1876
      %v1959 = vpop.f32.mrb[0].mxu0
      %v1960 = vadd.f32 0.0, %v1959
      %v1961 = vpop.f32.mrb[0].mxu0
      %1962 = vdwg.mxu0
      %v1963 = vmax.f32 %v1945, 1e-24
      %v1964 = vmax.f32 %v1950, 1e-24
      %v1965 = vmax.f32 %v1955, 1e-24
      %v1966 = vmax.f32 %v1960, 1e-24
      %v1967 = vrsqrt.pop %v1963
      %v1968 = vrsqrt.pop %v1964
      %v1969 = vrsqrt.pop %v1965
      %v1970 = vrsqrt.pop %v1966
      %v1971 = vld [vmem:[%s19] sm:$0xf]
      %vm1972 = vcmask 31744
      %v1974 = vsel %vm1972, %v1967, 0
      %v1977 = vsel %vm1972, %v1968, 0
      %v1980 = vsel %vm1972, %v1969, 0
      %v1983 = vsel %vm1972, %v1970, 0
      %vm1985 = vcmask 1043456
      %v1987 = vsel %vm1985, %v1971, 0
      %1989 = vmatprep.subr.mxu0 0.0
      %1990 = vmatpush1.msra.mxu0 %v1987
      %1991 = vmatprep.subr.mxu0 0.0
      %1992 = vmatpush1.msra.mxu0 0.0
      %1993 = vmatprep.subr.mxu0 0.0
      %1994 = vmatpush1.msra.mxu0 0.0
      %1995 = vmatprep.subr.mxu0 0.0
      %1996 = vmatpush1.msra.mxu0 0.0
      %1997 = vmatprep.subr.mxu0 0.0
      %1998 = vmatpush1.msra.mxu0 0.0
      %1999 = vmatprep.subr.mxu0 0.0
      %2000 = vmatpush1.msra.mxu0 0.0
      %2001 = vmatprep.subr.mxu0 0.0
      %2002 = vmatpush1.msra.mxu0 0.0
      %2003 = vmatprep.subr.mxu0 0.0
      %2004 = vmatpush1.msra.mxu0 0.0
      %2005 = vmatprep.subr.mxu0 0.0
      %2006 = vmatpush1.msra.mxu0 0.0
      %2007 = vmatprep.subr.mxu0 0.0
      %2008 = vmatpush1.msra.mxu0 0.0
      %2009 = vmatprep.subr.mxu0 0.0
      %2010 = vmatpush1.msra.mxu0 0.0
      %2011 = vmatprep.subr.mxu0 0.0
      %2012 = vmatpush1.msra.mxu0 0.0
      %2013 = vmatprep.subr.mxu0 0.0
      %2014 = vmatpush1.msra.mxu0 0.0
      %2015 = vmatprep.subr.mxu0 0.0
      %2016 = vmatpush1.msra.mxu0 0.0
      %2017 = vmatprep.subr.mxu0 0.0
      %2018 = vmatpush1.msra.mxu0 0.0
      %2019 = vmatprep.subr.mxu0 0.0
      %2020 = vmatpush1.msra.mxu0 0.0
      %2021 = vmatprep.subr.mxu0 0.0
      %2022 = vmatpush1.msra.mxu0 0.0
      %2023 = vmatprep.subr.mxu0 0.0
      %2024 = vmatpush1.msra.mxu0 0.0
      %2025 = vmatprep.subr.mxu0 0.0
      %2026 = vmatpush1.msra.mxu0 0.0
      %2027 = vmatprep.subr.mxu0 0.0
      %2028 = vmatpush1.msra.mxu0 0.0
      %2029 = vmatprep.subr.mxu0 0.0
      %2030 = vmatpush1.msra.mxu0 0.0
      %2031 = vmatprep.subr.mxu0 0.0
      %2032 = vmatpush1.msra.mxu0 0.0
      %2033 = vmatprep.subr.mxu0 0.0
      %2034 = vmatpush1.msra.mxu0 0.0
      %2035 = vmatprep.subr.mxu0 0.0
      %2036 = vmatpush1.msra.mxu0 0.0
      %2037 = vmatprep.subr.mxu0 0.0
      %2038 = vmatpush1.msra.mxu0 0.0
      %2039 = vmatprep.subr.mxu0 0.0
      %2040 = vmatpush1.msra.mxu0 0.0
      %2041 = vmatprep.subr.mxu0 0.0
      %2042 = vmatpush1.msra.mxu0 0.0
      %2043 = vmatprep.subr.mxu0 0.0
      %2044 = vmatpush1.msra.mxu0 0.0
      %2045 = vmatprep.subr.mxu0 0.0
      %2046 = vmatpush1.msra.mxu0 0.0
      %2047 = vmatprep.subr.mxu0 0.0
      %2048 = vmatpush1.msra.mxu0 0.0
      %2049 = vmatprep.subr.mxu0 0.0
      %2050 = vmatpush1.msra.mxu0 0.0
      %2051 = vmatprep.subr.mxu0 0.0
      %2052 = vmatpush1.msra.mxu0 0.0
      %2053 = vmatprep.mubr.f32.mxu0 0.0
      %2054 = vmatmul.mubr.f32.gmra.mrb[0].mxu0 %v1974
      %v2055 = vpop.f32.mrb[0].mxu0
      %v2056 = vadd.f32 0.0, %v2055
      %v2057 = vpop.f32.mrb[0].mxu0
      %2058 = vmatprep.mubr.f32.mxu0 0.0
      %2059 = vmatmul.mubr.f32.gmra.mrb[0].mxu0 %v1977
      %v2060 = vpop.f32.mrb[0].mxu0
      %v2061 = vadd.f32 0.0, %v2060
      %v2062 = vpop.f32.mrb[0].mxu0
      %2063 = vmatprep.mubr.f32.mxu0 0.0
      %2064 = vmatmul.mubr.f32.gmra.mrb[0].mxu0 %v1980
      %v2065 = vpop.f32.mrb[0].mxu0
      %v2066 = vadd.f32 0.0, %v2065
      %v2067 = vpop.f32.mrb[0].mxu0
      %2068 = vmatprep.mubr.f32.mxu0 0.0
      %2069 = vmatmul.mubr.f32.gmra.mrb[0].mxu0 %v1983
      %v2070 = vpop.f32.mrb[0].mxu0
      %v2071 = vadd.f32 0.0, %v2070
      %v2072 = vpop.f32.mrb[0].mxu0
      %2073 = vdwg.mxu0
      %v2074 = vmul.f32 %v1850, %v2056
      %v2075 = vmul.f32 %v1851, %v2061
      %v2076 = vmul.f32 %v1852, %v2066
      %v2077 = vmul.f32 %v1853, %v2071
      %v2078 = vsub.f32 %v1658, 1.0
      %v2079 = vsub.f32 %v1660, 1.0
      %v2080 = vsub.f32 %v1662, 1.0
      %v2081 = vsub.f32 %v1664, 1.0
      %v2082 = vld [vmem:[%s17] sm:$0x1]
      %v2084 = vlaneseq
      %v2085 = vshrl.u32 %v2084, 7
      %v2086 = vsub.s32 0, %v2085
      %v2087 = vrot.slane %v2082, %v2086
      %v2089 = vmul.f32 %v2078, %v2087
      %v2090 = vmul.f32 %v2079, %v2087
      %v2091 = vmul.f32 %v2080, %v2087
      %v2092 = vmul.f32 %v2081, %v2087
      %v2093 = vadd.f32 %v2089, 1.0
      %v2094 = vadd.f32 %v2090, 1.0
      %v2095 = vadd.f32 %v2091, 1.0
      %v2096 = vadd.f32 %v2092, 1.0
      %v2097 = vmul.f32 %v1100, %v2093
      %v2098 = vmul.f32 %v1103, %v2094
      %v2099 = vmul.f32 %v1108, %v2095
      %v2100 = vmul.f32 %v1111, %v2096
      %v2101 = vpack.c.bf16 %v1015, %v1012
      %v2102 = vpack.c.bf16 %v1023, %v1020
      %v2105 = vunpack.c.l.b16 %v2101
      %v2106 = vunpack.c.h.b16 %v2101
      %v2107 = vunpack.c.l.b16 %v2102
      %v2108 = vunpack.c.h.b16 %v2102
      %v2109 = vpack.c.b16 %v2105, %v2105
      %v2110 = vpack.c.b16 %v2106, %v2106
      %v2111 = vpack.c.b16 %v2107, %v2107
      %v2112 = vpack.c.b16 %v2108, %v2108
      %vm2117 = vcmask 519168
      %2118 = vst.msk [vmem:[%s858] sm:$0xf] %vm2117, %v2109
      %2119 = vst.msk [vmem:[%s858 + $0x4] sm:$0xf] %vm2117, %v2110
      %2120 = vst.msk [vmem:[%s858 + $0x8] sm:$0xf] %vm2117, %v2111
      %2121 = vst.msk [vmem:[%s858 + $0xc] sm:$0xf] %vm2117, %v2112
      %2122 = vst.msk [vmem:[%s864] sm:$0xff] %vm970, %v1469
      %2123 = vst.msk [vmem:[%s864 + $0x8] sm:$0xff] %vm970, %v1471
      %2124 = vst.msk [vmem:[%s864 + $0x10] sm:$0xff] %vm970, %v1473
      %2125 = vst.msk [vmem:[%s864 + $0x18] sm:$0xff] %vm970, %v1475
      %v2126 = vpack.c.bf16 %v2098, %v2097
      %v2127 = vpack.c.bf16 %v2100, %v2099
      %v2130 = vunpack.c.l.b16 %v2126
      %v2131 = vunpack.c.h.b16 %v2126
      %v2132 = vunpack.c.l.b16 %v2127
      %v2133 = vunpack.c.h.b16 %v2127
      %v2134 = vpack.c.b16 %v2130, %v2130
      %v2135 = vpack.c.b16 %v2131, %v2131
      %v2136 = vpack.c.b16 %v2132, %v2132
      %v2137 = vpack.c.b16 %v2133, %v2133
      %2142 = vst.msk [vmem:[%s870] sm:$0xf] %vm2117, %v2134
      %2143 = vst.msk [vmem:[%s870 + $0x4] sm:$0xf] %vm2117, %v2135
      %2144 = vst.msk [vmem:[%s870 + $0x8] sm:$0xf] %vm2117, %v2136
      %2145 = vst.msk [vmem:[%s870 + $0xc] sm:$0xf] %vm2117, %v2137
      %2146 = vst.msk [vmem:[%s876] sm:$0xff] %vm970, %v1188
      %2147 = vst.msk [vmem:[%s876 + $0x8] sm:$0xff] %vm970, %v1191
      %2148 = vst.msk [vmem:[%s876 + $0x10] sm:$0xff] %vm970, %v1196
      %2149 = vst.msk [vmem:[%s876 + $0x18] sm:$0xff] %vm970, %v1199
      %v2150 = vsub.f32 0.0, %v2074
      %v2151 = vsub.f32 0.0, %v2075
      %v2152 = vsub.f32 0.0, %v2076
      %v2153 = vsub.f32 0.0, %v2077
      %v2154 = vpack.c.bf16 %v2151, %v2150
      %v2155 = vpack.c.bf16 %v2153, %v2152
      %v2158 = vunpack.c.l.b16 %v2154
      %v2159 = vunpack.c.h.b16 %v2154
      %v2160 = vunpack.c.l.b16 %v2155
      %v2161 = vunpack.c.h.b16 %v2155
      %v2162 = vpack.c.b16 %v2158, %v2158
      %v2163 = vpack.c.b16 %v2159, %v2159
      %v2164 = vpack.c.b16 %v2160, %v2160
      %v2165 = vpack.c.b16 %v2161, %v2161
      %2170 = vst.msk [vmem:[%s882] sm:$0xf] %vm2117, %v2162
      %2171 = vst.msk [vmem:[%s882 + $0x4] sm:$0xf] %vm2117, %v2163
      %2172 = vst.msk [vmem:[%s882 + $0x8] sm:$0xf] %vm2117, %v2164
      %2173 = vst.msk [vmem:[%s882 + $0xc] sm:$0xf] %vm2117, %v2165
      %v2174 = vmul.f32 %v2074, %v1658
      %v2175 = vmul.f32 %v2075, %v1660
      %v2176 = vmul.f32 %v2076, %v1662
      %v2177 = vmul.f32 %v2077, %v1664
      %v2178 = vpack.c.bf16 %v2175, %v2174
      %v2179 = vpack.c.bf16 %v2177, %v2176
      %v2182 = vunpack.c.l.b16 %v2178
      %v2183 = vunpack.c.h.b16 %v2178
      %v2184 = vunpack.c.l.b16 %v2179
      %v2185 = vunpack.c.h.b16 %v2179
      %v2186 = vpack.c.b16 %v2182, %v2182
      %v2187 = vpack.c.b16 %v2183, %v2183
      %v2188 = vpack.c.b16 %v2184, %v2184
      %v2189 = vpack.c.b16 %v2185, %v2185
      %2194 = vst.msk [vmem:[%s888] sm:$0xf] %vm2117, %v2186
      %2195 = vst.msk [vmem:[%s888 + $0x4] sm:$0xf] %vm2117, %v2187
      %2196 = vst.msk [vmem:[%s888 + $0x8] sm:$0xf] %vm2117, %v2188
      %2197 = vst.msk [vmem:[%s888 + $0xc] sm:$0xf] %vm2117, %v2189
      %v2198 = vpack.c.bf16 %v1832, %v1829
      %v2199 = vpack.c.bf16 %v1840, %v1837
      %v2202 = vunpack.c.l.b16 %v2198
      %v2203 = vunpack.c.h.b16 %v2198
      %v2204 = vunpack.c.l.b16 %v2199
      %v2205 = vunpack.c.h.b16 %v2199
      %v2206 = vpack.c.b16 %v2202, %v2202
      %v2207 = vpack.c.b16 %v2203, %v2203
      %v2208 = vpack.c.b16 %v2204, %v2204
      %v2209 = vpack.c.b16 %v2205, %v2205
      %2214 = vst.msk [vmem:[%s894] sm:$0xf] %vm2117, %v2206
      %2215 = vst.msk [vmem:[%s894 + $0x4] sm:$0xf] %vm2117, %v2207
      %2216 = vst.msk [vmem:[%s894 + $0x8] sm:$0xf] %vm2117, %v2208
      %2217 = vst.msk [vmem:[%s894 + $0xc] sm:$0xf] %vm2117, %v2209
      %s2218 = smul.u32 4, %s38
      %p2219 = scmp.lt.s32.totalorder %s2218, 15
      %s2220 = scalar_select %p2219, %s2218, 15
      %s2221 = smul.addr %s2220, 4
      %s2222 = scalar_lea.vmem %s20, %s2221
      %s2223 = smul.u32 4, %s38
      %p2224 = scmp.lt.s32.totalorder %s2223, 15
      %s2225 = scalar_select %p2224, %s2223, 15
      %s2226 = smul.addr %s2225, 8
      %s2227 = scalar_lea.vmem %s21, %s2226
      %s2228 = smul.u32 4, %s38
      %p2229 = scmp.lt.s32.totalorder %s2228, 15
      %s2230 = scalar_select %p2229, %s2228, 15
      %s2231 = smul.addr %s2230, 4
      %s2232 = scalar_lea.vmem %s22, %s2231
      %s2233 = smul.u32 4, %s38
      %p2234 = scmp.lt.s32.totalorder %s2233, 15
      %s2235 = scalar_select %p2234, %s2233, 15
      %s2236 = smul.addr %s2235, 8
      %s2237 = scalar_lea.vmem %s23, %s2236
      %s2238 = smul.u32 4, %s38
      %p2239 = scmp.lt.s32.totalorder %s2238, 15
      %s2240 = scalar_select %p2239, %s2238, 15
      %s2241 = smul.addr %s2240, 4
      %s2242 = scalar_lea.vmem %s24, %s2241
      %s2243 = smul.u32 4, %s38
      %p2244 = scmp.lt.s32.totalorder %s2243, 15
      %s2245 = scalar_select %p2244, %s2243, 15
      %s2246 = smul.addr %s2245, 4
      %s2247 = scalar_lea.vmem %s25, %s2246
      %s2248 = smul.u32 4, %s38
      %p2249 = scmp.lt.s32.totalorder %s2248, 15
      %s2250 = scalar_select %p2249, %s2248, 15
      %s2251 = smul.addr %s2250, 4
      %s2252 = scalar_lea.vmem %s26, %s2251
      // Predicated region
      $region101: #{rwkv_tmix_forward.3} parent=99 // pred_check
        %p2253 = pneg %p486
      $region102: #{rwkv_tmix_forward.3} parent=99 // pred_check_branch
        %2255 = sbr.rel (%p2253) target = $region104
      $region103: #{rwkv_tmix_forward.3} parent=99 // pred_region
        %s2256 = smul.u32 4, %s38
      $region104: #{rwkv_tmix_forward.3} parent=99 // pred_fallthru
        _
      // Predicated region
      $region105: #{rwkv_tmix_forward.3} parent=99 // pred_check
        %p2257 = pneg %p512
      $region106: #{rwkv_tmix_forward.3} parent=99 // pred_check_branch
        %2259 = sbr.rel (%p2257) target = $region108
      $region107: #{rwkv_tmix_forward.3} parent=99 // pred_region
        %s2260 = smul.u32 4, %s38
      $region108: #{rwkv_tmix_forward.3} parent=99 // pred_fallthru
        _
      // Predicated region
      $region109: #{rwkv_tmix_forward.3} parent=99 // pred_check
        %p2261 = pneg %p538
      $region110: #{rwkv_tmix_forward.3} parent=99 // pred_check_branch
        %2263 = sbr.rel (%p2261) target = $region112
      $region111: #{rwkv_tmix_forward.3} parent=99 // pred_region
        %s2264 = smul.u32 4, %s38
      $region112: #{rwkv_tmix_forward.3} parent=99 // pred_fallthru
        _
      // Predicated region
      $region113: #{rwkv_tmix_forward.3} parent=99 // pred_check
        %p2265 = pneg %p564
      $region114: #{rwkv_tmix_forward.3} parent=99 // pred_check_branch
        %2267 = sbr.rel (%p2265) target = $region116
      $region115: #{rwkv_tmix_forward.3} parent=99 // pred_region
        %s2268 = smul.u32 4, %s38
      $region116: #{rwkv_tmix_forward.3} parent=99 // pred_fallthru
        _
      // Predicated region
      $region117: #{rwkv_tmix_forward.3} parent=99 // pred_check
        %p2269 = pneg %p590
      $region118: #{rwkv_tmix_forward.3} parent=99 // pred_check_branch
        %2271 = sbr.rel (%p2269) target = $region120
      $region119: #{rwkv_tmix_forward.3} parent=99 // pred_region
        %s2272 = smul.u32 4, %s38
      $region120: #{rwkv_tmix_forward.3} parent=99 // pred_fallthru
        _
      // Predicated region
      $region121: #{rwkv_tmix_forward.3} parent=99 // pred_check
        %p2273 = pneg %p616
      $region122: #{rwkv_tmix_forward.3} parent=99 // pred_check_branch
        %2275 = sbr.rel (%p2273) target = $region124
      $region123: #{rwkv_tmix_forward.3} parent=99 // pred_region
        %s2276 = smul.u32 4, %s38
      $region124: #{rwkv_tmix_forward.3} parent=99 // pred_fallthru
        _
      // Predicated region
      $region125: #{rwkv_tmix_forward.3} parent=99 // pred_check
        %p2277 = pneg %p642
      $region126: #{rwkv_tmix_forward.3} parent=99 // pred_check_branch
        %2279 = sbr.rel (%p2277) target = $region128
      $region127: #{rwkv_tmix_forward.3} parent=99 // pred_region
        %s2280 = smul.u32 4, %s38
      $region128: #{rwkv_tmix_forward.3} parent=99 // pred_fallthru
        _
    $region100: #{rwkv_tmix_forward.3} parent=5 // pred_fallthru
      _
    %p2281 = scmp.le.s32.totalorder 2, %s33
    // Predicated region
    $region129: #{rwkv_tmix_forward.3} parent=5 // pred_check
      %p2282 = pneg %p2281
    $region130: #{rwkv_tmix_forward.3} parent=5 // pred_check_branch
      %2284 = sbr.rel (%p2282) target = $region132
    $region131: #{rwkv_tmix_forward.3} parent=5 // pred_region
      %s2285 = ssub.s32 %s33, 2
      // Predicated region
      $region133: #{rwkv_tmix_forward.3} parent=131 // pred_check
        %p2286 = pneg %p492
      $region134: #{rwkv_tmix_forward.3} parent=131 // pred_check_branch
        %2288 = sbr.rel (%p2286) target = $region136
      $region135: #{rwkv_tmix_forward.3} parent=131 // pred_region
        %s2289 = smul.u32 4, %s39
        %p2290 = scmp.lt.s32.totalorder %s2289, 15
        %s2291 = scalar_select %p2290, %s2289, 15
        %s2292 = smul.addr %s2291, 4
        %s2293 = scalar_lea.vmem %s20, %s2292
      $region136: #{rwkv_tmix_forward.3} parent=131 // pred_fallthru
        _
      // Predicated region
      $region137: #{rwkv_tmix_forward.3} parent=131 // pred_check
        %p2294 = pneg %p518
      $region138: #{rwkv_tmix_forward.3} parent=131 // pred_check_branch
        %2296 = sbr.rel (%p2294) target = $region140
      $region139: #{rwkv_tmix_forward.3} parent=131 // pred_region
        %s2297 = smul.u32 4, %s39
        %p2298 = scmp.lt.s32.totalorder %s2297, 15
        %s2299 = scalar_select %p2298, %s2297, 15
        %s2300 = smul.addr %s2299, 8
        %s2301 = scalar_lea.vmem %s21, %s2300
      $region140: #{rwkv_tmix_forward.3} parent=131 // pred_fallthru
        _
      // Predicated region
      $region141: #{rwkv_tmix_forward.3} parent=131 // pred_check
        %p2302 = pneg %p544
      $region142: #{rwkv_tmix_forward.3} parent=131 // pred_check_branch
        %2304 = sbr.rel (%p2302) target = $region144
      $region143: #{rwkv_tmix_forward.3} parent=131 // pred_region
        %s2305 = smul.u32 4, %s39
        %p2306 = scmp.lt.s32.totalorder %s2305, 15
        %s2307 = scalar_select %p2306, %s2305, 15
        %s2308 = smul.addr %s2307, 4
        %s2309 = scalar_lea.vmem %s22, %s2308
      $region144: #{rwkv_tmix_forward.3} parent=131 // pred_fallthru
        _
      // Predicated region
      $region145: #{rwkv_tmix_forward.3} parent=131 // pred_check
        %p2310 = pneg %p570
      $region146: #{rwkv_tmix_forward.3} parent=131 // pred_check_branch
        %2312 = sbr.rel (%p2310) target = $region148
      $region147: #{rwkv_tmix_forward.3} parent=131 // pred_region
        %s2313 = smul.u32 4, %s39
        %p2314 = scmp.lt.s32.totalorder %s2313, 15
        %s2315 = scalar_select %p2314, %s2313, 15
        %s2316 = smul.addr %s2315, 8
        %s2317 = scalar_lea.vmem %s23, %s2316
      $region148: #{rwkv_tmix_forward.3} parent=131 // pred_fallthru
        _
      // Predicated region
      $region149: #{rwkv_tmix_forward.3} parent=131 // pred_check
        %p2318 = pneg %p596
      $region150: #{rwkv_tmix_forward.3} parent=131 // pred_check_branch
        %2320 = sbr.rel (%p2318) target = $region152
      $region151: #{rwkv_tmix_forward.3} parent=131 // pred_region
        %s2321 = smul.u32 4, %s39
        %p2322 = scmp.lt.s32.totalorder %s2321, 15
        %s2323 = scalar_select %p2322, %s2321, 15
        %s2324 = smul.addr %s2323, 4
        %s2325 = scalar_lea.vmem %s24, %s2324
      $region152: #{rwkv_tmix_forward.3} parent=131 // pred_fallthru
        _
      // Predicated region
      $region153: #{rwkv_tmix_forward.3} parent=131 // pred_check
        %p2326 = pneg %p622
      $region154: #{rwkv_tmix_forward.3} parent=131 // pred_check_branch
        %2328 = sbr.rel (%p2326) target = $region156
      $region155: #{rwkv_tmix_forward.3} parent=131 // pred_region
        %s2329 = smul.u32 4, %s39
        %p2330 = scmp.lt.s32.totalorder %s2329, 15
        %s2331 = scalar_select %p2330, %s2329, 15
        %s2332 = smul.addr %s2331, 4
        %s2333 = scalar_lea.vmem %s25, %s2332
      $region156: #{rwkv_tmix_forward.3} parent=131 // pred_fallthru
        _
      // Predicated region
      $region157: #{rwkv_tmix_forward.3} parent=131 // pred_check
        %p2334 = pneg %p648
      $region158: #{rwkv_tmix_forward.3} parent=131 // pred_check_branch
        %2336 = sbr.rel (%p2334) target = $region160
      $region159: #{rwkv_tmix_forward.3} parent=131 // pred_region
        %s2337 = smul.u32 4, %s39
        %p2338 = scmp.lt.s32.totalorder %s2337, 15
        %s2339 = scalar_select %p2338, %s2337, 15
        %s2340 = smul.addr %s2339, 4
        %s2341 = scalar_lea.vmem %s26, %s2340
      $region160: #{rwkv_tmix_forward.3} parent=131 // pred_fallthru
        _
    $region132: #{rwkv_tmix_forward.3} parent=5 // pred_fallthru
      _
  $region6: #{rwkv_tmix_forward.3} parent=0 // loop_footer
    %s37 = sadd.s32 1, %s33
  $region7: #{rwkv_tmix_forward.3} parent=0 // loop_footer_branch
    %32 = sbr.rel target = $region3
  $region8: #{rwkv_tmix_forward.3} parent=0 // loop_exit
    _

</llo_original>
